<compile_context>
chip_gen: v7x
topology: tpu7x:2x2x1
jax: 0.10.0
libtpu: 0.0.40
codegen_flags: <defaults>
</compile_context>

<pallas_src>
import functools

import jax
import jax.numpy as jnp
from jax import lax
from jax.experimental import pallas as pl
from jax.experimental.pallas import tpu as pltpu


# ---------------------------------------------------------------------------
# Fused conv chain: conv1 -> conv2 -> conv3 (+res) -> conv4, all in VMEM.
# ---------------------------------------------------------------------------
def _conv_chain_kernel(p1_ref, w1_ref, wk_ref, sc_ref, bi_ref, o_ref,
                       pad_a, pad_b, *, ho, wo, c, rh):
    f32 = jnp.float32
    bf16 = jnp.bfloat16

    def row_chunks():
        chunks = []
        r0 = 0
        while r0 < ho:
            rc = min(rh, ho - r0)
            chunks.append((r0, rc))
            r0 += rc
        return chunks

    def affine_lrelu(acc, layer):
        s = sc_ref[layer:layer + 1, :]            # (1, C) folded BN scale
        b = bi_ref[layer:layer + 1, :]            # (1, C) folded conv+BN bias
        y = acc * s + b
        return jnp.where(y >= 0, y, 0.1 * y)      # LeakyReLU(0.1)

    def zero_border(pad_ref):
        # Interior is fully overwritten each stage; only the 1-px halo border
        # must be zero.  (Done per grid step -> megacore-safe.)
        pad_ref[0:1, :, :] = jnp.zeros((1, wo + 2, c), bf16)
        pad_ref[ho + 1:ho + 2, :, :] = jnp.zeros((1, wo + 2, c), bf16)
        pad_ref[:, 0:1, :] = jnp.zeros((ho + 2, 1, c), bf16)
        pad_ref[:, wo + 1:wo + 2, :] = jnp.zeros((ho + 2, 1, c), bf16)

    zero_border(pad_a)
    zero_border(pad_b)

    # conv1 (stride 2, 5x5, Cin=1) as row-chunked matmuls on pre-extracted
    # patches (K padded 25 -> 32 for MXU alignment).
    for r0, rc in row_chunks():
        patch = p1_ref[r0 * wo:(r0 + rc) * wo, :]
        y = affine_lrelu(
            jnp.dot(patch, w1_ref[...], preferred_element_type=f32), 0)
        pad_a[1 + r0:1 + r0 + rc, 1:1 + wo, :] = (
            y.reshape(rc, wo, c).astype(bf16))

    def conv3x3_stage(src, dst, layer, residual=False):
        # act(conv3x3(src interior)) [+ src interior], written to dst interior
        # (or to o_ref if dst is None).  Per ki: one hoisted slab load and one
        # fused K=3*C matmul over the 3 kj taps.
        for r0, rc in row_chunks():
            acc = jnp.zeros((rc * wo, c), f32)
            for ki in range(3):
                slab = src[r0 + ki:r0 + ki + rc, :, :]        # (rc, wo+2, C)
                win = jnp.concatenate(
                    [slab[:, kj:kj + wo, :] for kj in range(3)],
                    axis=-1).reshape(rc * wo, 3 * c)
                acc = acc + jnp.dot(win, wk_ref[layer - 1, ki],
                                    preferred_element_type=f32)
            y = affine_lrelu(acc, layer)
            if residual:                            # residual AFTER activation
                y = y + src[1 + r0:1 + r0 + rc, 1:1 + wo, :].reshape(
                    rc * wo, c).astype(f32)
            if dst is None:
                o_ref[r0 * wo:(r0 + rc) * wo, :] = y.astype(o_ref.dtype)
            else:
                dst[1 + r0:1 + r0 + rc, 1:1 + wo, :] = (
                    y.reshape(rc, wo, c).astype(bf16))

    conv3x3_stage(pad_a, pad_b, 1)                  # conv2
    conv3x3_stage(pad_b, pad_a, 2, residual=True)   # conv3 + residual
    conv3x3_stage(pad_a, None, 3)                   # conv4 -> output


def conv_chain(patches, w1, w234, scales, biases, ho, wo, c):
    n, howo, kc1 = patches.shape
    # Row-chunk size: full plane at toy sizes, ~512-row (of ho*wo) chunks at
    # real size to bound live f32 accumulator ranges (avoid vreg spills).
    rh = ho if ho * wo <= 1024 else max(1, 512 // wo)
    kernel = functools.partial(_conv_chain_kernel, ho=ho, wo=wo, c=c, rh=rh)
    return pl.pallas_call(
        kernel,
        out_shape=jax.ShapeDtypeStruct((n, howo, c), jnp.bfloat16),
        grid=(n,),
        in_specs=[
            pl.BlockSpec((None, howo, kc1), lambda b: (b, 0, 0)),
            pl.BlockSpec((kc1, c), lambda b: (0, 0)),
            pl.BlockSpec((3, 3, 3 * c, c), lambda b: (0, 0, 0, 0)),
            pl.BlockSpec((4, c), lambda b: (0, 0)),
            pl.BlockSpec((4, c), lambda b: (0, 0)),
        ],
        out_specs=pl.BlockSpec((None, howo, c), lambda b: (b, 0, 0)),
        scratch_shapes=[
            pltpu.VMEM((ho + 2, wo + 2, c), jnp.bfloat16),   # halo buffer A
            pltpu.VMEM((ho + 2, wo + 2, c), jnp.bfloat16),   # halo buffer B
        ],
        compiler_params=pltpu.CompilerParams(
            dimension_semantics=("parallel",)),              # batch across TCs
    )(patches, w1, w234, scales, biases)


# ---------------------------------------------------------------------------
# Fused fc1 + LeakyReLU + fc2, K-tiled and split over fc1's hidden dim so
# both TensorCores (v7x) stream half the fc1 weight each.
# ---------------------------------------------------------------------------
def _fc_fused_kernel(x_ref, w1_ref, b1_ref, w2_ref, o_ref, acc_ref):
    k = pl.program_id(2)

    @pl.when(k == 0)
    def _():
        acc_ref[...] = jnp.zeros_like(acc_ref)

    acc_ref[...] += jnp.dot(x_ref[...], w1_ref[...],
                            preferred_element_type=jnp.float32)

    @pl.when(k == pl.num_programs(2) - 1)
    def _():
        y = acc_ref[...] + b1_ref[...]
        y = jnp.where(y >= 0, y, 0.1 * y)            # LeakyReLU(0.1)
        # Dropout is identity in eval mode.  Partial fc2 over this h-slice;
        # slices are summed (and b2 added) in the wrapper.
        z = jnp.dot(y.astype(jnp.bfloat16), w2_ref[...],
                    preferred_element_type=jnp.float32)
        o_ref[...] = z.astype(o_ref.dtype)


def fc1_lrelu_fc2(x, w1, b1, w2, b2, *, tk=None, n_h=2, lane_pad=128):
    m, k = x.shape
    h1 = w1.shape[1]                                 # 256
    n_out = w2.shape[1]                              # 8

    if x.dtype != jnp.bfloat16:
        x = x.astype(jnp.bfloat16)

    # Big K tile: 2560 divides the real 58880 exactly; 2048 otherwise.
    if tk is None:
        tk = 2560 if k % 2560 == 0 else 2048
    tk = min(tk, ((k + 127) // 128) * 128)

    # Split fc1 hidden dim across a parallel grid axis (v7x dual-core).
    if h1 % n_h != 0 or (h1 // n_h) % 128 != 0:
        n_h = 1
    hh = h1 // n_h

    # Pad K to a tile multiple (zero rows/cols contribute nothing).
    kp = ((k + tk - 1) // tk) * tk
    if kp != k:
        x = jnp.pad(x, ((0, 0), (0, kp - k)))
        w1 = jnp.pad(w1, ((0, kp - k), (0, 0)))

    # Lane-dense output: pad fc2's 8 outputs up to 128 lanes, slice afterwards.
    n_pad = max(lane_pad, n_out)
    w2p = jnp.pad(w2, ((0, 0), (0, n_pad - n_out)))

    # Row tiling: small m -> one full-m block; large m -> 128-row tiles + pad.
    tm = m if m <= 128 else 128
    mp = ((m + tm - 1) // tm) * tm
    if mp != m:
        x = jnp.pad(x, ((0, mp - m), (0, 0)))

    grid = (n_h, mp // tm, kp // tk)

    # Explicit VMEM budget sized to the double-buffered tile footprint, capped
    # well under v7x's 64 MiB physical VMEM.
    tile_bytes = (2 * tm * tk * 2 + 2 * tk * hh * 2 + 2 * hh * n_pad * 2 +
                  2 * tm * n_pad * 4 + tm * hh * 4 + 2 * hh * 4)
    vmem_limit = int(min(max(2 * tile_bytes, 16 * 1024 * 1024),
                         48 * 1024 * 1024))

    out = pl.pallas_call(
        _fc_fused_kernel,
        out_shape=jax.ShapeDtypeStruct((n_h, mp, n_pad), jnp.float32),
        grid=grid,
        in_specs=[
            pl.BlockSpec((tm, tk), lambda h, i, kk: (i, kk)),
            pl.BlockSpec((tk, hh), lambda h, i, kk: (kk, h)),
            pl.BlockSpec((1, hh), lambda h, i, kk: (0, h)),
            pl.BlockSpec((hh, n_pad), lambda h, i, kk: (h, 0)),
        ],
        out_specs=pl.BlockSpec((None, tm, n_pad), lambda h, i, kk: (h, i, 0)),
        scratch_shapes=[pltpu.VMEM((tm, hh), jnp.float32)],
        compiler_params=pltpu.CompilerParams(
            dimension_semantics=("parallel", "parallel", "arbitrary"),
            vmem_limit_bytes=vmem_limit),
    )(x, w1, b1.reshape(1, h1).astype(jnp.float32), w2p)

    # Sum partial fc2 contributions from the h-slices, add b2, strip padding.
    return out.sum(axis=0)[:m, :n_out] + b2.astype(jnp.float32)


# ---------------------------------------------------------------------------
# Glue (pure data movement / one-time parameter packing).
# ---------------------------------------------------------------------------
def _conv1_patches(x_nhw, kh=5, kw=5, stride=2, pad=2, k_pad=32):
    """5x5/stride-2 patch extraction for conv1 (no arithmetic)."""
    xp = jnp.pad(x_nhw, ((0, 0), (pad, pad), (pad, pad)))
    n, hp, wp = xp.shape
    ho = (hp - kh) // stride + 1
    wo = (wp - kw) // stride + 1
    cols = []
    for i in range(kh):
        for j in range(kw):
            cols.append(xp[:, i:i + stride * ho:stride, j:j + stride * wo:stride])
    p = jnp.stack(cols, axis=-1).reshape(n, ho * wo, kh * kw)
    p = jnp.pad(p, ((0, 0), (0, 0), (0, k_pad - kh * kw)))    # K: 25 -> 32
    return p, ho, wo


def fold_bn(conv_bias, gamma, beta, mean, var, eps=1e-5):
    """Fold conv bias + eval-mode BatchNorm into one affine (scale, bias)."""
    scale = gamma / jnp.sqrt(var + eps)
    bias = (conv_bias - mean) * scale + beta
    return scale, bias


def init_params(key, H, W):
    """Synthetic torch-layout params (HWIO convs, NCHW-flatten-ordered fc1)."""
    C = 64
    ho = (H + 2 * 2 - 5) // 2 + 1
    wo = (W + 2 * 2 - 5) // 2 + 1
    flat = C * ho * wo                        # analogue of 58880 at small size
    ks = jax.random.split(key, 32)

    def nrm(k, shape, s=0.05):
        return jax.random.normal(k, shape, jnp.float32) * s

    p = {}
    p["w1"] = nrm(ks[0], (5, 5, 1, C))                  # conv1: 1 -> 64, 5x5
    p["b1"] = nrm(ks[1], (C,), 0.01)
    for li, kidx in zip((2, 3, 4), (2, 4, 6)):          # conv2..4: 64 -> 64
        p[f"w{li}"] = nrm(ks[kidx], (3, 3, C, C))
        p[f"b{li}"] = nrm(ks[kidx + 1], (C,), 0.01)
    for li, kidx in zip((1, 2, 3, 4), (8, 12, 16, 20)):  # BN running stats
        p[f"g{li}"] = 1.0 + nrm(ks[kidx], (C,), 0.1)
        p[f"be{li}"] = nrm(ks[kidx + 1], (C,), 0.1)
        p[f"m{li}"] = nrm(ks[kidx + 2], (C,), 0.1)
        p[f"v{li}"] = 0.5 + jax.random.uniform(ks[kidx + 3], (C,), jnp.float32)
    p["fw1"] = nrm(ks[24], (flat, 256), 0.02)           # fc1 (NCHW-flatten rows)
    p["fb1"] = nrm(ks[25], (256,), 0.01)
    p["fw2"] = nrm(ks[26], (256, 8), 0.05)              # fc2
    p["fb2"] = nrm(ks[27], (8,), 0.01)
    return p


def prepare_params(p, H, W):
    """One-time packing of torch-layout params into kernel-ready form."""
    C = 64
    ho = (H + 2 * 2 - 5) // 2 + 1
    wo = (W + 2 * 2 - 5) // 2 + 1

    scales, biases = [], []
    for li in (1, 2, 3, 4):
        s, b = fold_bn(p[f"b{li}"], p[f"g{li}"], p[f"be{li}"],
                       p[f"m{li}"], p[f"v{li}"])
        scales.append(s)
        biases.append(b)

    w1 = jnp.pad(p["w1"].reshape(25, C), ((0, 32 - 25), (0, 0)))  # K pad -> 32
    # conv2..4 weights packed per ki-row with the 3 kj taps fused along the
    # contraction dim: (layer, ki, 3*Cin, Cout) -> one K=192 matmul per ki.
    w234 = jnp.stack([
        jnp.stack([p[f"w{li}"][ki].reshape(3 * C, C) for ki in range(3)])
        for li in (2, 3, 4)])

    # Re-order fc1 rows from torch's NCHW flatten (c,h,w) to the kernel's NHWC
    # flatten (h,w,c) so no runtime transpose is needed before fc1.
    fw1 = p["fw1"].reshape(C, ho, wo, 256).transpose(1, 2, 0, 3)
    fw1 = fw1.reshape(ho * wo * C, 256)

    return {
        "w1": w1.astype(jnp.bfloat16),
        "w234": w234.astype(jnp.bfloat16),
        "scale": jnp.stack(scales).astype(jnp.float32),
        "bias": jnp.stack(biases).astype(jnp.float32),
        "fw1": fw1.astype(jnp.bfloat16),     # bf16 at prep time: no per-call cast
        "fb1": p["fb1"].astype(jnp.float32),
        "fw2": p["fw2"].astype(jnp.bfloat16),
        "fb2": p["fb2"].astype(jnp.float32),
    }


def gesture_predictor_forward(x_nchw, kp):
    n = x_nchw.shape[0]
    x = x_nchw[:, 0, :, :].astype(jnp.float32)            # (N, H, W), Cin == 1
    patches, ho, wo = _conv1_patches(x)                   # (N, Ho*Wo, 32)
    act = conv_chain(patches.astype(jnp.bfloat16), kp["w1"], kp["w234"],
                     kp["scale"], kp["bias"], ho, wo, 64)  # (N, Ho*Wo, 64) bf16
    x_flat = act.reshape(n, ho * wo * 64)                 # NHWC flatten (free)
    return fc1_lrelu_fc2(x_flat, kp["fw1"], kp["fb1"], kp["fw2"], kp["fb2"])


# ---------------------------------------------------------------------------
# Plain-JAX f32 reference (torch semantics) for validation.
# ---------------------------------------------------------------------------
def reference_forward(x_nchw, p, eps=1e-5):
    def conv_bn_act(x, w, b, g, be, m, v, stride, pad):
        y = lax.conv_general_dilated(
            x, w, window_strides=(stride, stride),
            padding=[(pad, pad), (pad, pad)],
            dimension_numbers=("NCHW", "HWIO", "NCHW"))
        y = y + b[None, :, None, None]
        s = (g / jnp.sqrt(v + eps))[None, :, None, None]
        y = (y - m[None, :, None, None]) * s + be[None, :, None, None]
        return jnp.where(y >= 0, y, 0.1 * y)

    x = x_nchw.astype(jnp.float32)
    x = conv_bn_act(x, p["w1"], p["b1"], p["g1"], p["be1"], p["m1"], p["v1"], 2, 2)
    x = conv_bn_act(x, p["w2"], p["b2"], p["g2"], p["be2"], p["m2"], p["v2"], 1, 1)
    x_res = x
    x = conv_bn_act(x, p["w3"], p["b3"], p["g3"], p["be3"], p["m3"], p["v3"], 1, 1) + x_res
    x = conv_bn_act(x, p["w4"], p["b4"], p["g4"], p["be4"], p["m4"], p["v4"], 1, 1)
    x = x.reshape(x.shape[0], -1)                          # torch.flatten (NCHW)
    x = x @ p["fw1"] + p["fb1"]
    x = jnp.where(x >= 0, x, 0.1 * x)                      # dropout = identity
    return x @ p["fw2"] + p["fb2"]


if __name__ == "__main__":
    key = jax.random.PRNGKey(0)
    k_x, k_p = jax.random.split(key)
    N, H, W = 2, 16, 16
    x = jax.random.normal(k_x, (N, 1, H, W), jnp.float32)   # NCHW, Cin=1
    params = init_params(k_p, H, W)
    kparams = prepare_params(params, H, W)

    fwd = jax.jit(gesture_predictor_forward)
    out = fwd(x, kparams)
    jax.block_until_ready(out)
    assert out.shape == (N, 8) and out.dtype == jnp.float32

    ref = reference_forward(x, params)
    max_err = jnp.max(jnp.abs(out - ref))
    assert jnp.allclose(out, ref, atol=5e-2, rtol=5e-2), f"max |diff|={max_err}"
    print("KERNEL_OK")
</pallas_src>

<mosaic_0001>
module attributes {stable_mosaic.version = 11 : i64} {
  func.func @_conv_chain_kernel(%arg0: i32, %arg1: memref<1x64x32xbf16, #tpu.memory_space<vmem>>, %arg2: memref<32x64xbf16, #tpu.memory_space<vmem>>, %arg3: memref<3x3x192x64xbf16, #tpu.memory_space<vmem>>, %arg4: memref<4x64xf32, #tpu.memory_space<vmem>>, %arg5: memref<4x64xf32, #tpu.memory_space<vmem>>, %arg6: memref<1x64x64xbf16, #tpu.memory_space<vmem>>, %arg7: memref<10x10x64xbf16, #tpu.memory_space<vmem>>, %arg8: memref<10x10x64xbf16, #tpu.memory_space<vmem>>) attributes {dimension_semantics = [#tpu.dimension_semantics<parallel>], iteration_bounds = array<i64: 2>, scalar_prefetch = 0 : i64, scratch_operands = 2 : i64, tpu.core_type = #tpu.core_type<tc>, window_params = [{transform_indices = @transform_0, window_bounds = array<i64: 1, 64, 32>}, {pipeline_mode = #tpu.pipeline_mode<synchronous>, transform_indices = @transform_1, window_bounds = array<i64: 32, 64>}, {pipeline_mode = #tpu.pipeline_mode<synchronous>, transform_indices = @transform_2, window_bounds = array<i64: 3, 3, 192, 64>}, {pipeline_mode = #tpu.pipeline_mode<synchronous>, transform_indices = @transform_3, window_bounds = array<i64: 4, 64>}, {pipeline_mode = #tpu.pipeline_mode<synchronous>, transform_indices = @transform_4, window_bounds = array<i64: 4, 64>}, {transform_indices = @transform_5, window_bounds = array<i64: 1, 64, 64>}]} {
    %cst = arith.constant 0.000000e+00 : bf16
    %0 = vector.broadcast %cst : bf16 to vector<1x10x64xbf16>
    %c0 = arith.constant 0 : index
    %c0_0 = arith.constant 0 : index
    %c0_1 = arith.constant 0 : index
    %1 = vector.load %arg7[%c0, %c0_0, %c0_1] : memref<10x10x64xbf16, #tpu.memory_space<vmem>>, vector<1x10x64xbf16>
    tpu.vector_store %arg7[%c0, %c0_0, %c0_1], %0 {strides = array<i32>} : memref<10x10x64xbf16, #tpu.memory_space<vmem>>, vector<1x10x64xbf16>,
    %cst_2 = arith.constant 0.000000e+00 : bf16
    %2 = vector.broadcast %cst_2 : bf16 to vector<1x10x64xbf16>
    %c9 = arith.constant 9 : index
    %c0_3 = arith.constant 0 : index
    %c0_4 = arith.constant 0 : index
    %3 = vector.load %arg7[%c9, %c0_3, %c0_4] : memref<10x10x64xbf16, #tpu.memory_space<vmem>>, vector<1x10x64xbf16>
    tpu.vector_store %arg7[%c9, %c0_3, %c0_4], %2 {strides = array<i32>} : memref<10x10x64xbf16, #tpu.memory_space<vmem>>, vector<1x10x64xbf16>,
    %cst_5 = arith.constant 0.000000e+00 : bf16
    %4 = vector.broadcast %cst_5 : bf16 to vector<10x1x64xbf16>
    %c0_6 = arith.constant 0 : index
    %c0_7 = arith.constant 0 : index
    %c0_8 = arith.constant 0 : index
    %5 = vector.load %arg7[%c0_6, %c0_7, %c0_8] : memref<10x10x64xbf16, #tpu.memory_space<vmem>>, vector<10x1x64xbf16>
    tpu.vector_store %arg7[%c0_6, %c0_7, %c0_8], %4 {strides = array<i32>} : memref<10x10x64xbf16, #tpu.memory_space<vmem>>, vector<10x1x64xbf16>,
    %cst_9 = arith.constant 0.000000e+00 : bf16
    %6 = vector.broadcast %cst_9 : bf16 to vector<10x1x64xbf16>
    %c0_10 = arith.constant 0 : index
    %c9_11 = arith.constant 9 : index
    %c0_12 = arith.constant 0 : index
    %7 = vector.load %arg7[%c0_10, %c9_11, %c0_12] : memref<10x10x64xbf16, #tpu.memory_space<vmem>>, vector<10x1x64xbf16>
    tpu.vector_store %arg7[%c0_10, %c9_11, %c0_12], %6 {strides = array<i32>} : memref<10x10x64xbf16, #tpu.memory_space<vmem>>, vector<10x1x64xbf16>,
    %cst_13 = arith.constant 0.000000e+00 : bf16
    %8 = vector.broadcast %cst_13 : bf16 to vector<1x10x64xbf16>
    %c0_14 = arith.constant 0 : index
    %c0_15 = arith.constant 0 : index
    %c0_16 = arith.constant 0 : index
    %9 = vector.load %arg8[%c0_14, %c0_15, %c0_16] : memref<10x10x64xbf16, #tpu.memory_space<vmem>>, vector<1x10x64xbf16>
    tpu.vector_store %arg8[%c0_14, %c0_15, %c0_16], %8 {strides = array<i32>} : memref<10x10x64xbf16, #tpu.memory_space<vmem>>, vector<1x10x64xbf16>,
    %cst_17 = arith.constant 0.000000e+00 : bf16
    %10 = vector.broadcast %cst_17 : bf16 to vector<1x10x64xbf16>
    %c9_18 = arith.constant 9 : index
    %c0_19 = arith.constant 0 : index
    %c0_20 = arith.constant 0 : index
    %11 = vector.load %arg8[%c9_18, %c0_19, %c0_20] : memref<10x10x64xbf16, #tpu.memory_space<vmem>>, vector<1x10x64xbf16>
    tpu.vector_store %arg8[%c9_18, %c0_19, %c0_20], %10 {strides = array<i32>} : memref<10x10x64xbf16, #tpu.memory_space<vmem>>, vector<1x10x64xbf16>,
    %cst_21 = arith.constant 0.000000e+00 : bf16
    %12 = vector.broadcast %cst_21 : bf16 to vector<10x1x64xbf16>
    %c0_22 = arith.constant 0 : index
    %c0_23 = arith.constant 0 : index
    %c0_24 = arith.constant 0 : index
    %13 = vector.load %arg8[%c0_22, %c0_23, %c0_24] : memref<10x10x64xbf16, #tpu.memory_space<vmem>>, vector<10x1x64xbf16>
    tpu.vector_store %arg8[%c0_22, %c0_23, %c0_24], %12 {strides = array<i32>} : memref<10x10x64xbf16, #tpu.memory_space<vmem>>, vector<10x1x64xbf16>,
    %cst_25 = arith.constant 0.000000e+00 : bf16
    %14 = vector.broadcast %cst_25 : bf16 to vector<10x1x64xbf16>
    %c0_26 = arith.constant 0 : index
    %c9_27 = arith.constant 9 : index
    %c0_28 = arith.constant 0 : index
    %15 = vector.load %arg8[%c0_26, %c9_27, %c0_28] : memref<10x10x64xbf16, #tpu.memory_space<vmem>>, vector<10x1x64xbf16>
    tpu.vector_store %arg8[%c0_26, %c9_27, %c0_28], %14 {strides = array<i32>} : memref<10x10x64xbf16, #tpu.memory_space<vmem>>, vector<10x1x64xbf16>,
    %c0_29 = arith.constant 0 : index
    %c0_30 = arith.constant 0 : index
    %c0_31 = arith.constant 0 : index
    %16 = vector.load %arg1[%c0_29, %c0_30, %c0_31] : memref<1x64x32xbf16, #tpu.memory_space<vmem>>, vector<1x64x32xbf16>
    %17 = vector.shape_cast %16 : vector<1x64x32xbf16> to vector<64x32xbf16>
    %c0_32 = arith.constant 0 : index
    %c0_33 = arith.constant 0 : index
    %18 = vector.load %arg2[%c0_32, %c0_33] : memref<32x64xbf16, #tpu.memory_space<vmem>>, vector<32x64xbf16>
    %cst_34 = arith.constant dense<0.000000e+00> : vector<64x64xf32>
    %19 = tpu.matmul %17, %18, %cst_34 {dimension_numbers = #tpu.dot_dimension_numbers<[1], [0], [0], [1], [0, 0, 1, 1], [], []>} : vector<64x32xbf16>, vector<32x64xbf16>, vector<64x64xf32> -> vector<64x64xf32>
    %c0_35 = arith.constant 0 : index
    %c0_36 = arith.constant 0 : index
    %20 = vector.load %arg4[%c0_35, %c0_36] : memref<4x64xf32, #tpu.memory_space<vmem>>, vector<1x64xf32>
    %c0_37 = arith.constant 0 : index
    %c0_38 = arith.constant 0 : index
    %21 = vector.load %arg5[%c0_37, %c0_38] : memref<4x64xf32, #tpu.memory_space<vmem>>, vector<1x64xf32>
    %22 = vector.broadcast %20 : vector<1x64xf32> to vector<64x64xf32>
    %23 = arith.mulf %19, %22 : vector<64x64xf32>
    %24 = vector.broadcast %21 : vector<1x64xf32> to vector<64x64xf32>
    %25 = arith.addf %23, %24 : vector<64x64xf32>
    %cst_39 = arith.constant 0.000000e+00 : f32
    %26 = vector.broadcast %cst_39 : f32 to vector<64x64xf32>
    %27 = arith.cmpf oge, %25, %26 : vector<64x64xf32>
    %cst_40 = arith.constant 1.000000e-01 : f32
    %28 = vector.broadcast %cst_40 : f32 to vector<64x64xf32>
    %29 = arith.mulf %28, %25 : vector<64x64xf32>
    %30 = arith.select %27, %25, %29 : vector<64x64xi1>, vector<64x64xf32>
    %31 = vector.shape_cast %30 : vector<64x64xf32> to vector<8x8x64xf32>
    %32 = arith.truncf %31 : vector<8x8x64xf32> to vector<8x8x64xbf16>
    %c1 = arith.constant 1 : index
    %c1_41 = arith.constant 1 : index
    %c0_42 = arith.constant 0 : index
    %33 = vector.load %arg7[%c1, %c1_41, %c0_42] : memref<10x10x64xbf16, #tpu.memory_space<vmem>>, vector<8x8x64xbf16>
    tpu.vector_store %arg7[%c1, %c1_41, %c0_42], %32 {strides = array<i32>} : memref<10x10x64xbf16, #tpu.memory_space<vmem>>, vector<8x8x64xbf16>,
    %cst_43 = arith.constant 0.000000e+00 : f32
    %34 = vector.broadcast %cst_43 : f32 to vector<64x64xf32>
    %c0_44 = arith.constant 0 : index
    %c0_45 = arith.constant 0 : index
    %c0_46 = arith.constant 0 : index
    %35 = vector.load %arg7[%c0_44, %c0_45, %c0_46] : memref<10x10x64xbf16, #tpu.memory_space<vmem>>, vector<8x10x64xbf16>
    %36 = vector.extract_strided_slice %35 {offsets = [0, 0, 0], sizes = [8, 8, 64], strides = [1, 1, 1]} : vector<8x10x64xbf16> to vector<8x8x64xbf16>
    %37 = vector.extract_strided_slice %35 {offsets = [0, 1, 0], sizes = [8, 8, 64], strides = [1, 1, 1]} : vector<8x10x64xbf16> to vector<8x8x64xbf16>
    %38 = vector.extract_strided_slice %35 {offsets = [0, 2, 0], sizes = [8, 8, 64], strides = [1, 1, 1]} : vector<8x10x64xbf16> to vector<8x8x64xbf16>
    %39 = tpu.concatenate %36, %37, %38 in 2 : vector<8x8x64xbf16>, vector<8x8x64xbf16>, vector<8x8x64xbf16> -> vector<8x8x192xbf16>
    %40 = vector.shape_cast %39 : vector<8x8x192xbf16> to vector<64x192xbf16>
    %c0_47 = arith.constant 0 : index
    %c0_48 = arith.constant 0 : index
    %c0_49 = arith.constant 0 : index
    %c0_50 = arith.constant 0 : index
    %41 = vector.load %arg3[%c0_47, %c0_48, %c0_49, %c0_50] : memref<3x3x192x64xbf16, #tpu.memory_space<vmem>>, vector<1x1x192x64xbf16>
    %42 = vector.shape_cast %41 : vector<1x1x192x64xbf16> to vector<192x64xbf16>
    %cst_51 = arith.constant dense<0.000000e+00> : vector<64x64xf32>
    %43 = tpu.matmul %40, %42, %cst_51 {dimension_numbers = #tpu.dot_dimension_numbers<[1], [0], [0], [1], [0, 0, 1, 1], [], []>} : vector<64x192xbf16>, vector<192x64xbf16>, vector<64x64xf32> -> vector<64x64xf32>
    %44 = arith.addf %34, %43 : vector<64x64xf32>
    %c1_52 = arith.constant 1 : index
    %c0_53 = arith.constant 0 : index
    %c0_54 = arith.constant 0 : index
    %45 = vector.load %arg7[%c1_52, %c0_53, %c0_54] : memref<10x10x64xbf16, #tpu.memory_space<vmem>>, vector<8x10x64xbf16>
    %46 = vector.extract_strided_slice %45 {offsets = [0, 0, 0], sizes = [8, 8, 64], strides = [1, 1, 1]} : vector<8x10x64xbf16> to vector<8x8x64xbf16>
    %47 = vector.extract_strided_slice %45 {offsets = [0, 1, 0], sizes = [8, 8, 64], strides = [1, 1, 1]} : vector<8x10x64xbf16> to vector<8x8x64xbf16>
    %48 = vector.extract_strided_slice %45 {offsets = [0, 2, 0], sizes = [8, 8, 64], strides = [1, 1, 1]} : vector<8x10x64xbf16> to vector<8x8x64xbf16>
    %49 = tpu.concatenate %46, %47, %48 in 2 : vector<8x8x64xbf16>, vector<8x8x64xbf16>, vector<8x8x64xbf16> -> vector<8x8x192xbf16>
    %50 = vector.shape_cast %49 : vector<8x8x192xbf16> to vector<64x192xbf16>
    %c0_55 = arith.constant 0 : index
    %c1_56 = arith.constant 1 : index
    %c0_57 = arith.constant 0 : index
    %c0_58 = arith.constant 0 : index
    %51 = vector.load %arg3[%c0_55, %c1_56, %c0_57, %c0_58] : memref<3x3x192x64xbf16, #tpu.memory_space<vmem>>, vector<1x1x192x64xbf16>
    %52 = vector.shape_cast %51 : vector<1x1x192x64xbf16> to vector<192x64xbf16>
    %cst_59 = arith.constant dense<0.000000e+00> : vector<64x64xf32>
    %53 = tpu.matmul %50, %52, %cst_59 {dimension_numbers = #tpu.dot_dimension_numbers<[1], [0], [0], [1], [0, 0, 1, 1], [], []>} : vector<64x192xbf16>, vector<192x64xbf16>, vector<64x64xf32> -> vector<64x64xf32>
    %54 = arith.addf %44, %53 : vector<64x64xf32>
    %c2 = arith.constant 2 : index
    %c0_60 = arith.constant 0 : index
    %c0_61 = arith.constant 0 : index
    %55 = vector.load %arg7[%c2, %c0_60, %c0_61] : memref<10x10x64xbf16, #tpu.memory_space<vmem>>, vector<8x10x64xbf16>
    %56 = vector.extract_strided_slice %55 {offsets = [0, 0, 0], sizes = [8, 8, 64], strides = [1, 1, 1]} : vector<8x10x64xbf16> to vector<8x8x64xbf16>
    %57 = vector.extract_strided_slice %55 {offsets = [0, 1, 0], sizes = [8, 8, 64], strides = [1, 1, 1]} : vector<8x10x64xbf16> to vector<8x8x64xbf16>
    %58 = vector.extract_strided_slice %55 {offsets = [0, 2, 0], sizes = [8, 8, 64], strides = [1, 1, 1]} : vector<8x10x64xbf16> to vector<8x8x64xbf16>
    %59 = tpu.concatenate %56, %57, %58 in 2 : vector<8x8x64xbf16>, vector<8x8x64xbf16>, vector<8x8x64xbf16> -> vector<8x8x192xbf16>
    %60 = vector.shape_cast %59 : vector<8x8x192xbf16> to vector<64x192xbf16>
    %c0_62 = arith.constant 0 : index
    %c2_63 = arith.constant 2 : index
    %c0_64 = arith.constant 0 : index
    %c0_65 = arith.constant 0 : index
    %61 = vector.load %arg3[%c0_62, %c2_63, %c0_64, %c0_65] : memref<3x3x192x64xbf16, #tpu.memory_space<vmem>>, vector<1x1x192x64xbf16>
    %62 = vector.shape_cast %61 : vector<1x1x192x64xbf16> to vector<192x64xbf16>
    %cst_66 = arith.constant dense<0.000000e+00> : vector<64x64xf32>
    %63 = tpu.matmul %60, %62, %cst_66 {dimension_numbers = #tpu.dot_dimension_numbers<[1], [0], [0], [1], [0, 0, 1, 1], [], []>} : vector<64x192xbf16>, vector<192x64xbf16>, vector<64x64xf32> -> vector<64x64xf32>
    %64 = arith.addf %54, %63 : vector<64x64xf32>
    %c1_67 = arith.constant 1 : index
    %c0_68 = arith.constant 0 : index
    %65 = vector.load %arg4[%c1_67, %c0_68] : memref<4x64xf32, #tpu.memory_space<vmem>>, vector<1x64xf32>
    %c1_69 = arith.constant 1 : index
    %c0_70 = arith.constant 0 : index
    %66 = vector.load %arg5[%c1_69, %c0_70] : memref<4x64xf32, #tpu.memory_space<vmem>>, vector<1x64xf32>
    %67 = vector.broadcast %65 : vector<1x64xf32> to vector<64x64xf32>
    %68 = arith.mulf %64, %67 : vector<64x64xf32>
    %69 = vector.broadcast %66 : vector<1x64xf32> to vector<64x64xf32>
    %70 = arith.addf %68, %69 : vector<64x64xf32>
    %cst_71 = arith.constant 0.000000e+00 : f32
    %71 = vector.broadcast %cst_71 : f32 to vector<64x64xf32>
    %72 = arith.cmpf oge, %70, %71 : vector<64x64xf32>
    %cst_72 = arith.constant 1.000000e-01 : f32
    %73 = vector.broadcast %cst_72 : f32 to vector<64x64xf32>
    %74 = arith.mulf %73, %70 : vector<64x64xf32>
    %75 = arith.select %72, %70, %74 : vector<64x64xi1>, vector<64x64xf32>
    %76 = vector.shape_cast %75 : vector<64x64xf32> to vector<8x8x64xf32>
    %77 = arith.truncf %76 : vector<8x8x64xf32> to vector<8x8x64xbf16>
    %c1_73 = arith.constant 1 : index
    %c1_74 = arith.constant 1 : index
    %c0_75 = arith.constant 0 : index
    %78 = vector.load %arg8[%c1_73, %c1_74, %c0_75] : memref<10x10x64xbf16, #tpu.memory_space<vmem>>, vector<8x8x64xbf16>
    tpu.vector_store %arg8[%c1_73, %c1_74, %c0_75], %77 {strides = array<i32>} : memref<10x10x64xbf16, #tpu.memory_space<vmem>>, vector<8x8x64xbf16>,
    %cst_76 = arith.constant 0.000000e+00 : f32
    %79 = vector.broadcast %cst_76 : f32 to vector<64x64xf32>
    %c0_77 = arith.constant 0 : index
    %c0_78 = arith.constant 0 : index
    %c0_79 = arith.constant 0 : index
    %80 = vector.load %arg8[%c0_77, %c0_78, %c0_79] : memref<10x10x64xbf16, #tpu.memory_space<vmem>>, vector<8x10x64xbf16>
    %81 = vector.extract_strided_slice %80 {offsets = [0, 0, 0], sizes = [8, 8, 64], strides = [1, 1, 1]} : vector<8x10x64xbf16> to vector<8x8x64xbf16>
    %82 = vector.extract_strided_slice %80 {offsets = [0, 1, 0], sizes = [8, 8, 64], strides = [1, 1, 1]} : vector<8x10x64xbf16> to vector<8x8x64xbf16>
    %83 = vector.extract_strided_slice %80 {offsets = [0, 2, 0], sizes = [8, 8, 64], strides = [1, 1, 1]} : vector<8x10x64xbf16> to vector<8x8x64xbf16>
    %84 = tpu.concatenate %81, %82, %83 in 2 : vector<8x8x64xbf16>, vector<8x8x64xbf16>, vector<8x8x64xbf16> -> vector<8x8x192xbf16>
    %85 = vector.shape_cast %84 : vector<8x8x192xbf16> to vector<64x192xbf16>
    %c1_80 = arith.constant 1 : index
    %c0_81 = arith.constant 0 : index
    %c0_82 = arith.constant 0 : index
    %c0_83 = arith.constant 0 : index
    %86 = vector.load %arg3[%c1_80, %c0_81, %c0_82, %c0_83] : memref<3x3x192x64xbf16, #tpu.memory_space<vmem>>, vector<1x1x192x64xbf16>
    %87 = vector.shape_cast %86 : vector<1x1x192x64xbf16> to vector<192x64xbf16>
    %cst_84 = arith.constant dense<0.000000e+00> : vector<64x64xf32>
    %88 = tpu.matmul %85, %87, %cst_84 {dimension_numbers = #tpu.dot_dimension_numbers<[1], [0], [0], [1], [0, 0, 1, 1], [], []>} : vector<64x192xbf16>, vector<192x64xbf16>, vector<64x64xf32> -> vector<64x64xf32>
    %89 = arith.addf %79, %88 : vector<64x64xf32>
    %c1_85 = arith.constant 1 : index
    %c0_86 = arith.constant 0 : index
    %c0_87 = arith.constant 0 : index
    %90 = vector.load %arg8[%c1_85, %c0_86, %c0_87] : memref<10x10x64xbf16, #tpu.memory_space<vmem>>, vector<8x10x64xbf16>
    %91 = vector.extract_strided_slice %90 {offsets = [0, 0, 0], sizes = [8, 8, 64], strides = [1, 1, 1]} : vector<8x10x64xbf16> to vector<8x8x64xbf16>
    %92 = vector.extract_strided_slice %90 {offsets = [0, 1, 0], sizes = [8, 8, 64], strides = [1, 1, 1]} : vector<8x10x64xbf16> to vector<8x8x64xbf16>
    %93 = vector.extract_strided_slice %90 {offsets = [0, 2, 0], sizes = [8, 8, 64], strides = [1, 1, 1]} : vector<8x10x64xbf16> to vector<8x8x64xbf16>
    %94 = tpu.concatenate %91, %92, %93 in 2 : vector<8x8x64xbf16>, vector<8x8x64xbf16>, vector<8x8x64xbf16> -> vector<8x8x192xbf16>
    %95 = vector.shape_cast %94 : vector<8x8x192xbf16> to vector<64x192xbf16>
    %c1_88 = arith.constant 1 : index
    %c1_89 = arith.constant 1 : index
    %c0_90 = arith.constant 0 : index
    %c0_91 = arith.constant 0 : index
    %96 = vector.load %arg3[%c1_88, %c1_89, %c0_90, %c0_91] : memref<3x3x192x64xbf16, #tpu.memory_space<vmem>>, vector<1x1x192x64xbf16>
    %97 = vector.shape_cast %96 : vector<1x1x192x64xbf16> to vector<192x64xbf16>
    %cst_92 = arith.constant dense<0.000000e+00> : vector<64x64xf32>
    %98 = tpu.matmul %95, %97, %cst_92 {dimension_numbers = #tpu.dot_dimension_numbers<[1], [0], [0], [1], [0, 0, 1, 1], [], []>} : vector<64x192xbf16>, vector<192x64xbf16>, vector<64x64xf32> -> vector<64x64xf32>
    %99 = arith.addf %89, %98 : vector<64x64xf32>
    %c2_93 = arith.constant 2 : index
    %c0_94 = arith.constant 0 : index
    %c0_95 = arith.constant 0 : index
    %100 = vector.load %arg8[%c2_93, %c0_94, %c0_95] : memref<10x10x64xbf16, #tpu.memory_space<vmem>>, vector<8x10x64xbf16>
    %101 = vector.extract_strided_slice %100 {offsets = [0, 0, 0], sizes = [8, 8, 64], strides = [1, 1, 1]} : vector<8x10x64xbf16> to vector<8x8x64xbf16>
    %102 = vector.extract_strided_slice %100 {offsets = [0, 1, 0], sizes = [8, 8, 64], strides = [1, 1, 1]} : vector<8x10x64xbf16> to vector<8x8x64xbf16>
    %103 = vector.extract_strided_slice %100 {offsets = [0, 2, 0], sizes = [8, 8, 64], strides = [1, 1, 1]} : vector<8x10x64xbf16> to vector<8x8x64xbf16>
    %104 = tpu.concatenate %101, %102, %103 in 2 : vector<8x8x64xbf16>, vector<8x8x64xbf16>, vector<8x8x64xbf16> -> vector<8x8x192xbf16>
    %105 = vector.shape_cast %104 : vector<8x8x192xbf16> to vector<64x192xbf16>
    %c1_96 = arith.constant 1 : index
    %c2_97 = arith.constant 2 : index
    %c0_98 = arith.constant 0 : index
    %c0_99 = arith.constant 0 : index
    %106 = vector.load %arg3[%c1_96, %c2_97, %c0_98, %c0_99] : memref<3x3x192x64xbf16, #tpu.memory_space<vmem>>, vector<1x1x192x64xbf16>
    %107 = vector.shape_cast %106 : vector<1x1x192x64xbf16> to vector<192x64xbf16>
    %cst_100 = arith.constant dense<0.000000e+00> : vector<64x64xf32>
    %108 = tpu.matmul %105, %107, %cst_100 {dimension_numbers = #tpu.dot_dimension_numbers<[1], [0], [0], [1], [0, 0, 1, 1], [], []>} : vector<64x192xbf16>, vector<192x64xbf16>, vector<64x64xf32> -> vector<64x64xf32>
    %109 = arith.addf %99, %108 : vector<64x64xf32>
    %c2_101 = arith.constant 2 : index
    %c0_102 = arith.constant 0 : index
    %110 = vector.load %arg4[%c2_101, %c0_102] : memref<4x64xf32, #tpu.memory_space<vmem>>, vector<1x64xf32>
    %c2_103 = arith.constant 2 : index
    %c0_104 = arith.constant 0 : index
    %111 = vector.load %arg5[%c2_103, %c0_104] : memref<4x64xf32, #tpu.memory_space<vmem>>, vector<1x64xf32>
    %112 = vector.broadcast %110 : vector<1x64xf32> to vector<64x64xf32>
    %113 = arith.mulf %109, %112 : vector<64x64xf32>
    %114 = vector.broadcast %111 : vector<1x64xf32> to vector<64x64xf32>
    %115 = arith.addf %113, %114 : vector<64x64xf32>
    %cst_105 = arith.constant 0.000000e+00 : f32
    %116 = vector.broadcast %cst_105 : f32 to vector<64x64xf32>
    %117 = arith.cmpf oge, %115, %116 : vector<64x64xf32>
    %cst_106 = arith.constant 1.000000e-01 : f32
    %118 = vector.broadcast %cst_106 : f32 to vector<64x64xf32>
    %119 = arith.mulf %118, %115 : vector<64x64xf32>
    %120 = arith.select %117, %115, %119 : vector<64x64xi1>, vector<64x64xf32>
    %c1_107 = arith.constant 1 : index
    %c1_108 = arith.constant 1 : index
    %c0_109 = arith.constant 0 : index
    %121 = vector.load %arg8[%c1_107, %c1_108, %c0_109] : memref<10x10x64xbf16, #tpu.memory_space<vmem>>, vector<8x8x64xbf16>
    %122 = vector.shape_cast %121 : vector<8x8x64xbf16> to vector<64x64xbf16>
    %123 = arith.extf %122 : vector<64x64xbf16> to vector<64x64xf32>
    %124 = arith.addf %120, %123 : vector<64x64xf32>
    %125 = vector.shape_cast %124 : vector<64x64xf32> to vector<8x8x64xf32>
    %126 = arith.truncf %125 : vector<8x8x64xf32> to vector<8x8x64xbf16>
    %c1_110 = arith.constant 1 : index
    %c1_111 = arith.constant 1 : index
    %c0_112 = arith.constant 0 : index
    %127 = vector.load %arg7[%c1_110, %c1_111, %c0_112] : memref<10x10x64xbf16, #tpu.memory_space<vmem>>, vector<8x8x64xbf16>
    tpu.vector_store %arg7[%c1_110, %c1_111, %c0_112], %126 {strides = array<i32>} : memref<10x10x64xbf16, #tpu.memory_space<vmem>>, vector<8x8x64xbf16>,
    %cst_113 = arith.constant 0.000000e+00 : f32
    %128 = vector.broadcast %cst_113 : f32 to vector<64x64xf32>
    %c0_114 = arith.constant 0 : index
    %c0_115 = arith.constant 0 : index
    %c0_116 = arith.constant 0 : index
    %129 = vector.load %arg7[%c0_114, %c0_115, %c0_116] : memref<10x10x64xbf16, #tpu.memory_space<vmem>>, vector<8x10x64xbf16>
    %130 = vector.extract_strided_slice %129 {offsets = [0, 0, 0], sizes = [8, 8, 64], strides = [1, 1, 1]} : vector<8x10x64xbf16> to vector<8x8x64xbf16>
    %131 = vector.extract_strided_slice %129 {offsets = [0, 1, 0], sizes = [8, 8, 64], strides = [1, 1, 1]} : vector<8x10x64xbf16> to vector<8x8x64xbf16>
    %132 = vector.extract_strided_slice %129 {offsets = [0, 2, 0], sizes = [8, 8, 64], strides = [1, 1, 1]} : vector<8x10x64xbf16> to vector<8x8x64xbf16>
    %133 = tpu.concatenate %130, %131, %132 in 2 : vector<8x8x64xbf16>, vector<8x8x64xbf16>, vector<8x8x64xbf16> -> vector<8x8x192xbf16>
    %134 = vector.shape_cast %133 : vector<8x8x192xbf16> to vector<64x192xbf16>
    %c2_117 = arith.constant 2 : index
    %c0_118 = arith.constant 0 : index
    %c0_119 = arith.constant 0 : index
    %c0_120 = arith.constant 0 : index
    %135 = vector.load %arg3[%c2_117, %c0_118, %c0_119, %c0_120] : memref<3x3x192x64xbf16, #tpu.memory_space<vmem>>, vector<1x1x192x64xbf16>
    %136 = vector.shape_cast %135 : vector<1x1x192x64xbf16> to vector<192x64xbf16>
    %cst_121 = arith.constant dense<0.000000e+00> : vector<64x64xf32>
    %137 = tpu.matmul %134, %136, %cst_121 {dimension_numbers = #tpu.dot_dimension_numbers<[1], [0], [0], [1], [0, 0, 1, 1], [], []>} : vector<64x192xbf16>, vector<192x64xbf16>, vector<64x64xf32> -> vector<64x64xf32>
    %138 = arith.addf %128, %137 : vector<64x64xf32>
    %c1_122 = arith.constant 1 : index
    %c0_123 = arith.constant 0 : index
    %c0_124 = arith.constant 0 : index
    %139 = vector.load %arg7[%c1_122, %c0_123, %c0_124] : memref<10x10x64xbf16, #tpu.memory_space<vmem>>, vector<8x10x64xbf16>
    %140 = vector.extract_strided_slice %139 {offsets = [0, 0, 0], sizes = [8, 8, 64], strides = [1, 1, 1]} : vector<8x10x64xbf16> to vector<8x8x64xbf16>
    %141 = vector.extract_strided_slice %139 {offsets = [0, 1, 0], sizes = [8, 8, 64], strides = [1, 1, 1]} : vector<8x10x64xbf16> to vector<8x8x64xbf16>
    %142 = vector.extract_strided_slice %139 {offsets = [0, 2, 0], sizes = [8, 8, 64], strides = [1, 1, 1]} : vector<8x10x64xbf16> to vector<8x8x64xbf16>
    %143 = tpu.concatenate %140, %141, %142 in 2 : vector<8x8x64xbf16>, vector<8x8x64xbf16>, vector<8x8x64xbf16> -> vector<8x8x192xbf16>
    %144 = vector.shape_cast %143 : vector<8x8x192xbf16> to vector<64x192xbf16>
    %c2_125 = arith.constant 2 : index
    %c1_126 = arith.constant 1 : index
    %c0_127 = arith.constant 0 : index
    %c0_128 = arith.constant 0 : index
    %145 = vector.load %arg3[%c2_125, %c1_126, %c0_127, %c0_128] : memref<3x3x192x64xbf16, #tpu.memory_space<vmem>>, vector<1x1x192x64xbf16>
    %146 = vector.shape_cast %145 : vector<1x1x192x64xbf16> to vector<192x64xbf16>
    %cst_129 = arith.constant dense<0.000000e+00> : vector<64x64xf32>
    %147 = tpu.matmul %144, %146, %cst_129 {dimension_numbers = #tpu.dot_dimension_numbers<[1], [0], [0], [1], [0, 0, 1, 1], [], []>} : vector<64x192xbf16>, vector<192x64xbf16>, vector<64x64xf32> -> vector<64x64xf32>
    %148 = arith.addf %138, %147 : vector<64x64xf32>
    %c2_130 = arith.constant 2 : index
    %c0_131 = arith.constant 0 : index
    %c0_132 = arith.constant 0 : index
    %149 = vector.load %arg7[%c2_130, %c0_131, %c0_132] : memref<10x10x64xbf16, #tpu.memory_space<vmem>>, vector<8x10x64xbf16>
    %150 = vector.extract_strided_slice %149 {offsets = [0, 0, 0], sizes = [8, 8, 64], strides = [1, 1, 1]} : vector<8x10x64xbf16> to vector<8x8x64xbf16>
    %151 = vector.extract_strided_slice %149 {offsets = [0, 1, 0], sizes = [8, 8, 64], strides = [1, 1, 1]} : vector<8x10x64xbf16> to vector<8x8x64xbf16>
    %152 = vector.extract_strided_slice %149 {offsets = [0, 2, 0], sizes = [8, 8, 64], strides = [1, 1, 1]} : vector<8x10x64xbf16> to vector<8x8x64xbf16>
    %153 = tpu.concatenate %150, %151, %152 in 2 : vector<8x8x64xbf16>, vector<8x8x64xbf16>, vector<8x8x64xbf16> -> vector<8x8x192xbf16>
    %154 = vector.shape_cast %153 : vector<8x8x192xbf16> to vector<64x192xbf16>
    %c2_133 = arith.constant 2 : index
    %c2_134 = arith.constant 2 : index
    %c0_135 = arith.constant 0 : index
    %c0_136 = arith.constant 0 : index
    %155 = vector.load %arg3[%c2_133, %c2_134, %c0_135, %c0_136] : memref<3x3x192x64xbf16, #tpu.memory_space<vmem>>, vector<1x1x192x64xbf16>
    %156 = vector.shape_cast %155 : vector<1x1x192x64xbf16> to vector<192x64xbf16>
    %cst_137 = arith.constant dense<0.000000e+00> : vector<64x64xf32>
    %157 = tpu.matmul %154, %156, %cst_137 {dimension_numbers = #tpu.dot_dimension_numbers<[1], [0], [0], [1], [0, 0, 1, 1], [], []>} : vector<64x192xbf16>, vector<192x64xbf16>, vector<64x64xf32> -> vector<64x64xf32>
    %158 = arith.addf %148, %157 : vector<64x64xf32>
    %c3 = arith.constant 3 : index
    %c0_138 = arith.constant 0 : index
    %159 = vector.load %arg4[%c3, %c0_138] : memref<4x64xf32, #tpu.memory_space<vmem>>, vector<1x64xf32>
    %c3_139 = arith.constant 3 : index
    %c0_140 = arith.constant 0 : index
    %160 = vector.load %arg5[%c3_139, %c0_140] : memref<4x64xf32, #tpu.memory_space<vmem>>, vector<1x64xf32>
    %161 = vector.broadcast %159 : vector<1x64xf32> to vector<64x64xf32>
    %162 = arith.mulf %158, %161 : vector<64x64xf32>
    %163 = vector.broadcast %160 : vector<1x64xf32> to vector<64x64xf32>
    %164 = arith.addf %162, %163 : vector<64x64xf32>
    %cst_141 = arith.constant 0.000000e+00 : f32
    %165 = vector.broadcast %cst_141 : f32 to vector<64x64xf32>
    %166 = arith.cmpf oge, %164, %165 : vector<64x64xf32>
    %cst_142 = arith.constant 1.000000e-01 : f32
    %167 = vector.broadcast %cst_142 : f32 to vector<64x64xf32>
    %168 = arith.mulf %167, %164 : vector<64x64xf32>
    %169 = arith.select %166, %164, %168 : vector<64x64xi1>, vector<64x64xf32>
    %170 = arith.truncf %169 : vector<64x64xf32> to vector<64x64xbf16>
    %c0_143 = arith.constant 0 : index
    %c0_144 = arith.constant 0 : index
    %c0_145 = arith.constant 0 : index
    %171 = vector.load %arg6[%c0_143, %c0_144, %c0_145] : memref<1x64x64xbf16, #tpu.memory_space<vmem>>, vector<1x64x64xbf16>
    %172 = vector.shape_cast %171 : vector<1x64x64xbf16> to vector<64x64xbf16>
    %173 = vector.shape_cast %170 : vector<64x64xbf16> to vector<1x64x64xbf16>
    tpu.vector_store %arg6[%c0_143, %c0_144, %c0_145], %173 {strides = array<i32>} : memref<1x64x64xbf16, #tpu.memory_space<vmem>>, vector<1x64x64xbf16>,
    return
  }
  func.func @transform_0(%arg0: i32) -> (i32, i32, i32) {
    %c0_i32 = arith.constant 0 : i32
    %c0_i32_0 = arith.constant 0 : i32
    %c0_i32_1 = arith.constant 0 : i32
    return %arg0, %c0_i32, %c0_i32_0 : i32, i32, i32
  }
  func.func @transform_1(%arg0: i32) -> (i32, i32) {
    %c0_i32 = arith.constant 0 : i32
    %c0_i32_0 = arith.constant 0 : i32
    %c0_i32_1 = arith.constant 0 : i32
    return %c0_i32, %c0_i32_0 : i32, i32
  }
  func.func @transform_2(%arg0: i32) -> (i32, i32, i32, i32) {
    %c0_i32 = arith.constant 0 : i32
    %c0_i32_0 = arith.constant 0 : i32
    %c0_i32_1 = arith.constant 0 : i32
    %c0_i32_2 = arith.constant 0 : i32
    %c0_i32_3 = arith.constant 0 : i32
    return %c0_i32, %c0_i32_0, %c0_i32_1, %c0_i32_2 : i32, i32, i32, i32
  }
  func.func @transform_3(%arg0: i32) -> (i32, i32) {
    %c0_i32 = arith.constant 0 : i32
    %c0_i32_0 = arith.constant 0 : i32
    %c0_i32_1 = arith.constant 0 : i32
    return %c0_i32, %c0_i32_0 : i32, i32
  }
  func.func @transform_4(%arg0: i32) -> (i32, i32) {
    %c0_i32 = arith.constant 0 : i32
    %c0_i32_0 = arith.constant 0 : i32
    %c0_i32_1 = arith.constant 0 : i32
    return %c0_i32, %c0_i32_0 : i32, i32
  }
  func.func @transform_5(%arg0: i32) -> (i32, i32, i32) {
    %c0_i32 = arith.constant 0 : i32
    %c0_i32_0 = arith.constant 0 : i32
    %c0_i32_1 = arith.constant 0 : i32
    return %arg0, %c0_i32, %c0_i32_0 : i32, i32, i32
  }
}

module attributes {stable_mosaic.version = 11 : i64} {
  func.func @_fc_fused_kernel(%arg0: i32, %arg1: i32, %arg2: i32, %arg3: memref<2x2048xbf16, #tpu.memory_space<vmem>>, %arg4: memref<2048x128xbf16, #tpu.memory_space<vmem>>, %arg5: memref<1x128xf32, #tpu.memory_space<vmem>>, %arg6: memref<128x128xbf16, #tpu.memory_space<vmem>>, %arg7: memref<1x2x128xf32, #tpu.memory_space<vmem>>, %arg8: memref<2x128xf32, #tpu.memory_space<vmem>>) attributes {dimension_semantics = [#tpu.dimension_semantics<parallel>, #tpu.dimension_semantics<parallel>, #tpu.dimension_semantics<arbitrary>], iteration_bounds = array<i64: 2, 1, 2>, scalar_prefetch = 0 : i64, scratch_operands = 1 : i64, tpu.core_type = #tpu.core_type<tc>, window_params = [{transform_indices = @transform_0, window_bounds = array<i64: 2, 2048>}, {transform_indices = @transform_1, window_bounds = array<i64: 2048, 128>}, {transform_indices = @transform_2, window_bounds = array<i64: 1, 128>}, {transform_indices = @transform_3, window_bounds = array<i64: 128, 128>}, {transform_indices = @transform_4, window_bounds = array<i64: 1, 2, 128>}]} {
    %c0_i32 = arith.constant 0 : i32
    %0 = arith.cmpi eq, %arg2, %c0_i32 : i32
    %1 = arith.extui %0 : i1 to i32
    %c0_i32_0 = arith.constant 0 : i32
    %2 = arith.cmpi ne, %1, %c0_i32_0 : i32
    scf.if %2 {
      %cst_9 = arith.constant 0.000000e+00 : f32
      %12 = vector.broadcast %cst_9 : f32 to vector<2x128xf32>
      %c0_10 = arith.constant 0 : index
      %c0_11 = arith.constant 0 : index
      %13 = vector.load %arg8[%c0_10, %c0_11] : memref<2x128xf32, #tpu.memory_space<vmem>>, vector<2x128xf32>
      tpu.vector_store %arg8[%c0_10, %c0_11], %12 {strides = array<i32>} : memref<2x128xf32, #tpu.memory_space<vmem>>, vector<2x128xf32>,
    } else {
    }
    %c0 = arith.constant 0 : index
    %c0_1 = arith.constant 0 : index
    %3 = vector.load %arg8[%c0, %c0_1] : memref<2x128xf32, #tpu.memory_space<vmem>>, vector<2x128xf32>
    %c0_2 = arith.constant 0 : index
    %c0_3 = arith.constant 0 : index
    %4 = vector.load %arg3[%c0_2, %c0_3] : memref<2x2048xbf16, #tpu.memory_space<vmem>>, vector<2x2048xbf16>
    %c0_4 = arith.constant 0 : index
    %c0_5 = arith.constant 0 : index
    %5 = vector.load %arg4[%c0_4, %c0_5] : memref<2048x128xbf16, #tpu.memory_space<vmem>>, vector<2048x128xbf16>
    %cst = arith.constant dense<0.000000e+00> : vector<2x128xf32>
    %6 = tpu.matmul %4, %5, %cst {dimension_numbers = #tpu.dot_dimension_numbers<[1], [0], [0], [1], [0, 0, 1, 1], [], []>} : vector<2x2048xbf16>, vector<2048x128xbf16>, vector<2x128xf32> -> vector<2x128xf32>
    %7 = arith.addf %3, %6 : vector<2x128xf32>
    %c0_6 = arith.constant 0 : index
    %c0_7 = arith.constant 0 : index
    %8 = vector.load %arg8[%c0_6, %c0_7] : memref<2x128xf32, #tpu.memory_space<vmem>>, vector<2x128xf32>
    tpu.vector_store %arg8[%c0_6, %c0_7], %7 {strides = array<i32>} : memref<2x128xf32, #tpu.memory_space<vmem>>, vector<2x128xf32>,
    %c1_i32 = arith.constant 1 : i32
    %9 = arith.cmpi eq, %arg2, %c1_i32 : i32
    %10 = arith.extui %9 : i1 to i32
    %c0_i32_8 = arith.constant 0 : i32
    %11 = arith.cmpi ne, %10, %c0_i32_8 : i32
    scf.if %11 {
      %c0_9 = arith.constant 0 : index
      %c0_10 = arith.constant 0 : index
      %12 = vector.load %arg8[%c0_9, %c0_10] : memref<2x128xf32, #tpu.memory_space<vmem>>, vector<2x128xf32>
      %c0_11 = arith.constant 0 : index
      %c0_12 = arith.constant 0 : index
      %13 = vector.load %arg5[%c0_11, %c0_12] : memref<1x128xf32, #tpu.memory_space<vmem>>, vector<1x128xf32>
      %14 = vector.broadcast %13 : vector<1x128xf32> to vector<2x128xf32>
      %15 = arith.addf %12, %14 : vector<2x128xf32>
      %cst_13 = arith.constant 0.000000e+00 : f32
      %16 = vector.broadcast %cst_13 : f32 to vector<2x128xf32>
      %17 = arith.cmpf oge, %15, %16 : vector<2x128xf32>
      %cst_14 = arith.constant 1.000000e-01 : f32
      %18 = vector.broadcast %cst_14 : f32 to vector<2x128xf32>
      %19 = arith.mulf %18, %15 : vector<2x128xf32>
      %20 = arith.select %17, %15, %19 : vector<2x128xi1>, vector<2x128xf32>
      %21 = arith.truncf %20 : vector<2x128xf32> to vector<2x128xbf16>
      %c0_15 = arith.constant 0 : index
      %c0_16 = arith.constant 0 : index
      %22 = vector.load %arg6[%c0_15, %c0_16] : memref<128x128xbf16, #tpu.memory_space<vmem>>, vector<128x128xbf16>
      %cst_17 = arith.constant dense<0.000000e+00> : vector<2x128xf32>
      %23 = tpu.matmul %21, %22, %cst_17 {dimension_numbers = #tpu.dot_dimension_numbers<[1], [0], [0], [1], [0, 0, 1, 1], [], []>} : vector<2x128xbf16>, vector<128x128xbf16>, vector<2x128xf32> -> vector<2x128xf32>
      %c0_18 = arith.constant 0 : index
      %c0_19 = arith.constant 0 : index
      %c0_20 = arith.constant 0 : index
      %24 = vector.load %arg7[%c0_18, %c0_19, %c0_20] : memref<1x2x128xf32, #tpu.memory_space<vmem>>, vector<1x2x128xf32>
      %25 = vector.shape_cast %24 : vector<1x2x128xf32> to vector<2x128xf32>
      %26 = vector.shape_cast %23 : vector<2x128xf32> to vector<1x2x128xf32>
      tpu.vector_store %arg7[%c0_18, %c0_19, %c0_20], %26 {strides = array<i32>} : memref<1x2x128xf32, #tpu.memory_space<vmem>>, vector<1x2x128xf32>,
    } else {
    }
    return
  }
  func.func @transform_0(%arg0: i32, %arg1: i32, %arg2: i32) -> (i32, i32) {
    %c0_i32 = arith.constant 0 : i32
    return %arg1, %arg2 : i32, i32
  }
  func.func @transform_1(%arg0: i32, %arg1: i32, %arg2: i32) -> (i32, i32) {
    %c0_i32 = arith.constant 0 : i32
    return %arg2, %arg0 : i32, i32
  }
  func.func @transform_2(%arg0: i32, %arg1: i32, %arg2: i32) -> (i32, i32) {
    %c0_i32 = arith.constant 0 : i32
    %c0_i32_0 = arith.constant 0 : i32
    return %c0_i32, %arg0 : i32, i32
  }
  func.func @transform_3(%arg0: i32, %arg1: i32, %arg2: i32) -> (i32, i32) {
    %c0_i32 = arith.constant 0 : i32
    %c0_i32_0 = arith.constant 0 : i32
    return %arg0, %c0_i32 : i32, i32
  }
  func.func @transform_4(%arg0: i32, %arg1: i32, %arg2: i32) -> (i32, i32, i32) {
    %c0_i32 = arith.constant 0 : i32
    %c0_i32_0 = arith.constant 0 : i32
    return %arg0, %arg1, %c0_i32 : i32, i32, i32
  }
}

</mosaic_0001>

<llo_original>
// kernel: gesture_predictor_forward.3
$region0: #{gesture_predictor_forward.3}
  #allocation0 [shape = 'u32[]', space=smem, size = 0x4, offset = 0x4, fixed_abs, tag = 'smem constant byte address 0x4 - core index']
  #allocation1 [shape = 'u32[144,128]{1,0:T(1,128)}', space=vmem, size = 0x12000, scoped, tag = 'internal scratch']
  #allocation2 [shape = 'f32[2,128]{1,0:T(2,128)}', space=vmem, size = 0x400, scoped, tag = 'scratch operand']
  %s0 = inlined_call_operand.vmem [shape: bf16[2,4096], index: 0, kind: input, shape index: {}]
  %s1 = inlined_call_operand.hbm [shape: bf16[4096,256], index: 1, kind: input, shape index: {}]
  %s2 = inlined_call_operand.hbm [shape: f32[1,256], index: 2, kind: input, shape index: {}]
  %s3 = inlined_call_operand.vmem [shape: bf16[256,128], index: 3, kind: input, shape index: {}]
  %s4 = inlined_call_operand.vmem [shape: f32[2,2,128], index: 4, kind: output, shape index: {}]
  %s5 = sld [smem:[#allocation0]]
  $region65: #{gesture_predictor_forward.3} parent=0
    _
  %s7 = ssub.s32 1, %s5
  %s8 = scalar_select 0, %s7, %s5
  $region1: #{gesture_predictor_forward.3} parent=0
    #allocation3 [shape = 'u8[1048576]{0}', space=vmem, size = 0x100000, scoped, tag = 'input window, operand 1']
    #allocation4 [shape = 's32[2]{0}', space=sflag, size = 0x8, scoped, tag = 'scoped memory for gesture_predictor_forward.3']
    #allocation5 [shape = 'u8[1024]{0}', space=vmem, size = 0x400, scoped, tag = 'input window, operand 2']
    #allocation6 [shape = 's32[2]{0}', space=sflag, size = 0x8, scoped, tag = 'scoped memory for gesture_predictor_forward.3']
    %9 = vsyncpa [#allocation4], 0
    %s10 = scalar_lea.sflag [#allocation4], 1
    %11 = vsyncpa %s10, 0
    %12 = vsyncpa [#allocation6], 0
    %s13 = scalar_lea.sflag [#allocation6], 1
    %14 = vsyncpa %s13, 0
    loop: start=0, step=1, limit=6
    $region2: #{gesture_predictor_forward.3} parent=1 // loop_pre_header
      _
    $region3: #{gesture_predictor_forward.3} parent=1 // loop_header
      %s16 = sphi 0, %s20
      %p17 = scmp.ge.s32.totalorder %s16, 6
      %s23 = sphi 0, %s42
      %s24 = sphi 0, %s38
      %s25 = sphi 0, %s34
      %s26 = sphi 0, %s23
      %s27 = sphi 0, %s24
      %s28 = sphi 0, %s25
      %s29 = sphi 0, %s26
      %s30 = sphi 0, %s27
      %s31 = sphi 0, %s28
      %s47 = sphi 0, %s49
      %s50 = sphi 0, %s47
      %s51 = sphi 0, %s50
      %s67 = sphi 0, %s51
      %s75 = sphi 0, %s77
      %s78 = sphi 0, %s75
      %s79 = sphi 0, %s78
      %s95 = sphi 0, %s79
      %s101 = sphi 0, %s103
      %s104 = sphi 0, %s101
      %s105 = sphi 0, %s104
      %s121 = sphi 0, %s105
      %s127 = sphi 0, %s129
      %s130 = sphi 0, %s127
      %s131 = sphi 0, %s130
      %s147 = sphi 0, %s131
      %s155 = sphi 0, %s157
      %s158 = sphi 0, %s155
      %s159 = sphi 0, %s158
      %s175 = sphi 0, %s159
    $region4: #{gesture_predictor_forward.3} parent=1 // loop_header_branch
      %19 = sbr.rel (%p17) target = $region8
    $region5: #{gesture_predictor_forward.3} parent=1 // loop_body
      %s21 = ssub.s32 %s16, 1
      %s22 = ssub.s32 %s16, 2
      %s32 = sadd.s32 1, %s25
      %p33 = scmp.ge.s32.totalorder %s32, 2
      %s34 = scalar_select %p33, 0, %s32
      %s35 = sadd.s32 1, %s24
      %s36 = scalar_select %p33, %s35, %s24
      %p37 = scmp.ge.s32.totalorder %s36, 1
      %s38 = scalar_select %p37, 0, %s36
      %s39 = sadd.s32 1, %s23
      %s40 = scalar_select %p37, %s39, %s23
      %p41 = scmp.ge.s32.totalorder %s40, 2
      %s42 = scalar_select %p41, 0, %s40
      %s43 = ssub.s32 %s24, %s38
      %s44 = ssub.s32 %s25, %s34
      %s45 = sor.u32 %s43, %s44
      %p46 = scmp.eq.s32.totalorder %s45, 0
      %s48 = sadd.s32 %s47, 1
      %s49 = scalar_select %p46, %s47, %s48
      %p52 = pneg %p46
      %p53 = scmp.eq.s32.totalorder %s16, 3
      %p54 = por %p52, %p53
      %p55 = scmp.ne.s32.totalorder %s47, %s50
      %p56 = scmp.eq.s32.totalorder %s16, 0
      %p57 = por %p55, %p56
      %p58 = scmp.ne.s32.totalorder %s47, %s50
      %p59 = scmp.eq.s32.totalorder %s21, 3
      %p60 = por %p58, %p59
      %p61 = scmp.ne.s32.totalorder %s50, %s51
      %p62 = scmp.eq.s32.totalorder %s21, 0
      %p63 = por %p61, %p62
      %p64 = scmp.ne.s32.totalorder %s50, %s51
      %p65 = scmp.eq.s32.totalorder %s22, 3
      %p66 = por %p64, %p65
      %p68 = scmp.ne.s32.totalorder %s51, %s67
      %p69 = scmp.eq.s32.totalorder %s22, 0
      %p70 = por %p68, %p69
      %s71 = ssub.s32 %s25, %s34
      %s72 = ssub.s32 %s23, %s42
      %s73 = sor.u32 %s71, %s72
      %p74 = scmp.eq.s32.totalorder %s73, 0
      %s76 = sadd.s32 %s75, 1
      %s77 = scalar_select %p74, %s75, %s76
      %p80 = pneg %p74
      %p81 = scmp.eq.s32.totalorder %s16, 3
      %p82 = por %p80, %p81
      %p83 = scmp.ne.s32.totalorder %s75, %s78
      %p84 = scmp.eq.s32.totalorder %s16, 0
      %p85 = por %p83, %p84
      %p86 = scmp.ne.s32.totalorder %s75, %s78
      %p87 = scmp.eq.s32.totalorder %s21, 3
      %p88 = por %p86, %p87
      %p89 = scmp.ne.s32.totalorder %s78, %s79
      %p90 = scmp.eq.s32.totalorder %s21, 0
      %p91 = por %p89, %p90
      %p92 = scmp.ne.s32.totalorder %s78, %s79
      %p93 = scmp.eq.s32.totalorder %s22, 3
      %p94 = por %p92, %p93
      %p96 = scmp.ne.s32.totalorder %s79, %s95
      %p97 = scmp.eq.s32.totalorder %s22, 0
      %p98 = por %p96, %p97
      %s99 = ssub.s32 %s23, %s42
      %p100 = scmp.eq.s32.totalorder %s99, 0
      %s102 = sadd.s32 %s101, 1
      %s103 = scalar_select %p100, %s101, %s102
      %p106 = pneg %p100
      %p107 = scmp.eq.s32.totalorder %s16, 3
      %p108 = por %p106, %p107
      %p109 = scmp.ne.s32.totalorder %s101, %s104
      %p110 = scmp.eq.s32.totalorder %s16, 0
      %p111 = por %p109, %p110
      %p112 = scmp.ne.s32.totalorder %s101, %s104
      %p113 = scmp.eq.s32.totalorder %s21, 3
      %p114 = por %p112, %p113
      %p115 = scmp.ne.s32.totalorder %s104, %s105
      %p116 = scmp.eq.s32.totalorder %s21, 0
      %p117 = por %p115, %p116
      %p118 = scmp.ne.s32.totalorder %s104, %s105
      %p119 = scmp.eq.s32.totalorder %s22, 3
      %p120 = por %p118, %p119
      %p122 = scmp.ne.s32.totalorder %s105, %s121
      %p123 = scmp.eq.s32.totalorder %s22, 0
      %p124 = por %p122, %p123
      %s125 = ssub.s32 %s23, %s42
      %p126 = scmp.eq.s32.totalorder %s125, 0
      %s128 = sadd.s32 %s127, 1
      %s129 = scalar_select %p126, %s127, %s128
      %p132 = pneg %p126
      %p133 = scmp.eq.s32.totalorder %s16, 3
      %p134 = por %p132, %p133
      %p135 = scmp.ne.s32.totalorder %s127, %s130
      %p136 = scmp.eq.s32.totalorder %s16, 0
      %p137 = por %p135, %p136
      %p138 = scmp.ne.s32.totalorder %s127, %s130
      %p139 = scmp.eq.s32.totalorder %s21, 3
      %p140 = por %p138, %p139
      %p141 = scmp.ne.s32.totalorder %s130, %s131
      %p142 = scmp.eq.s32.totalorder %s21, 0
      %p143 = por %p141, %p142
      %p144 = scmp.ne.s32.totalorder %s130, %s131
      %p145 = scmp.eq.s32.totalorder %s22, 3
      %p146 = por %p144, %p145
      %p148 = scmp.ne.s32.totalorder %s131, %s147
      %p149 = scmp.eq.s32.totalorder %s22, 0
      %p150 = por %p148, %p149
      %s151 = ssub.s32 %s23, %s42
      %s152 = ssub.s32 %s24, %s38
      %s153 = sor.u32 %s151, %s152
      %p154 = scmp.eq.s32.totalorder %s153, 0
      %s156 = sadd.s32 %s155, 1
      %s157 = scalar_select %p154, %s155, %s156
      %p160 = pneg %p154
      %p161 = scmp.eq.s32.totalorder %s16, 3
      %p162 = por %p160, %p161
      %p163 = scmp.ne.s32.totalorder %s155, %s158
      %p164 = scmp.eq.s32.totalorder %s16, 0
      %p165 = por %p163, %p164
      %p166 = scmp.ne.s32.totalorder %s155, %s158
      %p167 = scmp.eq.s32.totalorder %s21, 3
      %p168 = por %p166, %p167
      %p169 = scmp.ne.s32.totalorder %s158, %s159
      %p170 = scmp.eq.s32.totalorder %s21, 0
      %p171 = por %p169, %p170
      %p172 = scmp.ne.s32.totalorder %s158, %s159
      %p173 = scmp.eq.s32.totalorder %s22, 3
      %p174 = por %p172, %p173
      %p176 = scmp.ne.s32.totalorder %s159, %s175
      %p177 = scmp.eq.s32.totalorder %s22, 0
      %p178 = por %p176, %p177
      %p179 = scmp.le.s32.totalorder 1, %s16
      %p180 = scmp.lt.s32.totalorder %s16, 5
      %p181 = pnand %p179, %p180
      %p182 = pneg %p181
      // Predicated region
      $region9: #{gesture_predictor_forward.3} parent=5 // pred_check
        _
      $region10: #{gesture_predictor_forward.3} parent=5 // pred_check_branch
        %184 = sbr.rel (%p181) target = $region12
      $region11: #{gesture_predictor_forward.3} parent=5 // pred_region
        %s185 = ssub.s32 %s16, 1
      $region12: #{gesture_predictor_forward.3} parent=5 // pred_fallthru
        _
      %p186 = scmp.lt.s32.totalorder %s16, 4
      // Predicated region
      $region13: #{gesture_predictor_forward.3} parent=5 // pred_check
        %p187 = pneg %p186
      $region14: #{gesture_predictor_forward.3} parent=5 // pred_check_branch
        %189 = sbr.rel (%p187) target = $region16
      $region15: #{gesture_predictor_forward.3} parent=5 // pred_region
        // Predicated region
        $region17: #{gesture_predictor_forward.3} parent=15 // pred_check
          %p190 = pneg %p57
        $region18: #{gesture_predictor_forward.3} parent=15 // pred_check_branch
          %192 = sbr.rel (%p190) target = $region20
        $region19: #{gesture_predictor_forward.3} parent=15 // pred_region
          %s193 = smul.u32 16, %s25
          %p194 = scmp.lt.s32.totalorder %s24, 0
          %s195 = scalar_select %p194, %s24, 0
          %p196 = scmp.lt.s32.totalorder %s193, 31
          %s197 = scalar_select %p196, %s193, 31
          %s198 = smul.addr %s195, 32
          %s199 = sadd.s32 %s197, %s198
          %s200 = scalar_lea.vmem %s0, %s199
          %s201 = smul.u32 16, %s25
        $region20: #{gesture_predictor_forward.3} parent=15 // pred_fallthru
          _
        // Predicated region
        $region21: #{gesture_predictor_forward.3} parent=15 // pred_check
          %p202 = pneg %p85
        $region22: #{gesture_predictor_forward.3} parent=15 // pred_check_branch
          %204 = sbr.rel (%p202) target = $region24
        $region23: #{gesture_predictor_forward.3} parent=15 // pred_region
          %s205 = sand.u32 %s75, 1
          %s206 = scalar_lea.sflag [#allocation4], %s205
          %s207 = sand.u32 %s75, 1
          %s208 = smul.addr %s207, 1024
          %s209 = scalar_lea.vmem [#allocation3], %s208
          %s210 = smul.u32 256, %s25
          %s212 = ssub.s32 16384, 16384
          %213 = vsyncadd %s206, %s212
          %s214 = smul.addr %s210, 2
          %s215 = sadd.s32 %s23, %s214
          %s216 = smul.addr %s215, 64
          %s217 = scalar_lea.hbm %s1, %s216
          %s218 = sshll.u32 %s209, 4
          %s219 = int_to_ptr.vmem [resolvable:$true] %s218
          %224 = dma.hbm_to_vmem [thread:$0]  %s217, 16384, %s219, %s206, 128, 64, 4
        $region24: #{gesture_predictor_forward.3} parent=15 // pred_fallthru
          _
        // Predicated region
        $region25: #{gesture_predictor_forward.3} parent=15 // pred_check
          %p225 = pneg %p111
        $region26: #{gesture_predictor_forward.3} parent=15 // pred_check_branch
          %227 = sbr.rel (%p225) target = $region28
        $region27: #{gesture_predictor_forward.3} parent=15 // pred_region
          %s228 = sand.u32 %s101, 1
          %s229 = scalar_lea.sflag [#allocation6], %s228
          %s230 = sand.u32 %s101, 1
          %s231 = scalar_lea.vmem [#allocation5], %s230
          %s233 = ssub.s32 16, 16
          %234 = vsyncadd %s229, %s233
          %s235 = smul.addr %s23, 16
          %s236 = scalar_lea.hbm %s2, %s235
          %s238 = sshll.u32 %s231, 4
          %s239 = int_to_ptr.vmem [resolvable:$true] %s238
          %241 = dma.hbm_to_vmem [thread:$0]  %s236, 16, %s239, %s229
        $region28: #{gesture_predictor_forward.3} parent=15 // pred_fallthru
          _
        // Predicated region
        $region29: #{gesture_predictor_forward.3} parent=15 // pred_check
          %p242 = pneg %p137
        $region30: #{gesture_predictor_forward.3} parent=15 // pred_check_branch
          %244 = sbr.rel (%p242) target = $region32
        $region31: #{gesture_predictor_forward.3} parent=15 // pred_region
          %s245 = smul.u32 16, %s23
          %p246 = scmp.lt.s32.totalorder %s245, 31
          %s247 = scalar_select %p246, %s245, 31
          %s248 = smul.addr %s247, 4
          %s249 = scalar_lea.vmem %s3, %s248
          %s250 = smul.u32 16, %s23
        $region32: #{gesture_predictor_forward.3} parent=15 // pred_fallthru
          _
      $region16: #{gesture_predictor_forward.3} parent=5 // pred_fallthru
        _
      %p251 = scmp.le.s32.totalorder 1, %s16
      %p252 = scmp.lt.s32.totalorder %s16, 5
      %p253 = pnand %p251, %p252
      %p254 = pneg %p253
      // Predicated region
      $region33: #{gesture_predictor_forward.3} parent=5 // pred_check
        _
      $region34: #{gesture_predictor_forward.3} parent=5 // pred_check_branch
        %256 = sbr.rel (%p253) target = $region36
      $region35: #{gesture_predictor_forward.3} parent=5 // pred_region
        %s257 = ssub.s32 %s16, 1
        %s258 = sand.u32 %s78, 1
        %s259 = scalar_lea.sflag [#allocation4], %s258
        %s260 = sand.u32 %s78, 1
        %s261 = smul.addr %s260, 1024
        %s262 = scalar_lea.vmem [#allocation3], %s261
        // Predicated region
        $region37: #{gesture_predictor_forward.3} parent=35 // pred_check
          %p263 = pneg %p91
        $region38: #{gesture_predictor_forward.3} parent=35 // pred_check_branch
          %265 = sbr.rel (%p263) target = $region40
        $region39: #{gesture_predictor_forward.3} parent=35 // pred_region
          %266 = dma.done %s259, 16384
        $region40: #{gesture_predictor_forward.3} parent=35 // pred_fallthru
          _
        %s267 = sand.u32 %s104, 1
        %s268 = scalar_lea.sflag [#allocation6], %s267
        %s269 = sand.u32 %s104, 1
        %s270 = scalar_lea.vmem [#allocation5], %s269
        // Predicated region
        $region41: #{gesture_predictor_forward.3} parent=35 // pred_check
          %p271 = pneg %p117
        $region42: #{gesture_predictor_forward.3} parent=35 // pred_check_branch
          %273 = sbr.rel (%p271) target = $region44
        $region43: #{gesture_predictor_forward.3} parent=35 // pred_region
          %274 = dma.done %s268, 16
        $region44: #{gesture_predictor_forward.3} parent=35 // pred_fallthru
          _
        %s275 = smul.u32 16, %s28
        %p276 = scmp.lt.s32.totalorder %s27, 0
        %s277 = scalar_select %p276, %s27, 0
        %p278 = scmp.lt.s32.totalorder %s275, 31
        %s279 = scalar_select %p278, %s275, 31
        %s280 = smul.addr %s277, 32
        %s281 = sadd.s32 %s279, %s280
        %s282 = scalar_lea.vmem %s0, %s281
        %p283 = pneg %p63
        %p284 = pneg %p60
        %s285 = sand.u32 %s78, 1
        %s286 = scalar_lea.sflag [#allocation4], %s285
        %s287 = sand.u32 %s78, 1
        %s288 = smul.addr %s287, 1024
        %s289 = scalar_lea.vmem [#allocation3], %s288
        %p290 = pneg %p91
        %p291 = pneg %p88
        %s292 = sand.u32 %s104, 1
        %s293 = scalar_lea.sflag [#allocation6], %s292
        %s294 = sand.u32 %s104, 1
        %s295 = scalar_lea.vmem [#allocation5], %s294
        %p296 = pneg %p117
        %p297 = pneg %p114
        %s298 = smul.u32 16, %s26
        %p299 = scmp.lt.s32.totalorder %s298, 31
        %s300 = scalar_select %p299, %s298, 31
        %s301 = smul.addr %s300, 4
        %s302 = scalar_lea.vmem %s3, %s301
        %p303 = pneg %p143
        %p304 = pneg %p140
        %p305 = pneg %p171
        %p306 = pneg %p168
        %p307 = scmp.lt.s32.totalorder %s26, 1
        %s308 = scalar_select %p307, %s26, 1
        %p309 = scmp.lt.s32.totalorder %s27, 0
        %s310 = scalar_select %p309, %s27, 0
        %s311 = sadd.s32 %s310, %s308
        %s312 = smul.addr %s311, 2
        %s313 = scalar_lea.vmem %s4, %s312
        %s314 = smul.u32 16, %s28
        %p315 = scmp.lt.s32.totalorder %s27, 0
        %s316 = scalar_select %p315, %s27, 0
        %p317 = scmp.lt.s32.totalorder %s314, 31
        %s318 = scalar_select %p317, %s314, 31
        %s319 = smul.addr %s316, 32
        %s320 = sadd.s32 %s318, %s319
        %s321 = scalar_lea.vmem %s0, %s320
        %s322 = smul.u32 16, %s28
        %s323 = smul.u32 256, %s28
        %s324 = smul.u32 16, %s26
        %p325 = scmp.lt.s32.totalorder %s324, 31
        %s326 = scalar_select %p325, %s324, 31
        %s327 = smul.addr %s326, 4
        %s328 = scalar_lea.vmem %s3, %s327
        %s329 = smul.u32 16, %s26
        %p330 = scmp.lt.s32.totalorder %s26, 1
        %s331 = scalar_select %p330, %s26, 1
        %p332 = scmp.lt.s32.totalorder %s27, 0
        %s333 = scalar_select %p332, %s27, 0
        %s334 = sadd.s32 %s333, %s331
        %s335 = smul.addr %s334, 2
        %s336 = scalar_lea.vmem %s4, %s335
        %p338 = scmp.eq.s32.totalorder %s28, 0
        // Predicated region
        $region45: #{gesture_predictor_forward.3} parent=35 // pred_check
          %p339 = pneg %p338
        $region46: #{gesture_predictor_forward.3} parent=35 // pred_check_branch
          %341 = sbr.rel (%p339) target = $region48
        $region47: #{gesture_predictor_forward.3} parent=35 // pred_region
          %342 = vst [vmem:[#allocation2] sm:$0x3] 0.0
        $region48: #{gesture_predictor_forward.3} parent=35 // pred_fallthru
          _
        %v343 = vld [vmem:[#allocation2] sm:$0x3]
        %v344 = vld [vmem:[%s321] sm:$0xff]
        %v345 = vld [vmem:[%s321 + $0x8] sm:$0xff]
        %v346 = vld [vmem:[%s262] sm:$0xf]
        %v347 = vld [vmem:[%s262 + $0x4] sm:$0xf]
        %v348 = vld [vmem:[%s262 + $0x8] sm:$0xf]
        %v349 = vld [vmem:[%s262 + $0xc] sm:$0xf]
        %v350 = vld [vmem:[%s262 + $0x10] sm:$0xf]
        %v351 = vld [vmem:[%s262 + $0x14] sm:$0xf]
        %v352 = vld [vmem:[%s262 + $0x18] sm:$0xf]
        %v353 = vld [vmem:[%s262 + $0x1c] sm:$0xf]
        %v354 = vld [vmem:[%s262 + $0x20] sm:$0xf]
        %v355 = vld [vmem:[%s262 + $0x24] sm:$0xf]
        %v356 = vld [vmem:[%s262 + $0x28] sm:$0xf]
        %v357 = vld [vmem:[%s262 + $0x2c] sm:$0xf]
        %v358 = vld [vmem:[%s262 + $0x30] sm:$0xf]
        %v359 = vld [vmem:[%s262 + $0x34] sm:$0xf]
        %v360 = vld [vmem:[%s262 + $0x38] sm:$0xf]
        %v361 = vld [vmem:[%s262 + $0x3c] sm:$0xf]
        %v362 = vld [vmem:[%s262 + $0x40] sm:$0xf]
        %v363 = vld [vmem:[%s262 + $0x44] sm:$0xf]
        %v364 = vld [vmem:[%s262 + $0x48] sm:$0xf]
        %v365 = vld [vmem:[%s262 + $0x4c] sm:$0xf]
        %v366 = vld [vmem:[%s262 + $0x50] sm:$0xf]
        %v367 = vld [vmem:[%s262 + $0x54] sm:$0xf]
        %v368 = vld [vmem:[%s262 + $0x58] sm:$0xf]
        %v369 = vld [vmem:[%s262 + $0x5c] sm:$0xf]
        %v370 = vld [vmem:[%s262 + $0x60] sm:$0xf]
        %v371 = vld [vmem:[%s262 + $0x64] sm:$0xf]
        %v372 = vld [vmem:[%s262 + $0x68] sm:$0xf]
        %v373 = vld [vmem:[%s262 + $0x6c] sm:$0xf]
        %v374 = vld [vmem:[%s262 + $0x70] sm:$0xf]
        %v375 = vld [vmem:[%s262 + $0x74] sm:$0xf]
        %v376 = vld [vmem:[%s262 + $0x78] sm:$0xf]
        %v377 = vld [vmem:[%s262 + $0x7c] sm:$0xf]
        %v378 = vld [vmem:[%s262 + $0x80] sm:$0xf]
        %v379 = vld [vmem:[%s262 + $0x84] sm:$0xf]
        %v380 = vld [vmem:[%s262 + $0x88] sm:$0xf]
        %v381 = vld [vmem:[%s262 + $0x8c] sm:$0xf]
        %v382 = vld [vmem:[%s262 + $0x90] sm:$0xf]
        %v383 = vld [vmem:[%s262 + $0x94] sm:$0xf]
        %v384 = vld [vmem:[%s262 + $0x98] sm:$0xf]
        %v385 = vld [vmem:[%s262 + $0x9c] sm:$0xf]
        %v386 = vld [vmem:[%s262 + $0xa0] sm:$0xf]
        %v387 = vld [vmem:[%s262 + $0xa4] sm:$0xf]
        %v388 = vld [vmem:[%s262 + $0xa8] sm:$0xf]
        %v389 = vld [vmem:[%s262 + $0xac] sm:$0xf]
        %v390 = vld [vmem:[%s262 + $0xb0] sm:$0xf]
        %v391 = vld [vmem:[%s262 + $0xb4] sm:$0xf]
        %v392 = vld [vmem:[%s262 + $0xb8] sm:$0xf]
        %v393 = vld [vmem:[%s262 + $0xbc] sm:$0xf]
        %v394 = vld [vmem:[%s262 + $0xc0] sm:$0xf]
        %v395 = vld [vmem:[%s262 + $0xc4] sm:$0xf]
        %v396 = vld [vmem:[%s262 + $0xc8] sm:$0xf]
        %v397 = vld [vmem:[%s262 + $0xcc] sm:$0xf]
        %v398 = vld [vmem:[%s262 + $0xd0] sm:$0xf]
        %v399 = vld [vmem:[%s262 + $0xd4] sm:$0xf]
        %v400 = vld [vmem:[%s262 + $0xd8] sm:$0xf]
        %v401 = vld [vmem:[%s262 + $0xdc] sm:$0xf]
        %v402 = vld [vmem:[%s262 + $0xe0] sm:$0xf]
        %v403 = vld [vmem:[%s262 + $0xe4] sm:$0xf]
        %v404 = vld [vmem:[%s262 + $0xe8] sm:$0xf]
        %v405 = vld [vmem:[%s262 + $0xec] sm:$0xf]
        %v406 = vld [vmem:[%s262 + $0xf0] sm:$0xf]
        %v407 = vld [vmem:[%s262 + $0xf4] sm:$0xf]
        %v408 = vld [vmem:[%s262 + $0xf8] sm:$0xf]
        %v409 = vld [vmem:[%s262 + $0xfc] sm:$0xf]
        %v410 = vld [vmem:[%s262 + $0x100] sm:$0xf]
        %v411 = vld [vmem:[%s262 + $0x104] sm:$0xf]
        %v412 = vld [vmem:[%s262 + $0x108] sm:$0xf]
        %v413 = vld [vmem:[%s262 + $0x10c] sm:$0xf]
        %v414 = vld [vmem:[%s262 + $0x110] sm:$0xf]
        %v415 = vld [vmem:[%s262 + $0x114] sm:$0xf]
        %v416 = vld [vmem:[%s262 + $0x118] sm:$0xf]
        %v417 = vld [vmem:[%s262 + $0x11c] sm:$0xf]
        %v418 = vld [vmem:[%s262 + $0x120] sm:$0xf]
        %v419 = vld [vmem:[%s262 + $0x124] sm:$0xf]
        %v420 = vld [vmem:[%s262 + $0x128] sm:$0xf]
        %v421 = vld [vmem:[%s262 + $0x12c] sm:$0xf]
        %v422 = vld [vmem:[%s262 + $0x130] sm:$0xf]
        %v423 = vld [vmem:[%s262 + $0x134] sm:$0xf]
        %v424 = vld [vmem:[%s262 + $0x138] sm:$0xf]
        %v425 = vld [vmem:[%s262 + $0x13c] sm:$0xf]
        %v426 = vld [vmem:[%s262 + $0x140] sm:$0xf]
        %v427 = vld [vmem:[%s262 + $0x144] sm:$0xf]
        %v428 = vld [vmem:[%s262 + $0x148] sm:$0xf]
        %v429 = vld [vmem:[%s262 + $0x14c] sm:$0xf]
        %v430 = vld [vmem:[%s262 + $0x150] sm:$0xf]
        %v431 = vld [vmem:[%s262 + $0x154] sm:$0xf]
        %v432 = vld [vmem:[%s262 + $0x158] sm:$0xf]
        %v433 = vld [vmem:[%s262 + $0x15c] sm:$0xf]
        %v434 = vld [vmem:[%s262 + $0x160] sm:$0xf]
        %v435 = vld [vmem:[%s262 + $0x164] sm:$0xf]
        %v436 = vld [vmem:[%s262 + $0x168] sm:$0xf]
        %v437 = vld [vmem:[%s262 + $0x16c] sm:$0xf]
        %v438 = vld [vmem:[%s262 + $0x170] sm:$0xf]
        %v439 = vld [vmem:[%s262 + $0x174] sm:$0xf]
        %v440 = vld [vmem:[%s262 + $0x178] sm:$0xf]
        %v441 = vld [vmem:[%s262 + $0x17c] sm:$0xf]
        %v442 = vld [vmem:[%s262 + $0x180] sm:$0xf]
        %v443 = vld [vmem:[%s262 + $0x184] sm:$0xf]
        %v444 = vld [vmem:[%s262 + $0x188] sm:$0xf]
        %v445 = vld [vmem:[%s262 + $0x18c] sm:$0xf]
        %v446 = vld [vmem:[%s262 + $0x190] sm:$0xf]
        %v447 = vld [vmem:[%s262 + $0x194] sm:$0xf]
        %v448 = vld [vmem:[%s262 + $0x198] sm:$0xf]
        %v449 = vld [vmem:[%s262 + $0x19c] sm:$0xf]
        %v450 = vld [vmem:[%s262 + $0x1a0] sm:$0xf]
        %v451 = vld [vmem:[%s262 + $0x1a4] sm:$0xf]
        %v452 = vld [vmem:[%s262 + $0x1a8] sm:$0xf]
        %v453 = vld [vmem:[%s262 + $0x1ac] sm:$0xf]
        %v454 = vld [vmem:[%s262 + $0x1b0] sm:$0xf]
        %v455 = vld [vmem:[%s262 + $0x1b4] sm:$0xf]
        %v456 = vld [vmem:[%s262 + $0x1b8] sm:$0xf]
        %v457 = vld [vmem:[%s262 + $0x1bc] sm:$0xf]
        %v458 = vld [vmem:[%s262 + $0x1c0] sm:$0xf]
        %v459 = vld [vmem:[%s262 + $0x1c4] sm:$0xf]
        %v460 = vld [vmem:[%s262 + $0x1c8] sm:$0xf]
        %v461 = vld [vmem:[%s262 + $0x1cc] sm:$0xf]
        %v462 = vld [vmem:[%s262 + $0x1d0] sm:$0xf]
        %v463 = vld [vmem:[%s262 + $0x1d4] sm:$0xf]
        %v464 = vld [vmem:[%s262 + $0x1d8] sm:$0xf]
        %v465 = vld [vmem:[%s262 + $0x1dc] sm:$0xf]
        %v466 = vld [vmem:[%s262 + $0x1e0] sm:$0xf]
        %v467 = vld [vmem:[%s262 + $0x1e4] sm:$0xf]
        %v468 = vld [vmem:[%s262 + $0x1e8] sm:$0xf]
        %v469 = vld [vmem:[%s262 + $0x1ec] sm:$0xf]
        %v470 = vld [vmem:[%s262 + $0x1f0] sm:$0xf]
        %v471 = vld [vmem:[%s262 + $0x1f4] sm:$0xf]
        %v472 = vld [vmem:[%s262 + $0x1f8] sm:$0xf]
        %v473 = vld [vmem:[%s262 + $0x1fc] sm:$0xf]
        %v474 = vld [vmem:[%s262 + $0x200] sm:$0xf]
        %v475 = vld [vmem:[%s262 + $0x204] sm:$0xf]
        %v476 = vld [vmem:[%s262 + $0x208] sm:$0xf]
        %v477 = vld [vmem:[%s262 + $0x20c] sm:$0xf]
        %v478 = vld [vmem:[%s262 + $0x210] sm:$0xf]
        %v479 = vld [vmem:[%s262 + $0x214] sm:$0xf]
        %v480 = vld [vmem:[%s262 + $0x218] sm:$0xf]
        %v481 = vld [vmem:[%s262 + $0x21c] sm:$0xf]
        %v482 = vld [vmem:[%s262 + $0x220] sm:$0xf]
        %v483 = vld [vmem:[%s262 + $0x224] sm:$0xf]
        %v484 = vld [vmem:[%s262 + $0x228] sm:$0xf]
        %v485 = vld [vmem:[%s262 + $0x22c] sm:$0xf]
        %v486 = vld [vmem:[%s262 + $0x230] sm:$0xf]
        %v487 = vld [vmem:[%s262 + $0x234] sm:$0xf]
        %v488 = vld [vmem:[%s262 + $0x238] sm:$0xf]
        %v489 = vld [vmem:[%s262 + $0x23c] sm:$0xf]
        %v490 = vld [vmem:[%s262 + $0x240] sm:$0xf]
        %v491 = vld [vmem:[%s262 + $0x244] sm:$0xf]
        %v492 = vld [vmem:[%s262 + $0x248] sm:$0xf]
        %v493 = vld [vmem:[%s262 + $0x24c] sm:$0xf]
        %v494 = vld [vmem:[%s262 + $0x250] sm:$0xf]
        %v495 = vld [vmem:[%s262 + $0x254] sm:$0xf]
        %v496 = vld [vmem:[%s262 + $0x258] sm:$0xf]
        %v497 = vld [vmem:[%s262 + $0x25c] sm:$0xf]
        %v498 = vld [vmem:[%s262 + $0x260] sm:$0xf]
        %v499 = vld [vmem:[%s262 + $0x264] sm:$0xf]
        %v500 = vld [vmem:[%s262 + $0x268] sm:$0xf]
        %v501 = vld [vmem:[%s262 + $0x26c] sm:$0xf]
        %v502 = vld [vmem:[%s262 + $0x270] sm:$0xf]
        %v503 = vld [vmem:[%s262 + $0x274] sm:$0xf]
        %v504 = vld [vmem:[%s262 + $0x278] sm:$0xf]
        %v505 = vld [vmem:[%s262 + $0x27c] sm:$0xf]
        %v506 = vld [vmem:[%s262 + $0x280] sm:$0xf]
        %v507 = vld [vmem:[%s262 + $0x284] sm:$0xf]
        %v508 = vld [vmem:[%s262 + $0x288] sm:$0xf]
        %v509 = vld [vmem:[%s262 + $0x28c] sm:$0xf]
        %v510 = vld [vmem:[%s262 + $0x290] sm:$0xf]
        %v511 = vld [vmem:[%s262 + $0x294] sm:$0xf]
        %v512 = vld [vmem:[%s262 + $0x298] sm:$0xf]
        %v513 = vld [vmem:[%s262 + $0x29c] sm:$0xf]
        %v514 = vld [vmem:[%s262 + $0x2a0] sm:$0xf]
        %v515 = vld [vmem:[%s262 + $0x2a4] sm:$0xf]
        %v516 = vld [vmem:[%s262 + $0x2a8] sm:$0xf]
        %v517 = vld [vmem:[%s262 + $0x2ac] sm:$0xf]
        %v518 = vld [vmem:[%s262 + $0x2b0] sm:$0xf]
        %v519 = vld [vmem:[%s262 + $0x2b4] sm:$0xf]
        %v520 = vld [vmem:[%s262 + $0x2b8] sm:$0xf]
        %v521 = vld [vmem:[%s262 + $0x2bc] sm:$0xf]
        %v522 = vld [vmem:[%s262 + $0x2c0] sm:$0xf]
        %v523 = vld [vmem:[%s262 + $0x2c4] sm:$0xf]
        %v524 = vld [vmem:[%s262 + $0x2c8] sm:$0xf]
        %v525 = vld [vmem:[%s262 + $0x2cc] sm:$0xf]
        %v526 = vld [vmem:[%s262 + $0x2d0] sm:$0xf]
        %v527 = vld [vmem:[%s262 + $0x2d4] sm:$0xf]
        %v528 = vld [vmem:[%s262 + $0x2d8] sm:$0xf]
        %v529 = vld [vmem:[%s262 + $0x2dc] sm:$0xf]
        %v530 = vld [vmem:[%s262 + $0x2e0] sm:$0xf]
        %v531 = vld [vmem:[%s262 + $0x2e4] sm:$0xf]
        %v532 = vld [vmem:[%s262 + $0x2e8] sm:$0xf]
        %v533 = vld [vmem:[%s262 + $0x2ec] sm:$0xf]
        %v534 = vld [vmem:[%s262 + $0x2f0] sm:$0xf]
        %v535 = vld [vmem:[%s262 + $0x2f4] sm:$0xf]
        %v536 = vld [vmem:[%s262 + $0x2f8] sm:$0xf]
        %v537 = vld [vmem:[%s262 + $0x2fc] sm:$0xf]
        %v538 = vld [vmem:[%s262 + $0x300] sm:$0xf]
        %v539 = vld [vmem:[%s262 + $0x304] sm:$0xf]
        %v540 = vld [vmem:[%s262 + $0x308] sm:$0xf]
        %v541 = vld [vmem:[%s262 + $0x30c] sm:$0xf]
        %v542 = vld [vmem:[%s262 + $0x310] sm:$0xf]
        %v543 = vld [vmem:[%s262 + $0x314] sm:$0xf]
        %v544 = vld [vmem:[%s262 + $0x318] sm:$0xf]
        %v545 = vld [vmem:[%s262 + $0x31c] sm:$0xf]
        %v546 = vld [vmem:[%s262 + $0x320] sm:$0xf]
        %v547 = vld [vmem:[%s262 + $0x324] sm:$0xf]
        %v548 = vld [vmem:[%s262 + $0x328] sm:$0xf]
        %v549 = vld [vmem:[%s262 + $0x32c] sm:$0xf]
        %v550 = vld [vmem:[%s262 + $0x330] sm:$0xf]
        %v551 = vld [vmem:[%s262 + $0x334] sm:$0xf]
        %v552 = vld [vmem:[%s262 + $0x338] sm:$0xf]
        %v553 = vld [vmem:[%s262 + $0x33c] sm:$0xf]
        %v554 = vld [vmem:[%s262 + $0x340] sm:$0xf]
        %v555 = vld [vmem:[%s262 + $0x344] sm:$0xf]
        %v556 = vld [vmem:[%s262 + $0x348] sm:$0xf]
        %v557 = vld [vmem:[%s262 + $0x34c] sm:$0xf]
        %v558 = vld [vmem:[%s262 + $0x350] sm:$0xf]
        %v559 = vld [vmem:[%s262 + $0x354] sm:$0xf]
        %v560 = vld [vmem:[%s262 + $0x358] sm:$0xf]
        %v561 = vld [vmem:[%s262 + $0x35c] sm:$0xf]
        %v562 = vld [vmem:[%s262 + $0x360] sm:$0xf]
        %v563 = vld [vmem:[%s262 + $0x364] sm:$0xf]
        %v564 = vld [vmem:[%s262 + $0x368] sm:$0xf]
        %v565 = vld [vmem:[%s262 + $0x36c] sm:$0xf]
        %v566 = vld [vmem:[%s262 + $0x370] sm:$0xf]
        %v567 = vld [vmem:[%s262 + $0x374] sm:$0xf]
        %v568 = vld [vmem:[%s262 + $0x378] sm:$0xf]
        %v569 = vld [vmem:[%s262 + $0x37c] sm:$0xf]
        %v570 = vld [vmem:[%s262 + $0x380] sm:$0xf]
        %v571 = vld [vmem:[%s262 + $0x384] sm:$0xf]
        %v572 = vld [vmem:[%s262 + $0x388] sm:$0xf]
        %v573 = vld [vmem:[%s262 + $0x38c] sm:$0xf]
        %v574 = vld [vmem:[%s262 + $0x390] sm:$0xf]
        %v575 = vld [vmem:[%s262 + $0x394] sm:$0xf]
        %v576 = vld [vmem:[%s262 + $0x398] sm:$0xf]
        %v577 = vld [vmem:[%s262 + $0x39c] sm:$0xf]
        %v578 = vld [vmem:[%s262 + $0x3a0] sm:$0xf]
        %v579 = vld [vmem:[%s262 + $0x3a4] sm:$0xf]
        %v580 = vld [vmem:[%s262 + $0x3a8] sm:$0xf]
        %v581 = vld [vmem:[%s262 + $0x3ac] sm:$0xf]
        %v582 = vld [vmem:[%s262 + $0x3b0] sm:$0xf]
        %v583 = vld [vmem:[%s262 + $0x3b4] sm:$0xf]
        %v584 = vld [vmem:[%s262 + $0x3b8] sm:$0xf]
        %v585 = vld [vmem:[%s262 + $0x3bc] sm:$0xf]
        %v586 = vld [vmem:[%s262 + $0x3c0] sm:$0xf]
        %v587 = vld [vmem:[%s262 + $0x3c4] sm:$0xf]
        %v588 = vld [vmem:[%s262 + $0x3c8] sm:$0xf]
        %v589 = vld [vmem:[%s262 + $0x3cc] sm:$0xf]
        %v590 = vld [vmem:[%s262 + $0x3d0] sm:$0xf]
        %v591 = vld [vmem:[%s262 + $0x3d4] sm:$0xf]
        %v592 = vld [vmem:[%s262 + $0x3d8] sm:$0xf]
        %v593 = vld [vmem:[%s262 + $0x3dc] sm:$0xf]
        %v594 = vld [vmem:[%s262 + $0x3e0] sm:$0xf]
        %v595 = vld [vmem:[%s262 + $0x3e4] sm:$0xf]
        %v596 = vld [vmem:[%s262 + $0x3e8] sm:$0xf]
        %v597 = vld [vmem:[%s262 + $0x3ec] sm:$0xf]
        %v598 = vld [vmem:[%s262 + $0x3f0] sm:$0xf]
        %v599 = vld [vmem:[%s262 + $0x3f4] sm:$0xf]
        %v600 = vld [vmem:[%s262 + $0x3f8] sm:$0xf]
        %v601 = vld [vmem:[%s262 + $0x3fc] sm:$0xf]
        %v604 = vcombine.high %v344, %v344
        %v606 = vunpack.c.l.s4 1966171168
        %v607 = vunpack.c.0.s8 %v606
        %v608 = vlaneseq
        %v609 = vshrl.u32 %v608, 7
        %v610 = vsub.s32 %v607, %v609
        %v611 = vrot.slane %v344, %v610
        %v613 = vunpack.c.l.s4 1966171168
        %v614 = vunpack.c.0.s8 %v613
        %v615 = vlaneseq
        %v616 = vshrl.u32 %v615, 7
        %v617 = vsub.s32 %v614, %v616
        %v618 = vrot.slane %v604, %v617
        %v619 = vcombine.high %v611, %v611
        %v620 = vcombine.high %v618, %v618
        %v622 = vunpack.c.l.s4 1966171168
        %v623 = vunpack.c.0.s8 %v622
        %v624 = vlaneseq
        %v625 = vshrl.u32 %v624, 7
        %v626 = vsub.s32 %v623, %v625
        %v627 = vrot.slane %v611, %v626
        %v629 = vunpack.c.l.s4 1966171168
        %v630 = vunpack.c.0.s8 %v629
        %v631 = vlaneseq
        %v632 = vshrl.u32 %v631, 7
        %v633 = vsub.s32 %v630, %v632
        %v634 = vrot.slane %v618, %v633
        %v636 = vunpack.c.l.s4 1966171168
        %v637 = vunpack.c.0.s8 %v636
        %v638 = vlaneseq
        %v639 = vshrl.u32 %v638, 7
        %v640 = vsub.s32 %v637, %v639
        %v641 = vrot.slane %v619, %v640
        %v643 = vunpack.c.l.s4 1966171168
        %v644 = vunpack.c.0.s8 %v643
        %v645 = vlaneseq
        %v646 = vshrl.u32 %v645, 7
        %v647 = vsub.s32 %v644, %v646
        %v648 = vrot.slane %v620, %v647
        %v649 = vcombine.high %v627, %v627
        %v650 = vcombine.high %v634, %v634
        %v651 = vcombine.high %v641, %v641
        %v652 = vcombine.high %v648, %v648
        %v653 = vcombine.high %v345, %v345
        %v655 = vunpack.c.l.s4 1966171168
        %v656 = vunpack.c.0.s8 %v655
        %v657 = vlaneseq
        %v658 = vshrl.u32 %v657, 7
        %v659 = vsub.s32 %v656, %v658
        %v660 = vrot.slane %v345, %v659
        %v662 = vunpack.c.l.s4 1966171168
        %v663 = vunpack.c.0.s8 %v662
        %v664 = vlaneseq
        %v665 = vshrl.u32 %v664, 7
        %v666 = vsub.s32 %v663, %v665
        %v667 = vrot.slane %v653, %v666
        %v668 = vcombine.high %v660, %v660
        %v669 = vcombine.high %v667, %v667
        %v671 = vunpack.c.l.s4 1966171168
        %v672 = vunpack.c.0.s8 %v671
        %v673 = vlaneseq
        %v674 = vshrl.u32 %v673, 7
        %v675 = vsub.s32 %v672, %v674
        %v676 = vrot.slane %v660, %v675
        %v678 = vunpack.c.l.s4 1966171168
        %v679 = vunpack.c.0.s8 %v678
        %v680 = vlaneseq
        %v681 = vshrl.u32 %v680, 7
        %v682 = vsub.s32 %v679, %v681
        %v683 = vrot.slane %v667, %v682
        %v685 = vunpack.c.l.s4 1966171168
        %v686 = vunpack.c.0.s8 %v685
        %v687 = vlaneseq
        %v688 = vshrl.u32 %v687, 7
        %v689 = vsub.s32 %v686, %v688
        %v690 = vrot.slane %v668, %v689
        %v692 = vunpack.c.l.s4 1966171168
        %v693 = vunpack.c.0.s8 %v692
        %v694 = vlaneseq
        %v695 = vshrl.u32 %v694, 7
        %v696 = vsub.s32 %v693, %v695
        %v697 = vrot.slane %v669, %v696
        %v698 = vcombine.high %v676, %v676
        %v699 = vcombine.high %v683, %v683
        %v700 = vcombine.high %v690, %v690
        %v701 = vcombine.high %v697, %v697
        %v974 = vunpack.c.l.b16 %v346
        %v975 = vunpack.c.l.b16 %v347
        %v976 = vunpack.c.l.b16 %v348
        %v977 = vunpack.c.l.b16 %v349
        %v978 = vunpack.c.l.b16 %v350
        %v979 = vunpack.c.l.b16 %v351
        %v980 = vunpack.c.l.b16 %v352
        %v981 = vunpack.c.l.b16 %v353
        %v982 = vunpack.c.l.b16 %v354
        %v983 = vunpack.c.l.b16 %v355
        %v984 = vunpack.c.l.b16 %v356
        %v985 = vunpack.c.l.b16 %v357
        %v986 = vunpack.c.l.b16 %v358
        %v987 = vunpack.c.l.b16 %v359
        %v988 = vunpack.c.l.b16 %v360
        %v989 = vunpack.c.l.b16 %v361
        %v990 = vunpack.c.l.b16 %v362
        %v991 = vunpack.c.l.b16 %v363
        %v992 = vunpack.c.l.b16 %v364
        %v993 = vunpack.c.l.b16 %v365
        %v994 = vunpack.c.l.b16 %v366
        %v995 = vunpack.c.l.b16 %v367
        %v996 = vunpack.c.l.b16 %v368
        %v997 = vunpack.c.l.b16 %v369
        %v998 = vunpack.c.l.b16 %v370
        %v999 = vunpack.c.l.b16 %v371
        %v1000 = vunpack.c.l.b16 %v372
        %v1001 = vunpack.c.l.b16 %v373
        %v1002 = vunpack.c.l.b16 %v374
        %v1003 = vunpack.c.l.b16 %v375
        %v1004 = vunpack.c.l.b16 %v376
        %v1005 = vunpack.c.l.b16 %v377
        %v1006 = vunpack.c.l.b16 %v378
        %v1007 = vunpack.c.l.b16 %v379
        %v1008 = vunpack.c.l.b16 %v380
        %v1009 = vunpack.c.l.b16 %v381
        %v1010 = vunpack.c.l.b16 %v382
        %v1011 = vunpack.c.l.b16 %v383
        %v1012 = vunpack.c.l.b16 %v384
        %v1013 = vunpack.c.l.b16 %v385
        %v1014 = vunpack.c.l.b16 %v386
        %v1015 = vunpack.c.l.b16 %v387
        %v1016 = vunpack.c.l.b16 %v388
        %v1017 = vunpack.c.l.b16 %v389
        %v1018 = vunpack.c.l.b16 %v390
        %v1019 = vunpack.c.l.b16 %v391
        %v1020 = vunpack.c.l.b16 %v392
        %v1021 = vunpack.c.l.b16 %v393
        %v1022 = vunpack.c.l.b16 %v394
        %v1023 = vunpack.c.l.b16 %v395
        %v1024 = vunpack.c.l.b16 %v396
        %v1025 = vunpack.c.l.b16 %v397
        %v1026 = vunpack.c.l.b16 %v398
        %v1027 = vunpack.c.l.b16 %v399
        %v1028 = vunpack.c.l.b16 %v400
        %v1029 = vunpack.c.l.b16 %v401
        %v1030 = vunpack.c.l.b16 %v402
        %v1031 = vunpack.c.l.b16 %v403
        %v1032 = vunpack.c.l.b16 %v404
        %v1033 = vunpack.c.l.b16 %v405
        %v1034 = vunpack.c.l.b16 %v406
        %v1035 = vunpack.c.l.b16 %v407
        %v1036 = vunpack.c.l.b16 %v408
        %v1037 = vunpack.c.l.b16 %v409
        %v1038 = vunpack.c.l.b16 %v410
        %v1039 = vunpack.c.l.b16 %v411
        %v1040 = vunpack.c.l.b16 %v412
        %v1041 = vunpack.c.l.b16 %v413
        %v1042 = vunpack.c.l.b16 %v414
        %v1043 = vunpack.c.l.b16 %v415
        %v1044 = vunpack.c.l.b16 %v416
        %v1045 = vunpack.c.l.b16 %v417
        %v1046 = vunpack.c.l.b16 %v418
        %v1047 = vunpack.c.l.b16 %v419
        %v1048 = vunpack.c.l.b16 %v420
        %v1049 = vunpack.c.l.b16 %v421
        %v1050 = vunpack.c.l.b16 %v422
        %v1051 = vunpack.c.l.b16 %v423
        %v1052 = vunpack.c.l.b16 %v424
        %v1053 = vunpack.c.l.b16 %v425
        %v1054 = vunpack.c.l.b16 %v426
        %v1055 = vunpack.c.l.b16 %v427
        %v1056 = vunpack.c.l.b16 %v428
        %v1057 = vunpack.c.l.b16 %v429
        %v1058 = vunpack.c.l.b16 %v430
        %v1059 = vunpack.c.l.b16 %v431
        %v1060 = vunpack.c.l.b16 %v432
        %v1061 = vunpack.c.l.b16 %v433
        %v1062 = vunpack.c.l.b16 %v434
        %v1063 = vunpack.c.l.b16 %v435
        %v1064 = vunpack.c.l.b16 %v436
        %v1065 = vunpack.c.l.b16 %v437
        %v1066 = vunpack.c.l.b16 %v438
        %v1067 = vunpack.c.l.b16 %v439
        %v1068 = vunpack.c.l.b16 %v440
        %v1069 = vunpack.c.l.b16 %v441
        %v1070 = vunpack.c.l.b16 %v442
        %v1071 = vunpack.c.l.b16 %v443
        %v1072 = vunpack.c.l.b16 %v444
        %v1073 = vunpack.c.l.b16 %v445
        %v1074 = vunpack.c.l.b16 %v446
        %v1075 = vunpack.c.l.b16 %v447
        %v1076 = vunpack.c.l.b16 %v448
        %v1077 = vunpack.c.l.b16 %v449
        %v1078 = vunpack.c.l.b16 %v450
        %v1079 = vunpack.c.l.b16 %v451
        %v1080 = vunpack.c.l.b16 %v452
        %v1081 = vunpack.c.l.b16 %v453
        %v1082 = vunpack.c.l.b16 %v454
        %v1083 = vunpack.c.l.b16 %v455
        %v1084 = vunpack.c.l.b16 %v456
        %v1085 = vunpack.c.l.b16 %v457
        %v1086 = vunpack.c.l.b16 %v458
        %v1087 = vunpack.c.l.b16 %v459
        %v1088 = vunpack.c.l.b16 %v460
        %v1089 = vunpack.c.l.b16 %v461
        %v1090 = vunpack.c.l.b16 %v462
        %v1091 = vunpack.c.l.b16 %v463
        %v1092 = vunpack.c.l.b16 %v464
        %v1093 = vunpack.c.l.b16 %v465
        %v1094 = vunpack.c.l.b16 %v466
        %v1095 = vunpack.c.l.b16 %v467
        %v1096 = vunpack.c.l.b16 %v468
        %v1097 = vunpack.c.l.b16 %v469
        %v1098 = vunpack.c.l.b16 %v470
        %v1099 = vunpack.c.l.b16 %v471
        %v1100 = vunpack.c.l.b16 %v472
        %v1101 = vunpack.c.l.b16 %v473
        %v1102 = vunpack.c.l.b16 %v474
        %v1103 = vunpack.c.l.b16 %v475
        %v1104 = vunpack.c.l.b16 %v476
        %v1105 = vunpack.c.l.b16 %v477
        %v1106 = vunpack.c.l.b16 %v478
        %v1107 = vunpack.c.l.b16 %v479
        %v1108 = vunpack.c.l.b16 %v480
        %v1109 = vunpack.c.l.b16 %v481
        %v1110 = vunpack.c.l.b16 %v482
        %v1111 = vunpack.c.l.b16 %v483
        %v1112 = vunpack.c.l.b16 %v484
        %v1113 = vunpack.c.l.b16 %v485
        %v1114 = vunpack.c.l.b16 %v486
        %v1115 = vunpack.c.l.b16 %v487
        %v1116 = vunpack.c.l.b16 %v488
        %v1117 = vunpack.c.l.b16 %v489
        %v1118 = vunpack.c.l.b16 %v490
        %v1119 = vunpack.c.l.b16 %v491
        %v1120 = vunpack.c.l.b16 %v492
        %v1121 = vunpack.c.l.b16 %v493
        %v1122 = vunpack.c.l.b16 %v494
        %v1123 = vunpack.c.l.b16 %v495
        %v1124 = vunpack.c.l.b16 %v496
        %v1125 = vunpack.c.l.b16 %v497
        %v1126 = vunpack.c.l.b16 %v498
        %v1127 = vunpack.c.l.b16 %v499
        %v1128 = vunpack.c.l.b16 %v500
        %v1129 = vunpack.c.l.b16 %v501
        %v1130 = vunpack.c.l.b16 %v502
        %v1131 = vunpack.c.l.b16 %v503
        %v1132 = vunpack.c.l.b16 %v504
        %v1133 = vunpack.c.l.b16 %v505
        %v1134 = vunpack.c.l.b16 %v506
        %v1135 = vunpack.c.l.b16 %v507
        %v1136 = vunpack.c.l.b16 %v508
        %v1137 = vunpack.c.l.b16 %v509
        %v1138 = vunpack.c.l.b16 %v510
        %v1139 = vunpack.c.l.b16 %v511
        %v1140 = vunpack.c.l.b16 %v512
        %v1141 = vunpack.c.l.b16 %v513
        %v1142 = vunpack.c.l.b16 %v514
        %v1143 = vunpack.c.l.b16 %v515
        %v1144 = vunpack.c.l.b16 %v516
        %v1145 = vunpack.c.l.b16 %v517
        %v1146 = vunpack.c.l.b16 %v518
        %v1147 = vunpack.c.l.b16 %v519
        %v1148 = vunpack.c.l.b16 %v520
        %v1149 = vunpack.c.l.b16 %v521
        %v1150 = vunpack.c.l.b16 %v522
        %v1151 = vunpack.c.l.b16 %v523
        %v1152 = vunpack.c.l.b16 %v524
        %v1153 = vunpack.c.l.b16 %v525
        %v1154 = vunpack.c.l.b16 %v526
        %v1155 = vunpack.c.l.b16 %v527
        %v1156 = vunpack.c.l.b16 %v528
        %v1157 = vunpack.c.l.b16 %v529
        %v1158 = vunpack.c.l.b16 %v530
        %v1159 = vunpack.c.l.b16 %v531
        %v1160 = vunpack.c.l.b16 %v532
        %v1161 = vunpack.c.l.b16 %v533
        %v1162 = vunpack.c.l.b16 %v534
        %v1163 = vunpack.c.l.b16 %v535
        %v1164 = vunpack.c.l.b16 %v536
        %v1165 = vunpack.c.l.b16 %v537
        %v1166 = vunpack.c.l.b16 %v538
        %v1167 = vunpack.c.l.b16 %v539
        %v1168 = vunpack.c.l.b16 %v540
        %v1169 = vunpack.c.l.b16 %v541
        %v1170 = vunpack.c.l.b16 %v542
        %v1171 = vunpack.c.l.b16 %v543
        %v1172 = vunpack.c.l.b16 %v544
        %v1173 = vunpack.c.l.b16 %v545
        %v1174 = vunpack.c.l.b16 %v546
        %v1175 = vunpack.c.l.b16 %v547
        %v1176 = vunpack.c.l.b16 %v548
        %v1177 = vunpack.c.l.b16 %v549
        %v1178 = vunpack.c.l.b16 %v550
        %v1179 = vunpack.c.l.b16 %v551
        %v1180 = vunpack.c.l.b16 %v552
        %v1181 = vunpack.c.l.b16 %v553
        %v1182 = vunpack.c.l.b16 %v554
        %v1183 = vunpack.c.l.b16 %v555
        %v1184 = vunpack.c.l.b16 %v556
        %v1185 = vunpack.c.l.b16 %v557
        %v1186 = vunpack.c.l.b16 %v558
        %v1187 = vunpack.c.l.b16 %v559
        %v1188 = vunpack.c.l.b16 %v560
        %v1189 = vunpack.c.l.b16 %v561
        %v1190 = vunpack.c.l.b16 %v562
        %v1191 = vunpack.c.l.b16 %v563
        %v1192 = vunpack.c.l.b16 %v564
        %v1193 = vunpack.c.l.b16 %v565
        %v1194 = vunpack.c.l.b16 %v566
        %v1195 = vunpack.c.l.b16 %v567
        %v1196 = vunpack.c.l.b16 %v568
        %v1197 = vunpack.c.l.b16 %v569
        %v1198 = vunpack.c.l.b16 %v570
        %v1199 = vunpack.c.l.b16 %v571
        %v1200 = vunpack.c.l.b16 %v572
        %v1201 = vunpack.c.l.b16 %v573
        %v1202 = vunpack.c.l.b16 %v574
        %v1203 = vunpack.c.l.b16 %v575
        %v1204 = vunpack.c.l.b16 %v576
        %v1205 = vunpack.c.l.b16 %v577
        %v1206 = vunpack.c.l.b16 %v578
        %v1207 = vunpack.c.l.b16 %v579
        %v1208 = vunpack.c.l.b16 %v580
        %v1209 = vunpack.c.l.b16 %v581
        %v1210 = vunpack.c.l.b16 %v582
        %v1211 = vunpack.c.l.b16 %v583
        %v1212 = vunpack.c.l.b16 %v584
        %v1213 = vunpack.c.l.b16 %v585
        %v1214 = vunpack.c.l.b16 %v586
        %v1215 = vunpack.c.l.b16 %v587
        %v1216 = vunpack.c.l.b16 %v588
        %v1217 = vunpack.c.l.b16 %v589
        %v1218 = vunpack.c.l.b16 %v590
        %v1219 = vunpack.c.l.b16 %v591
        %v1220 = vunpack.c.l.b16 %v592
        %v1221 = vunpack.c.l.b16 %v593
        %v1222 = vunpack.c.l.b16 %v594
        %v1223 = vunpack.c.l.b16 %v595
        %v1224 = vunpack.c.l.b16 %v596
        %v1225 = vunpack.c.l.b16 %v597
        %v1226 = vunpack.c.l.b16 %v598
        %v1227 = vunpack.c.l.b16 %v599
        %v1228 = vunpack.c.l.b16 %v600
        %v1229 = vunpack.c.l.b16 %v601
        %v1230 = vpack.c.b16 %v975, %v974
        %v1231 = vpack.c.b16 %v977, %v976
        %v1232 = vpack.c.b16 %v979, %v978
        %v1233 = vpack.c.b16 %v981, %v980
        %v1234 = vpack.c.b16 %v983, %v982
        %v1235 = vpack.c.b16 %v985, %v984
        %v1236 = vpack.c.b16 %v987, %v986
        %v1237 = vpack.c.b16 %v989, %v988
        %v1238 = vpack.c.b16 %v991, %v990
        %v1239 = vpack.c.b16 %v993, %v992
        %v1240 = vpack.c.b16 %v995, %v994
        %v1241 = vpack.c.b16 %v997, %v996
        %v1242 = vpack.c.b16 %v999, %v998
        %v1243 = vpack.c.b16 %v1001, %v1000
        %v1244 = vpack.c.b16 %v1003, %v1002
        %v1245 = vpack.c.b16 %v1005, %v1004
        %v1246 = vpack.c.b16 %v1007, %v1006
        %v1247 = vpack.c.b16 %v1009, %v1008
        %v1248 = vpack.c.b16 %v1011, %v1010
        %v1249 = vpack.c.b16 %v1013, %v1012
        %v1250 = vpack.c.b16 %v1015, %v1014
        %v1251 = vpack.c.b16 %v1017, %v1016
        %v1252 = vpack.c.b16 %v1019, %v1018
        %v1253 = vpack.c.b16 %v1021, %v1020
        %v1254 = vpack.c.b16 %v1023, %v1022
        %v1255 = vpack.c.b16 %v1025, %v1024
        %v1256 = vpack.c.b16 %v1027, %v1026
        %v1257 = vpack.c.b16 %v1029, %v1028
        %v1258 = vpack.c.b16 %v1031, %v1030
        %v1259 = vpack.c.b16 %v1033, %v1032
        %v1260 = vpack.c.b16 %v1035, %v1034
        %v1261 = vpack.c.b16 %v1037, %v1036
        %v1262 = vpack.c.b16 %v1039, %v1038
        %v1263 = vpack.c.b16 %v1041, %v1040
        %v1264 = vpack.c.b16 %v1043, %v1042
        %v1265 = vpack.c.b16 %v1045, %v1044
        %v1266 = vpack.c.b16 %v1047, %v1046
        %v1267 = vpack.c.b16 %v1049, %v1048
        %v1268 = vpack.c.b16 %v1051, %v1050
        %v1269 = vpack.c.b16 %v1053, %v1052
        %v1270 = vpack.c.b16 %v1055, %v1054
        %v1271 = vpack.c.b16 %v1057, %v1056
        %v1272 = vpack.c.b16 %v1059, %v1058
        %v1273 = vpack.c.b16 %v1061, %v1060
        %v1274 = vpack.c.b16 %v1063, %v1062
        %v1275 = vpack.c.b16 %v1065, %v1064
        %v1276 = vpack.c.b16 %v1067, %v1066
        %v1277 = vpack.c.b16 %v1069, %v1068
        %v1278 = vpack.c.b16 %v1071, %v1070
        %v1279 = vpack.c.b16 %v1073, %v1072
        %v1280 = vpack.c.b16 %v1075, %v1074
        %v1281 = vpack.c.b16 %v1077, %v1076
        %v1282 = vpack.c.b16 %v1079, %v1078
        %v1283 = vpack.c.b16 %v1081, %v1080
        %v1284 = vpack.c.b16 %v1083, %v1082
        %v1285 = vpack.c.b16 %v1085, %v1084
        %v1286 = vpack.c.b16 %v1087, %v1086
        %v1287 = vpack.c.b16 %v1089, %v1088
        %v1288 = vpack.c.b16 %v1091, %v1090
        %v1289 = vpack.c.b16 %v1093, %v1092
        %v1290 = vpack.c.b16 %v1095, %v1094
        %v1291 = vpack.c.b16 %v1097, %v1096
        %v1292 = vpack.c.b16 %v1099, %v1098
        %v1293 = vpack.c.b16 %v1101, %v1100
        %v1294 = vpack.c.b16 %v1103, %v1102
        %v1295 = vpack.c.b16 %v1105, %v1104
        %v1296 = vpack.c.b16 %v1107, %v1106
        %v1297 = vpack.c.b16 %v1109, %v1108
        %v1298 = vpack.c.b16 %v1111, %v1110
        %v1299 = vpack.c.b16 %v1113, %v1112
        %v1300 = vpack.c.b16 %v1115, %v1114
        %v1301 = vpack.c.b16 %v1117, %v1116
        %v1302 = vpack.c.b16 %v1119, %v1118
        %v1303 = vpack.c.b16 %v1121, %v1120
        %v1304 = vpack.c.b16 %v1123, %v1122
        %v1305 = vpack.c.b16 %v1125, %v1124
        %v1306 = vpack.c.b16 %v1127, %v1126
        %v1307 = vpack.c.b16 %v1129, %v1128
        %v1308 = vpack.c.b16 %v1131, %v1130
        %v1309 = vpack.c.b16 %v1133, %v1132
        %v1310 = vpack.c.b16 %v1135, %v1134
        %v1311 = vpack.c.b16 %v1137, %v1136
        %v1312 = vpack.c.b16 %v1139, %v1138
        %v1313 = vpack.c.b16 %v1141, %v1140
        %v1314 = vpack.c.b16 %v1143, %v1142
        %v1315 = vpack.c.b16 %v1145, %v1144
        %v1316 = vpack.c.b16 %v1147, %v1146
        %v1317 = vpack.c.b16 %v1149, %v1148
        %v1318 = vpack.c.b16 %v1151, %v1150
        %v1319 = vpack.c.b16 %v1153, %v1152
        %v1320 = vpack.c.b16 %v1155, %v1154
        %v1321 = vpack.c.b16 %v1157, %v1156
        %v1322 = vpack.c.b16 %v1159, %v1158
        %v1323 = vpack.c.b16 %v1161, %v1160
        %v1324 = vpack.c.b16 %v1163, %v1162
        %v1325 = vpack.c.b16 %v1165, %v1164
        %v1326 = vpack.c.b16 %v1167, %v1166
        %v1327 = vpack.c.b16 %v1169, %v1168
        %v1328 = vpack.c.b16 %v1171, %v1170
        %v1329 = vpack.c.b16 %v1173, %v1172
        %v1330 = vpack.c.b16 %v1175, %v1174
        %v1331 = vpack.c.b16 %v1177, %v1176
        %v1332 = vpack.c.b16 %v1179, %v1178
        %v1333 = vpack.c.b16 %v1181, %v1180
        %v1334 = vpack.c.b16 %v1183, %v1182
        %v1335 = vpack.c.b16 %v1185, %v1184
        %v1336 = vpack.c.b16 %v1187, %v1186
        %v1337 = vpack.c.b16 %v1189, %v1188
        %v1338 = vpack.c.b16 %v1191, %v1190
        %v1339 = vpack.c.b16 %v1193, %v1192
        %v1340 = vpack.c.b16 %v1195, %v1194
        %v1341 = vpack.c.b16 %v1197, %v1196
        %v1342 = vpack.c.b16 %v1199, %v1198
        %v1343 = vpack.c.b16 %v1201, %v1200
        %v1344 = vpack.c.b16 %v1203, %v1202
        %v1345 = vpack.c.b16 %v1205, %v1204
        %v1346 = vpack.c.b16 %v1207, %v1206
        %v1347 = vpack.c.b16 %v1209, %v1208
        %v1348 = vpack.c.b16 %v1211, %v1210
        %v1349 = vpack.c.b16 %v1213, %v1212
        %v1350 = vpack.c.b16 %v1215, %v1214
        %v1351 = vpack.c.b16 %v1217, %v1216
        %v1352 = vpack.c.b16 %v1219, %v1218
        %v1353 = vpack.c.b16 %v1221, %v1220
        %v1354 = vpack.c.b16 %v1223, %v1222
        %v1355 = vpack.c.b16 %v1225, %v1224
        %v1356 = vpack.c.b16 %v1227, %v1226
        %v1357 = vpack.c.b16 %v1229, %v1228
        %1486 = vmatprep.subr.bf16.mxu0 0
        %1487 = vmatpush1.bf16.msra.mxu0 %v1230
        %1488 = vmatprep.subr.bf16.mxu0 0
        %1489 = vmatpush1.bf16.msra.mxu0 %v1231
        %1490 = vmatprep.subr.bf16.mxu0 0
        %1491 = vmatpush1.bf16.msra.mxu0 %v1232
        %1492 = vmatprep.subr.bf16.mxu0 0
        %1493 = vmatpush1.bf16.msra.mxu0 %v1233
        %1494 = vmatprep.subr.bf16.mxu0 0
        %1495 = vmatpush1.bf16.msra.mxu0 %v1234
        %1496 = vmatprep.subr.bf16.mxu0 0
        %1497 = vmatpush1.bf16.msra.mxu0 %v1235
        %1498 = vmatprep.subr.bf16.mxu0 0
        %1499 = vmatpush1.bf16.msra.mxu0 %v1236
        %1500 = vmatprep.subr.bf16.mxu0 0
        %1501 = vmatpush1.bf16.msra.mxu0 %v1237
        %1502 = vmatprep.subr.bf16.mxu0 0
        %1503 = vmatpush1.bf16.msra.mxu0 %v1238
        %1504 = vmatprep.subr.bf16.mxu0 0
        %1505 = vmatpush1.bf16.msra.mxu0 %v1239
        %1506 = vmatprep.subr.bf16.mxu0 0
        %1507 = vmatpush1.bf16.msra.mxu0 %v1240
        %1508 = vmatprep.subr.bf16.mxu0 0
        %1509 = vmatpush1.bf16.msra.mxu0 %v1241
        %1510 = vmatprep.subr.bf16.mxu0 0
        %1511 = vmatpush1.bf16.msra.mxu0 %v1242
        %1512 = vmatprep.subr.bf16.mxu0 0
        %1513 = vmatpush1.bf16.msra.mxu0 %v1243
        %1514 = vmatprep.subr.bf16.mxu0 0
        %1515 = vmatpush1.bf16.msra.mxu0 %v1244
        %1516 = vmatprep.subr.bf16.mxu0 0
        %1517 = vmatpush1.bf16.msra.mxu0 %v1245
        %1518 = vmatprep.mubr.bf16.mxu0 %v641
        %1519 = vmatmul.mubr.bf16.gmra.mrb[0].mxu0 %v627
        %v1520 = vpop.f32.mrb[0].mxu0
        %v1521 = vadd.f32 0.0, %v1520
        %v1522 = vpop.f32.mrb[0].mxu0
        %v1523 = vpop.f32.mrb[0].mxu0
        %v1524 = vpop.f32.mrb[0].mxu0
        %1525 = vdwg.mxu0
        %1526 = vmatprep.subr.bf16.mxu0 0
        %1527 = vmatpush1.bf16.msra.mxu0 %v1246
        %1528 = vmatprep.subr.bf16.mxu0 0
        %1529 = vmatpush1.bf16.msra.mxu0 %v1247
        %1530 = vmatprep.subr.bf16.mxu0 0
        %1531 = vmatpush1.bf16.msra.mxu0 %v1248
        %1532 = vmatprep.subr.bf16.mxu0 0
        %1533 = vmatpush1.bf16.msra.mxu0 %v1249
        %1534 = vmatprep.subr.bf16.mxu0 0
        %1535 = vmatpush1.bf16.msra.mxu0 %v1250
        %1536 = vmatprep.subr.bf16.mxu0 0
        %1537 = vmatpush1.bf16.msra.mxu0 %v1251
        %1538 = vmatprep.subr.bf16.mxu0 0
        %1539 = vmatpush1.bf16.msra.mxu0 %v1252
        %1540 = vmatprep.subr.bf16.mxu0 0
        %1541 = vmatpush1.bf16.msra.mxu0 %v1253
        %1542 = vmatprep.subr.bf16.mxu0 0
        %1543 = vmatpush1.bf16.msra.mxu0 %v1254
        %1544 = vmatprep.subr.bf16.mxu0 0
        %1545 = vmatpush1.bf16.msra.mxu0 %v1255
        %1546 = vmatprep.subr.bf16.mxu0 0
        %1547 = vmatpush1.bf16.msra.mxu0 %v1256
        %1548 = vmatprep.subr.bf16.mxu0 0
        %1549 = vmatpush1.bf16.msra.mxu0 %v1257
        %1550 = vmatprep.subr.bf16.mxu0 0
        %1551 = vmatpush1.bf16.msra.mxu0 %v1258
        %1552 = vmatprep.subr.bf16.mxu0 0
        %1553 = vmatpush1.bf16.msra.mxu0 %v1259
        %1554 = vmatprep.subr.bf16.mxu0 0
        %1555 = vmatpush1.bf16.msra.mxu0 %v1260
        %1556 = vmatprep.subr.bf16.mxu0 0
        %1557 = vmatpush1.bf16.msra.mxu0 %v1261
        %1558 = vmatprep.mubr.bf16.mxu0 %v651
        %1559 = vmatmul.mubr.bf16.gmra.mrb[0].mxu0 %v649
        %v1560 = vpop.f32.mrb[0].mxu0
        %v1561 = vadd.f32 %v1521, %v1560
        %v1562 = vpop.f32.mrb[0].mxu0
        %v1563 = vpop.f32.mrb[0].mxu0
        %v1564 = vpop.f32.mrb[0].mxu0
        %1565 = vdwg.mxu0
        %1566 = vmatprep.subr.bf16.mxu0 0
        %1567 = vmatpush1.bf16.msra.mxu0 %v1262
        %1568 = vmatprep.subr.bf16.mxu0 0
        %1569 = vmatpush1.bf16.msra.mxu0 %v1263
        %1570 = vmatprep.subr.bf16.mxu0 0
        %1571 = vmatpush1.bf16.msra.mxu0 %v1264
        %1572 = vmatprep.subr.bf16.mxu0 0
        %1573 = vmatpush1.bf16.msra.mxu0 %v1265
        %1574 = vmatprep.subr.bf16.mxu0 0
        %1575 = vmatpush1.bf16.msra.mxu0 %v1266
        %1576 = vmatprep.subr.bf16.mxu0 0
        %1577 = vmatpush1.bf16.msra.mxu0 %v1267
        %1578 = vmatprep.subr.bf16.mxu0 0
        %1579 = vmatpush1.bf16.msra.mxu0 %v1268
        %1580 = vmatprep.subr.bf16.mxu0 0
        %1581 = vmatpush1.bf16.msra.mxu0 %v1269
        %1582 = vmatprep.subr.bf16.mxu0 0
        %1583 = vmatpush1.bf16.msra.mxu0 %v1270
        %1584 = vmatprep.subr.bf16.mxu0 0
        %1585 = vmatpush1.bf16.msra.mxu0 %v1271
        %1586 = vmatprep.subr.bf16.mxu0 0
        %1587 = vmatpush1.bf16.msra.mxu0 %v1272
        %1588 = vmatprep.subr.bf16.mxu0 0
        %1589 = vmatpush1.bf16.msra.mxu0 %v1273
        %1590 = vmatprep.subr.bf16.mxu0 0
        %1591 = vmatpush1.bf16.msra.mxu0 %v1274
        %1592 = vmatprep.subr.bf16.mxu0 0
        %1593 = vmatpush1.bf16.msra.mxu0 %v1275
        %1594 = vmatprep.subr.bf16.mxu0 0
        %1595 = vmatpush1.bf16.msra.mxu0 %v1276
        %1596 = vmatprep.subr.bf16.mxu0 0
        %1597 = vmatpush1.bf16.msra.mxu0 %v1277
        %1598 = vmatprep.mubr.bf16.mxu0 %v648
        %1599 = vmatmul.mubr.bf16.gmra.mrb[0].mxu0 %v634
        %v1600 = vpop.f32.mrb[0].mxu0
        %v1601 = vadd.f32 %v1561, %v1600
        %v1602 = vpop.f32.mrb[0].mxu0
        %v1603 = vpop.f32.mrb[0].mxu0
        %v1604 = vpop.f32.mrb[0].mxu0
        %1605 = vdwg.mxu0
        %1606 = vmatprep.subr.bf16.mxu0 0
        %1607 = vmatpush1.bf16.msra.mxu0 %v1278
        %1608 = vmatprep.subr.bf16.mxu0 0
        %1609 = vmatpush1.bf16.msra.mxu0 %v1279
        %1610 = vmatprep.subr.bf16.mxu0 0
        %1611 = vmatpush1.bf16.msra.mxu0 %v1280
        %1612 = vmatprep.subr.bf16.mxu0 0
        %1613 = vmatpush1.bf16.msra.mxu0 %v1281
        %1614 = vmatprep.subr.bf16.mxu0 0
        %1615 = vmatpush1.bf16.msra.mxu0 %v1282
        %1616 = vmatprep.subr.bf16.mxu0 0
        %1617 = vmatpush1.bf16.msra.mxu0 %v1283
        %1618 = vmatprep.subr.bf16.mxu0 0
        %1619 = vmatpush1.bf16.msra.mxu0 %v1284
        %1620 = vmatprep.subr.bf16.mxu0 0
        %1621 = vmatpush1.bf16.msra.mxu0 %v1285
        %1622 = vmatprep.subr.bf16.mxu0 0
        %1623 = vmatpush1.bf16.msra.mxu0 %v1286
        %1624 = vmatprep.subr.bf16.mxu0 0
        %1625 = vmatpush1.bf16.msra.mxu0 %v1287
        %1626 = vmatprep.subr.bf16.mxu0 0
        %1627 = vmatpush1.bf16.msra.mxu0 %v1288
        %1628 = vmatprep.subr.bf16.mxu0 0
        %1629 = vmatpush1.bf16.msra.mxu0 %v1289
        %1630 = vmatprep.subr.bf16.mxu0 0
        %1631 = vmatpush1.bf16.msra.mxu0 %v1290
        %1632 = vmatprep.subr.bf16.mxu0 0
        %1633 = vmatpush1.bf16.msra.mxu0 %v1291
        %1634 = vmatprep.subr.bf16.mxu0 0
        %1635 = vmatpush1.bf16.msra.mxu0 %v1292
        %1636 = vmatprep.subr.bf16.mxu0 0
        %1637 = vmatpush1.bf16.msra.mxu0 %v1293
        %1638 = vmatprep.mubr.bf16.mxu0 %v652
        %1639 = vmatmul.mubr.bf16.gmra.mrb[0].mxu0 %v650
        %v1640 = vpop.f32.mrb[0].mxu0
        %v1641 = vadd.f32 %v1601, %v1640
        %v1642 = vpop.f32.mrb[0].mxu0
        %v1643 = vpop.f32.mrb[0].mxu0
        %v1644 = vpop.f32.mrb[0].mxu0
        %1645 = vdwg.mxu0
        %1646 = vmatprep.subr.bf16.mxu0 0
        %1647 = vmatpush1.bf16.msra.mxu0 %v1294
        %1648 = vmatprep.subr.bf16.mxu0 0
        %1649 = vmatpush1.bf16.msra.mxu0 %v1295
        %1650 = vmatprep.subr.bf16.mxu0 0
        %1651 = vmatpush1.bf16.msra.mxu0 %v1296
        %1652 = vmatprep.subr.bf16.mxu0 0
        %1653 = vmatpush1.bf16.msra.mxu0 %v1297
        %1654 = vmatprep.subr.bf16.mxu0 0
        %1655 = vmatpush1.bf16.msra.mxu0 %v1298
        %1656 = vmatprep.subr.bf16.mxu0 0
        %1657 = vmatpush1.bf16.msra.mxu0 %v1299
        %1658 = vmatprep.subr.bf16.mxu0 0
        %1659 = vmatpush1.bf16.msra.mxu0 %v1300
        %1660 = vmatprep.subr.bf16.mxu0 0
        %1661 = vmatpush1.bf16.msra.mxu0 %v1301
        %1662 = vmatprep.subr.bf16.mxu0 0
        %1663 = vmatpush1.bf16.msra.mxu0 %v1302
        %1664 = vmatprep.subr.bf16.mxu0 0
        %1665 = vmatpush1.bf16.msra.mxu0 %v1303
        %1666 = vmatprep.subr.bf16.mxu0 0
        %1667 = vmatpush1.bf16.msra.mxu0 %v1304
        %1668 = vmatprep.subr.bf16.mxu0 0
        %1669 = vmatpush1.bf16.msra.mxu0 %v1305
        %1670 = vmatprep.subr.bf16.mxu0 0
        %1671 = vmatpush1.bf16.msra.mxu0 %v1306
        %1672 = vmatprep.subr.bf16.mxu0 0
        %1673 = vmatpush1.bf16.msra.mxu0 %v1307
        %1674 = vmatprep.subr.bf16.mxu0 0
        %1675 = vmatpush1.bf16.msra.mxu0 %v1308
        %1676 = vmatprep.subr.bf16.mxu0 0
        %1677 = vmatpush1.bf16.msra.mxu0 %v1309
        %1678 = vmatprep.mubr.bf16.mxu0 %v690
        %1679 = vmatmul.mubr.bf16.gmra.mrb[0].mxu0 %v676
        %v1680 = vpop.f32.mrb[0].mxu0
        %v1681 = vadd.f32 %v1641, %v1680
        %v1682 = vpop.f32.mrb[0].mxu0
        %v1683 = vpop.f32.mrb[0].mxu0
        %v1684 = vpop.f32.mrb[0].mxu0
        %1685 = vdwg.mxu0
        %1686 = vmatprep.subr.bf16.mxu0 0
        %1687 = vmatpush1.bf16.msra.mxu0 %v1310
        %1688 = vmatprep.subr.bf16.mxu0 0
        %1689 = vmatpush1.bf16.msra.mxu0 %v1311
        %1690 = vmatprep.subr.bf16.mxu0 0
        %1691 = vmatpush1.bf16.msra.mxu0 %v1312
        %1692 = vmatprep.subr.bf16.mxu0 0
        %1693 = vmatpush1.bf16.msra.mxu0 %v1313
        %1694 = vmatprep.subr.bf16.mxu0 0
        %1695 = vmatpush1.bf16.msra.mxu0 %v1314
        %1696 = vmatprep.subr.bf16.mxu0 0
        %1697 = vmatpush1.bf16.msra.mxu0 %v1315
        %1698 = vmatprep.subr.bf16.mxu0 0
        %1699 = vmatpush1.bf16.msra.mxu0 %v1316
        %1700 = vmatprep.subr.bf16.mxu0 0
        %1701 = vmatpush1.bf16.msra.mxu0 %v1317
        %1702 = vmatprep.subr.bf16.mxu0 0
        %1703 = vmatpush1.bf16.msra.mxu0 %v1318
        %1704 = vmatprep.subr.bf16.mxu0 0
        %1705 = vmatpush1.bf16.msra.mxu0 %v1319
        %1706 = vmatprep.subr.bf16.mxu0 0
        %1707 = vmatpush1.bf16.msra.mxu0 %v1320
        %1708 = vmatprep.subr.bf16.mxu0 0
        %1709 = vmatpush1.bf16.msra.mxu0 %v1321
        %1710 = vmatprep.subr.bf16.mxu0 0
        %1711 = vmatpush1.bf16.msra.mxu0 %v1322
        %1712 = vmatprep.subr.bf16.mxu0 0
        %1713 = vmatpush1.bf16.msra.mxu0 %v1323
        %1714 = vmatprep.subr.bf16.mxu0 0
        %1715 = vmatpush1.bf16.msra.mxu0 %v1324
        %1716 = vmatprep.subr.bf16.mxu0 0
        %1717 = vmatpush1.bf16.msra.mxu0 %v1325
        %1718 = vmatprep.mubr.bf16.mxu0 %v700
        %1719 = vmatmul.mubr.bf16.gmra.mrb[0].mxu0 %v698
        %v1720 = vpop.f32.mrb[0].mxu0
        %v1721 = vadd.f32 %v1681, %v1720
        %v1722 = vpop.f32.mrb[0].mxu0
        %v1723 = vpop.f32.mrb[0].mxu0
        %v1724 = vpop.f32.mrb[0].mxu0
        %1725 = vdwg.mxu0
        %1726 = vmatprep.subr.bf16.mxu0 0
        %1727 = vmatpush1.bf16.msra.mxu0 %v1326
        %1728 = vmatprep.subr.bf16.mxu0 0
        %1729 = vmatpush1.bf16.msra.mxu0 %v1327
        %1730 = vmatprep.subr.bf16.mxu0 0
        %1731 = vmatpush1.bf16.msra.mxu0 %v1328
        %1732 = vmatprep.subr.bf16.mxu0 0
        %1733 = vmatpush1.bf16.msra.mxu0 %v1329
        %1734 = vmatprep.subr.bf16.mxu0 0
        %1735 = vmatpush1.bf16.msra.mxu0 %v1330
        %1736 = vmatprep.subr.bf16.mxu0 0
        %1737 = vmatpush1.bf16.msra.mxu0 %v1331
        %1738 = vmatprep.subr.bf16.mxu0 0
        %1739 = vmatpush1.bf16.msra.mxu0 %v1332
        %1740 = vmatprep.subr.bf16.mxu0 0
        %1741 = vmatpush1.bf16.msra.mxu0 %v1333
        %1742 = vmatprep.subr.bf16.mxu0 0
        %1743 = vmatpush1.bf16.msra.mxu0 %v1334
        %1744 = vmatprep.subr.bf16.mxu0 0
        %1745 = vmatpush1.bf16.msra.mxu0 %v1335
        %1746 = vmatprep.subr.bf16.mxu0 0
        %1747 = vmatpush1.bf16.msra.mxu0 %v1336
        %1748 = vmatprep.subr.bf16.mxu0 0
        %1749 = vmatpush1.bf16.msra.mxu0 %v1337
        %1750 = vmatprep.subr.bf16.mxu0 0
        %1751 = vmatpush1.bf16.msra.mxu0 %v1338
        %1752 = vmatprep.subr.bf16.mxu0 0
        %1753 = vmatpush1.bf16.msra.mxu0 %v1339
        %1754 = vmatprep.subr.bf16.mxu0 0
        %1755 = vmatpush1.bf16.msra.mxu0 %v1340
        %1756 = vmatprep.subr.bf16.mxu0 0
        %1757 = vmatpush1.bf16.msra.mxu0 %v1341
        %1758 = vmatprep.mubr.bf16.mxu0 %v697
        %1759 = vmatmul.mubr.bf16.gmra.mrb[0].mxu0 %v683
        %v1760 = vpop.f32.mrb[0].mxu0
        %v1761 = vadd.f32 %v1721, %v1760
        %v1762 = vpop.f32.mrb[0].mxu0
        %v1763 = vpop.f32.mrb[0].mxu0
        %v1764 = vpop.f32.mrb[0].mxu0
        %1765 = vdwg.mxu0
        %1766 = vmatprep.subr.bf16.mxu0 0
        %1767 = vmatpush1.bf16.msra.mxu0 %v1342
        %1768 = vmatprep.subr.bf16.mxu0 0
        %1769 = vmatpush1.bf16.msra.mxu0 %v1343
        %1770 = vmatprep.subr.bf16.mxu0 0
        %1771 = vmatpush1.bf16.msra.mxu0 %v1344
        %1772 = vmatprep.subr.bf16.mxu0 0
        %1773 = vmatpush1.bf16.msra.mxu0 %v1345
        %1774 = vmatprep.subr.bf16.mxu0 0
        %1775 = vmatpush1.bf16.msra.mxu0 %v1346
        %1776 = vmatprep.subr.bf16.mxu0 0
        %1777 = vmatpush1.bf16.msra.mxu0 %v1347
        %1778 = vmatprep.subr.bf16.mxu0 0
        %1779 = vmatpush1.bf16.msra.mxu0 %v1348
        %1780 = vmatprep.subr.bf16.mxu0 0
        %1781 = vmatpush1.bf16.msra.mxu0 %v1349
        %1782 = vmatprep.subr.bf16.mxu0 0
        %1783 = vmatpush1.bf16.msra.mxu0 %v1350
        %1784 = vmatprep.subr.bf16.mxu0 0
        %1785 = vmatpush1.bf16.msra.mxu0 %v1351
        %1786 = vmatprep.subr.bf16.mxu0 0
        %1787 = vmatpush1.bf16.msra.mxu0 %v1352
        %1788 = vmatprep.subr.bf16.mxu0 0
        %1789 = vmatpush1.bf16.msra.mxu0 %v1353
        %1790 = vmatprep.subr.bf16.mxu0 0
        %1791 = vmatpush1.bf16.msra.mxu0 %v1354
        %1792 = vmatprep.subr.bf16.mxu0 0
        %1793 = vmatpush1.bf16.msra.mxu0 %v1355
        %1794 = vmatprep.subr.bf16.mxu0 0
        %1795 = vmatpush1.bf16.msra.mxu0 %v1356
        %1796 = vmatprep.subr.bf16.mxu0 0
        %1797 = vmatpush1.bf16.msra.mxu0 %v1357
        %1798 = vmatprep.mubr.bf16.mxu0 %v701
        %1799 = vmatmul.mubr.bf16.gmra.mrb[0].mxu0 %v699
        %v1800 = vpop.f32.mrb[0].mxu0
        %v1801 = vadd.f32 %v1761, %v1800
        %v1802 = vpop.f32.mrb[0].mxu0
        %v1803 = vpop.f32.mrb[0].mxu0
        %v1804 = vpop.f32.mrb[0].mxu0
        %1805 = vdwg.mxu0
        %v1806 = vadd.f32 %v343, %v1801
        %1807 = vst [vmem:[#allocation2] sm:$0x3] %v1806
        %p1808 = scmp.eq.s32.totalorder %s28, 1
        // Predicated region
        $region49: #{gesture_predictor_forward.3} parent=35 // pred_check
          %p1809 = pneg %p1808
        $region50: #{gesture_predictor_forward.3} parent=35 // pred_check_branch
          %1811 = sbr.rel (%p1809) target = $region52
        $region51: #{gesture_predictor_forward.3} parent=35 // pred_region
          %v1812 = vld [vmem:[#allocation2] sm:$0x3]
          %v1813 = vld [vmem:[%s270] sm:$0x1]
          %v1815 = vlaneseq
          %v1816 = vshrl.u32 %v1815, 7
          %v1817 = vsub.s32 0, %v1816
          %v1818 = vrot.slane %v1813, %v1817
          %v1820 = vadd.f32 %v1812, %v1818
          %vm1821 = vcmp.ge.f32.partialorder %v1820, 0.0
          %v1822 = vmul.f32 %v1820, 0.1
          %v1823 = vsel %vm1821, %v1820, %v1822
          %v1824 = vpack.c.bf16 %v1823, %v1823
          %v1825 = vld [vmem:[%s328] sm:$0xf]
          %v1826 = vld [vmem:[%s328 + $0x4] sm:$0xf]
          %v1827 = vld [vmem:[%s328 + $0x8] sm:$0xf]
          %v1828 = vld [vmem:[%s328 + $0xc] sm:$0xf]
          %v1829 = vld [vmem:[%s328 + $0x10] sm:$0xf]
          %v1830 = vld [vmem:[%s328 + $0x14] sm:$0xf]
          %v1831 = vld [vmem:[%s328 + $0x18] sm:$0xf]
          %v1832 = vld [vmem:[%s328 + $0x1c] sm:$0xf]
          %v1833 = vld [vmem:[%s328 + $0x20] sm:$0xf]
          %v1834 = vld [vmem:[%s328 + $0x24] sm:$0xf]
          %v1835 = vld [vmem:[%s328 + $0x28] sm:$0xf]
          %v1836 = vld [vmem:[%s328 + $0x2c] sm:$0xf]
          %v1837 = vld [vmem:[%s328 + $0x30] sm:$0xf]
          %v1838 = vld [vmem:[%s328 + $0x34] sm:$0xf]
          %v1839 = vld [vmem:[%s328 + $0x38] sm:$0xf]
          %v1840 = vld [vmem:[%s328 + $0x3c] sm:$0xf]
          %v1857 = vunpack.c.l.b16 %v1825
          %v1858 = vunpack.c.l.b16 %v1826
          %v1859 = vunpack.c.l.b16 %v1827
          %v1860 = vunpack.c.l.b16 %v1828
          %v1861 = vunpack.c.l.b16 %v1829
          %v1862 = vunpack.c.l.b16 %v1830
          %v1863 = vunpack.c.l.b16 %v1831
          %v1864 = vunpack.c.l.b16 %v1832
          %v1865 = vunpack.c.l.b16 %v1833
          %v1866 = vunpack.c.l.b16 %v1834
          %v1867 = vunpack.c.l.b16 %v1835
          %v1868 = vunpack.c.l.b16 %v1836
          %v1869 = vunpack.c.l.b16 %v1837
          %v1870 = vunpack.c.l.b16 %v1838
          %v1871 = vunpack.c.l.b16 %v1839
          %v1872 = vunpack.c.l.b16 %v1840
          %v1873 = vpack.c.b16 %v1858, %v1857
          %v1874 = vpack.c.b16 %v1860, %v1859
          %v1875 = vpack.c.b16 %v1862, %v1861
          %v1876 = vpack.c.b16 %v1864, %v1863
          %v1877 = vpack.c.b16 %v1866, %v1865
          %v1878 = vpack.c.b16 %v1868, %v1867
          %v1879 = vpack.c.b16 %v1870, %v1869
          %v1880 = vpack.c.b16 %v1872, %v1871
          %1889 = vmatprep.subr.bf16.mxu0 0
          %1890 = vmatpush1.bf16.msra.mxu0 %v1873
          %1891 = vmatprep.subr.bf16.mxu0 0
          %1892 = vmatpush1.bf16.msra.mxu0 %v1874
          %1893 = vmatprep.subr.bf16.mxu0 0
          %1894 = vmatpush1.bf16.msra.mxu0 %v1875
          %1895 = vmatprep.subr.bf16.mxu0 0
          %1896 = vmatpush1.bf16.msra.mxu0 %v1876
          %1897 = vmatprep.subr.bf16.mxu0 0
          %1898 = vmatpush1.bf16.msra.mxu0 %v1877
          %1899 = vmatprep.subr.bf16.mxu0 0
          %1900 = vmatpush1.bf16.msra.mxu0 %v1878
          %1901 = vmatprep.subr.bf16.mxu0 0
          %1902 = vmatpush1.bf16.msra.mxu0 %v1879
          %1903 = vmatprep.subr.bf16.mxu0 0
          %1904 = vmatpush1.bf16.msra.mxu0 %v1880
          %1905 = vmatprep.subr.bf16.mxu0 0
          %1906 = vmatpush1.bf16.msra.mxu0 0
          %1907 = vmatprep.subr.bf16.mxu0 0
          %1908 = vmatpush1.bf16.msra.mxu0 0
          %1909 = vmatprep.subr.bf16.mxu0 0
          %1910 = vmatpush1.bf16.msra.mxu0 0
          %1911 = vmatprep.subr.bf16.mxu0 0
          %1912 = vmatpush1.bf16.msra.mxu0 0
          %1913 = vmatprep.subr.bf16.mxu0 0
          %1914 = vmatpush1.bf16.msra.mxu0 0
          %1915 = vmatprep.subr.bf16.mxu0 0
          %1916 = vmatpush1.bf16.msra.mxu0 0
          %1917 = vmatprep.subr.bf16.mxu0 0
          %1918 = vmatpush1.bf16.msra.mxu0 0
          %1919 = vmatprep.subr.bf16.mxu0 0
          %1920 = vmatpush1.bf16.msra.mxu0 0
          %1921 = vmatprep.mubr.bf16.mxu0 0
          %1922 = vmatmul.mubr.bf16.gmra.mrb[0].mxu0 %v1824
          %v1923 = vpop.f32.mrb[0].mxu0
          %v1924 = vadd.f32 0.0, %v1923
          %v1925 = vpop.f32.mrb[0].mxu0
          %v1926 = vpop.f32.mrb[0].mxu0
          %v1927 = vpop.f32.mrb[0].mxu0
          %1928 = vdwg.mxu0
          %1929 = vst [vmem:[%s336] sm:$0x3] %v1924
        $region52: #{gesture_predictor_forward.3} parent=35 // pred_fallthru
          _
        %p1930 = scmp.lt.s32.totalorder %s26, 1
        %s1931 = scalar_select %p1930, %s26, 1
        %p1932 = scmp.lt.s32.totalorder %s27, 0
        %s1933 = scalar_select %p1932, %s27, 0
        %s1934 = sadd.s32 %s1933, %s1931
        %s1935 = smul.addr %s1934, 2
        %s1936 = scalar_lea.vmem %s4, %s1935
        // Predicated region
        $region53: #{gesture_predictor_forward.3} parent=35 // pred_check
          %p1937 = pneg %p168
        $region54: #{gesture_predictor_forward.3} parent=35 // pred_check_branch
          %1939 = sbr.rel (%p1937) target = $region56
        $region55: #{gesture_predictor_forward.3} parent=35 // pred_region
          _
        $region56: #{gesture_predictor_forward.3} parent=35 // pred_fallthru
          _
      $region36: #{gesture_predictor_forward.3} parent=5 // pred_fallthru
        _
      %p1940 = scmp.le.s32.totalorder 2, %s16
      // Predicated region
      $region57: #{gesture_predictor_forward.3} parent=5 // pred_check
        %p1941 = pneg %p1940
      $region58: #{gesture_predictor_forward.3} parent=5 // pred_check_branch
        %1943 = sbr.rel (%p1941) target = $region60
      $region59: #{gesture_predictor_forward.3} parent=5 // pred_region
        %s1944 = ssub.s32 %s16, 2
        // Predicated region
        $region61: #{gesture_predictor_forward.3} parent=59 // pred_check
          %p1945 = pneg %p174
        $region62: #{gesture_predictor_forward.3} parent=59 // pred_check_branch
          %1947 = sbr.rel (%p1945) target = $region64
        $region63: #{gesture_predictor_forward.3} parent=59 // pred_region
          %p1948 = scmp.lt.s32.totalorder %s29, 1
          %s1949 = scalar_select %p1948, %s29, 1
          %p1950 = scmp.lt.s32.totalorder %s30, 0
          %s1951 = scalar_select %p1950, %s30, 0
          %s1952 = sadd.s32 %s1951, %s1949
          %s1953 = smul.addr %s1952, 2
          %s1954 = scalar_lea.vmem %s4, %s1953
        $region64: #{gesture_predictor_forward.3} parent=59 // pred_fallthru
          _
      $region60: #{gesture_predictor_forward.3} parent=5 // pred_fallthru
        _
    $region6: #{gesture_predictor_forward.3} parent=1 // loop_footer
      %s20 = sadd.s32 1, %s16
    $region7: #{gesture_predictor_forward.3} parent=1 // loop_footer_branch
      %15 = sbr.rel target = $region3
    $region8: #{gesture_predictor_forward.3} parent=1 // loop_exit
      _
    %1955 = vsyncpa [#allocation4], 1
    %s1956 = scalar_lea.sflag [#allocation4], 1
    %1957 = vsyncpa %s1956, 1
    %1958 = vsyncpa [#allocation6], 1
    %s1959 = scalar_lea.sflag [#allocation6], 1
    %1960 = vsyncpa %s1959, 1

// kernel: gesture_predictor_forward.2
$region0: #{gesture_predictor_forward.2}
  #allocation0 [shape = 'u32[]', space=smem, size = 0x4, offset = 0x4, fixed_abs, tag = 'smem constant byte address 0x4 - core index']
  #allocation1 [shape = 'u32[144,128]{1,0:T(1,128)}', space=vmem, size = 0x12000, scoped, tag = 'internal scratch']
  #allocation2 [shape = 'bf16[10,10,64]{2,1,0:T(8,128)(2,1)}', space=vmem, size = 0xa000, scoped, tag = 'scratch operand']
  #allocation3 [shape = 'bf16[10,10,64]{2,1,0:T(8,128)(2,1)}', space=vmem, size = 0xa000, scoped, tag = 'scratch operand']
  %s0 = inlined_call_operand.vmem [shape: bf16[2,64,32], index: 0, kind: input, shape index: {}]
  %s1 = inlined_call_operand.hbm [shape: bf16[32,64], index: 1, kind: input, shape index: {}]
  %s2 = inlined_call_operand.vmem [shape: bf16[3,3,192,64], index: 2, kind: input, shape index: {}]
  %s3 = inlined_call_operand.hbm [shape: f32[4,64], index: 3, kind: input, shape index: {}]
  %s4 = inlined_call_operand.hbm [shape: f32[4,64], index: 4, kind: input, shape index: {}]
  %s5 = inlined_call_operand.vmem [shape: bf16[2,64,64], index: 5, kind: output, shape index: {}]
  %s6 = sld [smem:[#allocation0]]
  $region65: #{gesture_predictor_forward.2} parent=0
    _
  %s8 = ssub.s32 1, %s6
  %s9 = scalar_select 0, %s8, %s6
  $region1: #{gesture_predictor_forward.2} parent=0
    #allocation4 [shape = 'u8[8192]{0}', space=vmem, size = 0x2000, scoped, tag = 'input window, operand 1, single buffered']
    #allocation5 [shape = 's32[2]{0}', space=sflag, size = 0x8, scoped, tag = 'scoped memory for gesture_predictor_forward.2']
    #allocation6 [shape = 'u8[2048]{0}', space=vmem, size = 0x800, scoped, tag = 'input window, operand 3, single buffered']
    #allocation7 [shape = 's32[1]{0}', space=sflag, size = 0x4, scoped, tag = 'scoped memory for gesture_predictor_forward.2']
    #allocation8 [shape = 'u8[2048]{0}', space=vmem, size = 0x800, scoped, tag = 'input window, operand 4, single buffered']
    %10 = vsyncpa [#allocation5], 0
    %11 = vsyncpa [#allocation7], 0
    loop: start=0, step=1, limit=4
    $region2: #{gesture_predictor_forward.2} parent=1 // loop_pre_header
      _
    $region3: #{gesture_predictor_forward.2} parent=1 // loop_header
      %s13 = sphi 0, %s17
      %p14 = scmp.ge.s32.totalorder %s13, 4
      %s23 = sphi 0, %s25
      %s26 = sphi 0, %s23
      %s27 = sphi 0, %s26
      %s43 = sphi 0, %s27
      %s47 = sphi 0, %s47
      %s49 = sphi 0, %s47
      %s50 = sphi 0, %s49
      %s64 = sphi 0, %s50
      %s68 = sphi 0, %s68
      %s70 = sphi 0, %s68
      %s71 = sphi 0, %s70
      %s85 = sphi 0, %s71
      %s89 = sphi 0, %s89
      %s91 = sphi 0, %s89
      %s92 = sphi 0, %s91
      %s106 = sphi 0, %s92
      %s110 = sphi 0, %s110
      %s112 = sphi 0, %s110
      %s113 = sphi 0, %s112
      %s127 = sphi 0, %s113
      %s133 = sphi 0, %s135
      %s136 = sphi 0, %s133
      %s137 = sphi 0, %s136
      %s153 = sphi 0, %s137
    $region4: #{gesture_predictor_forward.2} parent=1 // loop_header_branch
      %16 = sbr.rel (%p14) target = $region8
    $region5: #{gesture_predictor_forward.2} parent=1 // loop_body
      %s18 = ssub.s32 %s13, 1
      %s19 = ssub.s32 %s13, 2
      %s20 = sadd.s32 %s13, 1
      %s21 = ssub.s32 %s13, %s20
      %p22 = scmp.eq.s32.totalorder %s21, 0
      %s24 = sadd.s32 %s23, 1
      %s25 = scalar_select %p22, %s23, %s24
      %p28 = pneg %p22
      %p29 = scmp.eq.s32.totalorder %s13, 1
      %p30 = por %p28, %p29
      %p31 = scmp.ne.s32.totalorder %s23, %s26
      %p32 = scmp.eq.s32.totalorder %s13, 0
      %p33 = por %p31, %p32
      %p34 = scmp.ne.s32.totalorder %s23, %s26
      %p35 = scmp.eq.s32.totalorder %s18, 1
      %p36 = por %p34, %p35
      %p37 = scmp.ne.s32.totalorder %s26, %s27
      %p38 = scmp.eq.s32.totalorder %s18, 0
      %p39 = por %p37, %p38
      %p40 = scmp.ne.s32.totalorder %s26, %s27
      %p41 = scmp.eq.s32.totalorder %s19, 1
      %p42 = por %p40, %p41
      %p44 = scmp.ne.s32.totalorder %s27, %s43
      %p45 = scmp.eq.s32.totalorder %s19, 0
      %p46 = por %p44, %p45
      %s48 = sadd.s32 %s47, 1
      %p51 = scmp.eq.s32.totalorder %s13, 1
      %p52 = scmp.ne.s32.totalorder %s47, %s49
      %p53 = scmp.eq.s32.totalorder %s13, 0
      %p54 = por %p52, %p53
      %p55 = scmp.ne.s32.totalorder %s47, %s49
      %p56 = scmp.eq.s32.totalorder %s18, 1
      %p57 = por %p55, %p56
      %p58 = scmp.ne.s32.totalorder %s49, %s50
      %p59 = scmp.eq.s32.totalorder %s18, 0
      %p60 = por %p58, %p59
      %p61 = scmp.ne.s32.totalorder %s49, %s50
      %p62 = scmp.eq.s32.totalorder %s19, 1
      %p63 = por %p61, %p62
      %p65 = scmp.ne.s32.totalorder %s50, %s64
      %p66 = scmp.eq.s32.totalorder %s19, 0
      %p67 = por %p65, %p66
      %s69 = sadd.s32 %s68, 1
      %p72 = scmp.eq.s32.totalorder %s13, 1
      %p73 = scmp.ne.s32.totalorder %s68, %s70
      %p74 = scmp.eq.s32.totalorder %s13, 0
      %p75 = por %p73, %p74
      %p76 = scmp.ne.s32.totalorder %s68, %s70
      %p77 = scmp.eq.s32.totalorder %s18, 1
      %p78 = por %p76, %p77
      %p79 = scmp.ne.s32.totalorder %s70, %s71
      %p80 = scmp.eq.s32.totalorder %s18, 0
      %p81 = por %p79, %p80
      %p82 = scmp.ne.s32.totalorder %s70, %s71
      %p83 = scmp.eq.s32.totalorder %s19, 1
      %p84 = por %p82, %p83
      %p86 = scmp.ne.s32.totalorder %s71, %s85
      %p87 = scmp.eq.s32.totalorder %s19, 0
      %p88 = por %p86, %p87
      %s90 = sadd.s32 %s89, 1
      %p93 = scmp.eq.s32.totalorder %s13, 1
      %p94 = scmp.ne.s32.totalorder %s89, %s91
      %p95 = scmp.eq.s32.totalorder %s13, 0
      %p96 = por %p94, %p95
      %p97 = scmp.ne.s32.totalorder %s89, %s91
      %p98 = scmp.eq.s32.totalorder %s18, 1
      %p99 = por %p97, %p98
      %p100 = scmp.ne.s32.totalorder %s91, %s92
      %p101 = scmp.eq.s32.totalorder %s18, 0
      %p102 = por %p100, %p101
      %p103 = scmp.ne.s32.totalorder %s91, %s92
      %p104 = scmp.eq.s32.totalorder %s19, 1
      %p105 = por %p103, %p104
      %p107 = scmp.ne.s32.totalorder %s92, %s106
      %p108 = scmp.eq.s32.totalorder %s19, 0
      %p109 = por %p107, %p108
      %s111 = sadd.s32 %s110, 1
      %p114 = scmp.eq.s32.totalorder %s13, 1
      %p115 = scmp.ne.s32.totalorder %s110, %s112
      %p116 = scmp.eq.s32.totalorder %s13, 0
      %p117 = por %p115, %p116
      %p118 = scmp.ne.s32.totalorder %s110, %s112
      %p119 = scmp.eq.s32.totalorder %s18, 1
      %p120 = por %p118, %p119
      %p121 = scmp.ne.s32.totalorder %s112, %s113
      %p122 = scmp.eq.s32.totalorder %s18, 0
      %p123 = por %p121, %p122
      %p124 = scmp.ne.s32.totalorder %s112, %s113
      %p125 = scmp.eq.s32.totalorder %s19, 1
      %p126 = por %p124, %p125
      %p128 = scmp.ne.s32.totalorder %s113, %s127
      %p129 = scmp.eq.s32.totalorder %s19, 0
      %p130 = por %p128, %p129
      %s131 = ssub.s32 %s13, %s20
      %p132 = scmp.eq.s32.totalorder %s131, 0
      %s134 = sadd.s32 %s133, 1
      %s135 = scalar_select %p132, %s133, %s134
      %p138 = pneg %p132
      %p139 = scmp.eq.s32.totalorder %s13, 1
      %p140 = por %p138, %p139
      %p141 = scmp.ne.s32.totalorder %s133, %s136
      %p142 = scmp.eq.s32.totalorder %s13, 0
      %p143 = por %p141, %p142
      %p144 = scmp.ne.s32.totalorder %s133, %s136
      %p145 = scmp.eq.s32.totalorder %s18, 1
      %p146 = por %p144, %p145
      %p147 = scmp.ne.s32.totalorder %s136, %s137
      %p148 = scmp.eq.s32.totalorder %s18, 0
      %p149 = por %p147, %p148
      %p150 = scmp.ne.s32.totalorder %s136, %s137
      %p151 = scmp.eq.s32.totalorder %s19, 1
      %p152 = por %p150, %p151
      %p154 = scmp.ne.s32.totalorder %s137, %s153
      %p155 = scmp.eq.s32.totalorder %s19, 0
      %p156 = por %p154, %p155
      %p157 = scmp.le.s32.totalorder 1, %s13
      %p158 = scmp.lt.s32.totalorder %s13, 3
      %p159 = pnand %p157, %p158
      %p160 = pneg %p159
      // Predicated region
      $region9: #{gesture_predictor_forward.2} parent=5 // pred_check
        _
      $region10: #{gesture_predictor_forward.2} parent=5 // pred_check_branch
        %162 = sbr.rel (%p159) target = $region12
      $region11: #{gesture_predictor_forward.2} parent=5 // pred_region
        %s163 = ssub.s32 %s13, 1
        // Predicated region
        $region13: #{gesture_predictor_forward.2} parent=11 // pred_check
          %p164 = pneg %p60
        $region14: #{gesture_predictor_forward.2} parent=11 // pred_check_branch
          %166 = sbr.rel (%p164) target = $region16
        $region15: #{gesture_predictor_forward.2} parent=11 // pred_region
          %s168 = ssub.s32 256, 256
          %169 = vsyncadd [#allocation5], %s168
          %s170 = sshll.u32 [#allocation4], 4
          %s171 = int_to_ptr.vmem [resolvable:$true] %s170
          %176 = dma.hbm_to_vmem [thread:$0]  %s1, 256, %s171, [#allocation5], 64, 64, 4
        $region16: #{gesture_predictor_forward.2} parent=11 // pred_fallthru
          _
        // Predicated region
        $region17: #{gesture_predictor_forward.2} parent=11 // pred_check
          %p177 = pneg %p81
        $region18: #{gesture_predictor_forward.2} parent=11 // pred_check_branch
          %179 = sbr.rel (%p177) target = $region20
        $region19: #{gesture_predictor_forward.2} parent=11 // pred_region
          _
        $region20: #{gesture_predictor_forward.2} parent=11 // pred_fallthru
          _
        // Predicated region
        $region21: #{gesture_predictor_forward.2} parent=11 // pred_check
          %p180 = pneg %p102
        $region22: #{gesture_predictor_forward.2} parent=11 // pred_check_branch
          %182 = sbr.rel (%p180) target = $region24
        $region23: #{gesture_predictor_forward.2} parent=11 // pred_region
          %s184 = ssub.s32 64, 64
          %185 = vsyncadd [#allocation7], %s184
          %s187 = sshll.u32 [#allocation6], 4
          %s188 = int_to_ptr.vmem [resolvable:$true] %s187
          %190 = dma.hbm_to_vmem [thread:$0]  %s3, 64, %s188, [#allocation7]
        $region24: #{gesture_predictor_forward.2} parent=11 // pred_fallthru
          _
        // Predicated region
        $region25: #{gesture_predictor_forward.2} parent=11 // pred_check
          %p191 = pneg %p123
        $region26: #{gesture_predictor_forward.2} parent=11 // pred_check_branch
          %193 = sbr.rel (%p191) target = $region28
        $region27: #{gesture_predictor_forward.2} parent=11 // pred_region
          %s195 = ssub.s32 64, 64
          %196 = vsyncadd [#allocation7], %s195
          %s198 = sshll.u32 [#allocation8], 4
          %s199 = int_to_ptr.vmem [resolvable:$true] %s198
          %201 = dma.hbm_to_vmem [thread:$0]  %s4, 64, %s199, [#allocation7]
        $region28: #{gesture_predictor_forward.2} parent=11 // pred_fallthru
          _
      $region12: #{gesture_predictor_forward.2} parent=5 // pred_fallthru
        _
      %p202 = scmp.lt.s32.totalorder %s13, 2
      // Predicated region
      $region29: #{gesture_predictor_forward.2} parent=5 // pred_check
        %p203 = pneg %p202
      $region30: #{gesture_predictor_forward.2} parent=5 // pred_check_branch
        %205 = sbr.rel (%p203) target = $region32
      $region31: #{gesture_predictor_forward.2} parent=5 // pred_region
        // Predicated region
        $region33: #{gesture_predictor_forward.2} parent=31 // pred_check
          %p206 = pneg %p33
        $region34: #{gesture_predictor_forward.2} parent=31 // pred_check_branch
          %208 = sbr.rel (%p206) target = $region36
        $region35: #{gesture_predictor_forward.2} parent=31 // pred_region
          %p209 = scmp.lt.s32.totalorder %s13, 1
          %s210 = scalar_select %p209, %s13, 1
          %s211 = smul.addr %s210, 8
          %s212 = smul.addr %s211, 4
          %s213 = scalar_lea.vmem %s0, %s212
        $region36: #{gesture_predictor_forward.2} parent=31 // pred_fallthru
          _
      $region32: #{gesture_predictor_forward.2} parent=5 // pred_fallthru
        _
      %p214 = scmp.le.s32.totalorder 1, %s13
      %p215 = scmp.lt.s32.totalorder %s13, 3
      %p216 = pnand %p214, %p215
      %p217 = pneg %p216
      // Predicated region
      $region37: #{gesture_predictor_forward.2} parent=5 // pred_check
        _
      $region38: #{gesture_predictor_forward.2} parent=5 // pred_check_branch
        %219 = sbr.rel (%p216) target = $region40
      $region39: #{gesture_predictor_forward.2} parent=5 // pred_region
        %s220 = ssub.s32 %s13, 1
        // Predicated region
        $region41: #{gesture_predictor_forward.2} parent=39 // pred_check
          %p221 = pneg %p60
        $region42: #{gesture_predictor_forward.2} parent=39 // pred_check_branch
          %223 = sbr.rel (%p221) target = $region44
        $region43: #{gesture_predictor_forward.2} parent=39 // pred_region
          %224 = dma.done [#allocation5], 256
        $region44: #{gesture_predictor_forward.2} parent=39 // pred_fallthru
          _
        // Predicated region
        $region45: #{gesture_predictor_forward.2} parent=39 // pred_check
          %p225 = pneg %p102
        $region46: #{gesture_predictor_forward.2} parent=39 // pred_check_branch
          %227 = sbr.rel (%p225) target = $region48
        $region47: #{gesture_predictor_forward.2} parent=39 // pred_region
          %228 = dma.done [#allocation7], 64
        $region48: #{gesture_predictor_forward.2} parent=39 // pred_fallthru
          _
        // Predicated region
        $region49: #{gesture_predictor_forward.2} parent=39 // pred_check
          %p229 = pneg %p123
        $region50: #{gesture_predictor_forward.2} parent=39 // pred_check_branch
          %231 = sbr.rel (%p229) target = $region52
        $region51: #{gesture_predictor_forward.2} parent=39 // pred_region
          %232 = dma.done [#allocation7], 64
        $region52: #{gesture_predictor_forward.2} parent=39 // pred_fallthru
          _
        %p233 = scmp.lt.s32.totalorder %s18, 1
        %s234 = scalar_select %p233, %s18, 1
        %s235 = smul.addr %s234, 8
        %s236 = smul.addr %s235, 4
        %s237 = scalar_lea.vmem %s0, %s236
        %p238 = pneg %p39
        %p239 = pneg %p36
        %p240 = pneg %p60
        %p241 = pneg %p57
        %p242 = pneg %p81
        %p243 = pneg %p78
        %p244 = pneg %p102
        %p245 = pneg %p99
        %p246 = pneg %p123
        %p247 = pneg %p120
        %p248 = pneg %p149
        %p249 = pneg %p146
        %p250 = scmp.lt.s32.totalorder %s18, 1
        %s251 = scalar_select %p250, %s18, 1
        %s252 = smul.addr %s251, 8
        %s253 = smul.addr %s252, 4
        %s254 = scalar_lea.vmem %s5, %s253
        %p255 = scmp.lt.s32.totalorder %s18, 1
        %s256 = scalar_select %p255, %s18, 1
        %s257 = smul.addr %s256, 8
        %s258 = smul.addr %s257, 4
        %s259 = scalar_lea.vmem %s0, %s258
        %p260 = scmp.lt.s32.totalorder %s18, 1
        %s261 = scalar_select %p260, %s18, 1
        %s262 = smul.addr %s261, 8
        %s263 = smul.addr %s262, 4
        %s264 = scalar_lea.vmem %s5, %s263
        %vm266 = vcmask 519168
        %267 = vst.msk [vmem:[#allocation2] sm:$0xf] %vm266, 0
        %vm268 = vcmask 516096
        %269 = vst.msk [vmem:[#allocation2 + $0x4] sm:$0x1] %vm268, 0
        %s270 = scalar_lea.vmem [#allocation2], 72
        %271 = vst.msk [vmem:[%s270] sm:$0xf] %vm266, 0
        %272 = vst.msk [vmem:[%s270 + $0x4] sm:$0x1] %vm268, 0
        %vm273 = vcmask 516096
        %vm274 = vsmask.f32 256
        %vm275 = vmand %vm273, %vm274
        %v276 = vld [vmem:[#allocation2] sm:$0x1]
        %v277 = vsel %vm275, 0, %v276
        %278 = vst [vmem:[#allocation2] sm:$0x1] %v277
        %v279 = vld [vmem:[#allocation2 + $0x8] sm:$0x1]
        %v280 = vsel %vm275, 0, %v279
        %281 = vst [vmem:[#allocation2 + $0x8] sm:$0x1] %v280
        %v282 = vld [vmem:[#allocation2 + $0x10] sm:$0x1]
        %v283 = vsel %vm275, 0, %v282
        %284 = vst [vmem:[#allocation2 + $0x10] sm:$0x1] %v283
        %v285 = vld [vmem:[#allocation2 + $0x18] sm:$0x1]
        %v286 = vsel %vm275, 0, %v285
        %287 = vst [vmem:[#allocation2 + $0x18] sm:$0x1] %v286
        %v288 = vld [vmem:[#allocation2 + $0x20] sm:$0x1]
        %v289 = vsel %vm275, 0, %v288
        %290 = vst [vmem:[#allocation2 + $0x20] sm:$0x1] %v289
        %v291 = vld [vmem:[#allocation2 + $0x28] sm:$0x1]
        %v292 = vsel %vm275, 0, %v291
        %293 = vst [vmem:[#allocation2 + $0x28] sm:$0x1] %v292
        %v294 = vld [vmem:[#allocation2 + $0x30] sm:$0x1]
        %v295 = vsel %vm275, 0, %v294
        %296 = vst [vmem:[#allocation2 + $0x30] sm:$0x1] %v295
        %v297 = vld [vmem:[#allocation2 + $0x38] sm:$0x1]
        %v298 = vsel %vm275, 0, %v297
        %299 = vst [vmem:[#allocation2 + $0x38] sm:$0x1] %v298
        %v300 = vld [vmem:[#allocation2 + $0x40] sm:$0x1]
        %v301 = vsel %vm275, 0, %v300
        %302 = vst [vmem:[#allocation2 + $0x40] sm:$0x1] %v301
        %v303 = vld [vmem:[#allocation2 + $0x48] sm:$0x1]
        %v304 = vsel %vm275, 0, %v303
        %305 = vst [vmem:[#allocation2 + $0x48] sm:$0x1] %v304
        %vm306 = vsmask.f32 7938
        %vm307 = vmand %vm273, %vm306
        %v308 = vld [vmem:[#allocation2 + $0x4] sm:$0x1]
        %v309 = vsel %vm307, 0, %v308
        %310 = vst [vmem:[#allocation2 + $0x4] sm:$0x1] %v309
        %v311 = vld [vmem:[#allocation2 + $0xc] sm:$0x1]
        %v312 = vsel %vm307, 0, %v311
        %313 = vst [vmem:[#allocation2 + $0xc] sm:$0x1] %v312
        %v314 = vld [vmem:[#allocation2 + $0x14] sm:$0x1]
        %v315 = vsel %vm307, 0, %v314
        %316 = vst [vmem:[#allocation2 + $0x14] sm:$0x1] %v315
        %v317 = vld [vmem:[#allocation2 + $0x1c] sm:$0x1]
        %v318 = vsel %vm307, 0, %v317
        %319 = vst [vmem:[#allocation2 + $0x1c] sm:$0x1] %v318
        %v320 = vld [vmem:[#allocation2 + $0x24] sm:$0x1]
        %v321 = vsel %vm307, 0, %v320
        %322 = vst [vmem:[#allocation2 + $0x24] sm:$0x1] %v321
        %v323 = vld [vmem:[#allocation2 + $0x2c] sm:$0x1]
        %v324 = vsel %vm307, 0, %v323
        %325 = vst [vmem:[#allocation2 + $0x2c] sm:$0x1] %v324
        %v326 = vld [vmem:[#allocation2 + $0x34] sm:$0x1]
        %v327 = vsel %vm307, 0, %v326
        %328 = vst [vmem:[#allocation2 + $0x34] sm:$0x1] %v327
        %v329 = vld [vmem:[#allocation2 + $0x3c] sm:$0x1]
        %v330 = vsel %vm307, 0, %v329
        %331 = vst [vmem:[#allocation2 + $0x3c] sm:$0x1] %v330
        %v332 = vld [vmem:[#allocation2 + $0x44] sm:$0x1]
        %v333 = vsel %vm307, 0, %v332
        %334 = vst [vmem:[#allocation2 + $0x44] sm:$0x1] %v333
        %v335 = vld [vmem:[#allocation2 + $0x4c] sm:$0x1]
        %v336 = vsel %vm307, 0, %v335
        %337 = vst [vmem:[#allocation2 + $0x4c] sm:$0x1] %v336
        %338 = vst.msk [vmem:[#allocation3] sm:$0xf] %vm266, 0
        %339 = vst.msk [vmem:[#allocation3 + $0x4] sm:$0x1] %vm268, 0
        %s340 = scalar_lea.vmem [#allocation3], 72
        %341 = vst.msk [vmem:[%s340] sm:$0xf] %vm266, 0
        %342 = vst.msk [vmem:[%s340 + $0x4] sm:$0x1] %vm268, 0
        %v343 = vld [vmem:[#allocation3] sm:$0x1]
        %v344 = vsel %vm275, 0, %v343
        %345 = vst [vmem:[#allocation3] sm:$0x1] %v344
        %v346 = vld [vmem:[#allocation3 + $0x8] sm:$0x1]
        %v347 = vsel %vm275, 0, %v346
        %348 = vst [vmem:[#allocation3 + $0x8] sm:$0x1] %v347
        %v349 = vld [vmem:[#allocation3 + $0x10] sm:$0x1]
        %v350 = vsel %vm275, 0, %v349
        %351 = vst [vmem:[#allocation3 + $0x10] sm:$0x1] %v350
        %v352 = vld [vmem:[#allocation3 + $0x18] sm:$0x1]
        %v353 = vsel %vm275, 0, %v352
        %354 = vst [vmem:[#allocation3 + $0x18] sm:$0x1] %v353
        %v355 = vld [vmem:[#allocation3 + $0x20] sm:$0x1]
        %v356 = vsel %vm275, 0, %v355
        %357 = vst [vmem:[#allocation3 + $0x20] sm:$0x1] %v356
        %v358 = vld [vmem:[#allocation3 + $0x28] sm:$0x1]
        %v359 = vsel %vm275, 0, %v358
        %360 = vst [vmem:[#allocation3 + $0x28] sm:$0x1] %v359
        %v361 = vld [vmem:[#allocation3 + $0x30] sm:$0x1]
        %v362 = vsel %vm275, 0, %v361
        %363 = vst [vmem:[#allocation3 + $0x30] sm:$0x1] %v362
        %v364 = vld [vmem:[#allocation3 + $0x38] sm:$0x1]
        %v365 = vsel %vm275, 0, %v364
        %366 = vst [vmem:[#allocation3 + $0x38] sm:$0x1] %v365
        %v367 = vld [vmem:[#allocation3 + $0x40] sm:$0x1]
        %v368 = vsel %vm275, 0, %v367
        %369 = vst [vmem:[#allocation3 + $0x40] sm:$0x1] %v368
        %v370 = vld [vmem:[#allocation3 + $0x48] sm:$0x1]
        %v371 = vsel %vm275, 0, %v370
        %372 = vst [vmem:[#allocation3 + $0x48] sm:$0x1] %v371
        %v373 = vld [vmem:[#allocation3 + $0x4] sm:$0x1]
        %v374 = vsel %vm307, 0, %v373
        %375 = vst [vmem:[#allocation3 + $0x4] sm:$0x1] %v374
        %v376 = vld [vmem:[#allocation3 + $0xc] sm:$0x1]
        %v377 = vsel %vm307, 0, %v376
        %378 = vst [vmem:[#allocation3 + $0xc] sm:$0x1] %v377
        %v379 = vld [vmem:[#allocation3 + $0x14] sm:$0x1]
        %v380 = vsel %vm307, 0, %v379
        %381 = vst [vmem:[#allocation3 + $0x14] sm:$0x1] %v380
        %v382 = vld [vmem:[#allocation3 + $0x1c] sm:$0x1]
        %v383 = vsel %vm307, 0, %v382
        %384 = vst [vmem:[#allocation3 + $0x1c] sm:$0x1] %v383
        %v385 = vld [vmem:[#allocation3 + $0x24] sm:$0x1]
        %v386 = vsel %vm307, 0, %v385
        %387 = vst [vmem:[#allocation3 + $0x24] sm:$0x1] %v386
        %v388 = vld [vmem:[#allocation3 + $0x2c] sm:$0x1]
        %v389 = vsel %vm307, 0, %v388
        %390 = vst [vmem:[#allocation3 + $0x2c] sm:$0x1] %v389
        %v391 = vld [vmem:[#allocation3 + $0x34] sm:$0x1]
        %v392 = vsel %vm307, 0, %v391
        %393 = vst [vmem:[#allocation3 + $0x34] sm:$0x1] %v392
        %v394 = vld [vmem:[#allocation3 + $0x3c] sm:$0x1]
        %v395 = vsel %vm307, 0, %v394
        %396 = vst [vmem:[#allocation3 + $0x3c] sm:$0x1] %v395
        %v397 = vld [vmem:[#allocation3 + $0x44] sm:$0x1]
        %v398 = vsel %vm307, 0, %v397
        %399 = vst [vmem:[#allocation3 + $0x44] sm:$0x1] %v398
        %v400 = vld [vmem:[#allocation3 + $0x4c] sm:$0x1]
        %v401 = vsel %vm307, 0, %v400
        %402 = vst [vmem:[#allocation3 + $0x4c] sm:$0x1] %v401
        %v403 = vld [vmem:[%s259] sm:$0xf]
        %v404 = vld [vmem:[%s259 + $0x4] sm:$0xf]
        %v405 = vld [vmem:[%s259 + $0x8] sm:$0xf]
        %v406 = vld [vmem:[%s259 + $0xc] sm:$0xf]
        %v407 = vld [vmem:[%s259 + $0x10] sm:$0xf]
        %v408 = vld [vmem:[%s259 + $0x14] sm:$0xf]
        %v409 = vld [vmem:[%s259 + $0x18] sm:$0xf]
        %v410 = vld [vmem:[%s259 + $0x1c] sm:$0xf]
        %v411 = vld [vmem:[#allocation4] sm:$0xf]
        %v412 = vld [vmem:[#allocation4 + $0x4] sm:$0xf]
        %v413 = vld [vmem:[#allocation4 + $0x8] sm:$0xf]
        %v414 = vld [vmem:[#allocation4 + $0xc] sm:$0xf]
        %v423 = vunpack.c.l.b16 %v403
        %v424 = vunpack.c.l.b16 %v404
        %v425 = vunpack.c.l.b16 %v405
        %v426 = vunpack.c.l.b16 %v406
        %v427 = vunpack.c.l.b16 %v407
        %v428 = vunpack.c.l.b16 %v408
        %v429 = vunpack.c.l.b16 %v409
        %v430 = vunpack.c.l.b16 %v410
        %v431 = vpack.c.b16 %v424, %v423
        %v432 = vpack.c.b16 %v426, %v425
        %v433 = vpack.c.b16 %v428, %v427
        %v434 = vpack.c.b16 %v430, %v429
        %v439 = vunpack.c.l.b16 %v411
        %v440 = vunpack.c.l.b16 %v412
        %v441 = vunpack.c.l.b16 %v413
        %v442 = vunpack.c.l.b16 %v414
        %v443 = vpack.c.b16 %v440, %v439
        %v444 = vpack.c.b16 %v442, %v441
        %vm447 = vcmask 261120
        %v449 = vsel %vm447, %v431, 0
        %v452 = vsel %vm447, %v432, 0
        %v455 = vsel %vm447, %v433, 0
        %v458 = vsel %vm447, %v434, 0
        %460 = vmatprep.subr.bf16.mxu0 0
        %461 = vmatpush1.bf16.msra.mxu0 %v443
        %462 = vmatprep.subr.bf16.mxu0 0
        %463 = vmatpush1.bf16.msra.mxu0 %v444
        %464 = vmatprep.subr.bf16.mxu0 0
        %465 = vmatpush1.bf16.msra.mxu0 0
        %466 = vmatprep.subr.bf16.mxu0 0
        %467 = vmatpush1.bf16.msra.mxu0 0
        %468 = vmatprep.subr.bf16.mxu0 0
        %469 = vmatpush1.bf16.msra.mxu0 0
        %470 = vmatprep.subr.bf16.mxu0 0
        %471 = vmatpush1.bf16.msra.mxu0 0
        %472 = vmatprep.subr.bf16.mxu0 0
        %473 = vmatpush1.bf16.msra.mxu0 0
        %474 = vmatprep.subr.bf16.mxu0 0
        %475 = vmatpush1.bf16.msra.mxu0 0
        %476 = vmatprep.subr.bf16.mxu0 0
        %477 = vmatpush1.bf16.msra.mxu0 0
        %478 = vmatprep.subr.bf16.mxu0 0
        %479 = vmatpush1.bf16.msra.mxu0 0
        %480 = vmatprep.subr.bf16.mxu0 0
        %481 = vmatpush1.bf16.msra.mxu0 0
        %482 = vmatprep.subr.bf16.mxu0 0
        %483 = vmatpush1.bf16.msra.mxu0 0
        %484 = vmatprep.subr.bf16.mxu0 0
        %485 = vmatpush1.bf16.msra.mxu0 0
        %486 = vmatprep.subr.bf16.mxu0 0
        %487 = vmatpush1.bf16.msra.mxu0 0
        %488 = vmatprep.subr.bf16.mxu0 0
        %489 = vmatpush1.bf16.msra.mxu0 0
        %490 = vmatprep.subr.bf16.mxu0 0
        %491 = vmatpush1.bf16.msra.mxu0 0
        %492 = vmatprep.mubr.bf16.mxu0 0
        %493 = vmatmul.mubr.bf16.gmra.mrb[0].mxu0 %v449
        %v494 = vpop.f32.mrb[0].mxu0
        %v495 = vadd.f32 0.0, %v494
        %v496 = vpop.f32.mrb[0].mxu0
        %v497 = vpop.f32.mrb[0].mxu0
        %v498 = vadd.f32 0.0, %v497
        %v499 = vpop.f32.mrb[0].mxu0
        %500 = vmatprep.mubr.bf16.mxu0 0
        %501 = vmatmul.mubr.bf16.gmra.mrb[0].mxu0 %v452
        %v502 = vpop.f32.mrb[0].mxu0
        %v503 = vadd.f32 0.0, %v502
        %v504 = vpop.f32.mrb[0].mxu0
        %v505 = vpop.f32.mrb[0].mxu0
        %v506 = vadd.f32 0.0, %v505
        %v507 = vpop.f32.mrb[0].mxu0
        %508 = vmatprep.mubr.bf16.mxu0 0
        %509 = vmatmul.mubr.bf16.gmra.mrb[0].mxu0 %v455
        %v510 = vpop.f32.mrb[0].mxu0
        %v511 = vadd.f32 0.0, %v510
        %v512 = vpop.f32.mrb[0].mxu0
        %v513 = vpop.f32.mrb[0].mxu0
        %v514 = vadd.f32 0.0, %v513
        %v515 = vpop.f32.mrb[0].mxu0
        %516 = vmatprep.mubr.bf16.mxu0 0
        %517 = vmatmul.mubr.bf16.gmra.mrb[0].mxu0 %v458
        %v518 = vpop.f32.mrb[0].mxu0
        %v519 = vadd.f32 0.0, %v518
        %v520 = vpop.f32.mrb[0].mxu0
        %v521 = vpop.f32.mrb[0].mxu0
        %v522 = vadd.f32 0.0, %v521
        %v523 = vpop.f32.mrb[0].mxu0
        %524 = vdwg.mxu0
        %v525 = vld [vmem:[#allocation6] sm:$0x1]
        %v526 = vld [vmem:[#allocation8] sm:$0x1]
        %v527 = vlaneseq
        %v528 = vshrl.u32 %v527, 7
        %v529 = vsub.s32 0, %v528
        %v530 = vrot.slane %v525, %v529
        %v531 = vmul.f32 %v495, %v530
        %v532 = vmul.f32 %v498, %v530
        %v533 = vmul.f32 %v503, %v530
        %v534 = vmul.f32 %v506, %v530
        %v535 = vmul.f32 %v511, %v530
        %v536 = vmul.f32 %v514, %v530
        %v537 = vmul.f32 %v519, %v530
        %v538 = vmul.f32 %v522, %v530
        %v539 = vlaneseq
        %v540 = vshrl.u32 %v539, 7
        %v541 = vsub.s32 0, %v540
        %v542 = vrot.slane %v526, %v541
        %v543 = vadd.f32 %v531, %v542
        %v544 = vadd.f32 %v532, %v542
        %v545 = vadd.f32 %v533, %v542
        %v546 = vadd.f32 %v534, %v542
        %v547 = vadd.f32 %v535, %v542
        %v548 = vadd.f32 %v536, %v542
        %v549 = vadd.f32 %v537, %v542
        %v550 = vadd.f32 %v538, %v542
        %vm551 = vcmp.ge.f32.partialorder %v543, 0.0
        %vm552 = vcmp.ge.f32.partialorder %v544, 0.0
        %vm553 = vcmp.ge.f32.partialorder %v545, 0.0
        %vm554 = vcmp.ge.f32.partialorder %v546, 0.0
        %vm555 = vcmp.ge.f32.partialorder %v547, 0.0
        %vm556 = vcmp.ge.f32.partialorder %v548, 0.0
        %vm557 = vcmp.ge.f32.partialorder %v549, 0.0
        %vm558 = vcmp.ge.f32.partialorder %v550, 0.0
        %v559 = vmul.f32 %v543, 0.1
        %v560 = vmul.f32 %v544, 0.1
        %v561 = vmul.f32 %v545, 0.1
        %v562 = vmul.f32 %v546, 0.1
        %v563 = vmul.f32 %v547, 0.1
        %v564 = vmul.f32 %v548, 0.1
        %v565 = vmul.f32 %v549, 0.1
        %v566 = vmul.f32 %v550, 0.1
        %v567 = vsel %vm551, %v543, %v559
        %v568 = vsel %vm552, %v544, %v560
        %v569 = vsel %vm553, %v545, %v561
        %v570 = vsel %vm554, %v546, %v562
        %v571 = vsel %vm555, %v547, %v563
        %v572 = vsel %vm556, %v548, %v564
        %v573 = vsel %vm557, %v549, %v565
        %v574 = vsel %vm558, %v550, %v566
        %v575 = vpack.c.bf16 %v567, %v567
        %v576 = vpack.c.bf16 %v568, %v568
        %v577 = vpack.c.bf16 %v569, %v569
        %v578 = vpack.c.bf16 %v570, %v570
        %v579 = vpack.c.bf16 %v571, %v571
        %v580 = vpack.c.bf16 %v572, %v572
        %v581 = vpack.c.bf16 %v573, %v573
        %v582 = vpack.c.bf16 %v574, %v574
        %v591 = vunpack.c.l.b16 %v575
        %v592 = vunpack.c.l.b16 %v576
        %v593 = vunpack.c.l.b16 %v577
        %v594 = vunpack.c.l.b16 %v578
        %v595 = vunpack.c.l.b16 %v579
        %v596 = vunpack.c.l.b16 %v580
        %v597 = vunpack.c.l.b16 %v581
        %v598 = vunpack.c.l.b16 %v582
        %v599 = vpack.c.b16 %v591, %v591
        %v600 = vpack.c.b16 %v592, %v592
        %v601 = vpack.c.b16 %v593, %v593
        %v602 = vpack.c.b16 %v594, %v594
        %v603 = vpack.c.b16 %v595, %v595
        %v604 = vpack.c.b16 %v596, %v596
        %v605 = vpack.c.b16 %v597, %v597
        %v606 = vpack.c.b16 %v598, %v598
        %v608 = vshrl.u32 %v599, 16
        %v610 = vrot.slane %v608, 7
        %v611 = vshll.u32 %v599, 16
        %v613 = vor.u32 %v610, %v611
        %v614 = vrot.slane %v610, 4
        %v616 = vshrl.u32 %v600, 16
        %v618 = vrot.slane %v616, 7
        %v619 = vshll.u32 %v600, 16
        %v621 = vor.u32 %v618, %v619
        %v622 = vrot.slane %v618, 4
        %v624 = vshrl.u32 %v601, 16
        %v626 = vrot.slane %v624, 7
        %v627 = vshll.u32 %v601, 16
        %v629 = vor.u32 %v626, %v627
        %v630 = vrot.slane %v626, 4
        %v632 = vshrl.u32 %v602, 16
        %v634 = vrot.slane %v632, 7
        %v635 = vshll.u32 %v602, 16
        %v637 = vor.u32 %v634, %v635
        %v638 = vrot.slane %v634, 4
        %v640 = vshrl.u32 %v603, 16
        %v642 = vrot.slane %v640, 7
        %v643 = vshll.u32 %v603, 16
        %v645 = vor.u32 %v642, %v643
        %v646 = vrot.slane %v642, 4
        %v648 = vshrl.u32 %v604, 16
        %v650 = vrot.slane %v648, 7
        %v651 = vshll.u32 %v604, 16
        %v653 = vor.u32 %v650, %v651
        %v654 = vrot.slane %v650, 4
        %v656 = vshrl.u32 %v605, 16
        %v658 = vrot.slane %v656, 7
        %v659 = vshll.u32 %v605, 16
        %v661 = vor.u32 %v658, %v659
        %v662 = vrot.slane %v658, 4
        %v664 = vshrl.u32 %v606, 16
        %v666 = vrot.slane %v664, 7
        %v667 = vshll.u32 %v606, 16
        %v669 = vor.u32 %v666, %v667
        %v670 = vrot.slane %v666, 4
        %s687 = scalar_lea.vmem [#allocation2], 8
        %vm688 = vcmask 519168
        %vm689 = vmand %vm688, %vm306
        %v690 = vld [vmem:[%s687] sm:$0xf]
        %v691 = vsel %vm689, %v613, %v690
        %692 = vst [vmem:[%s687] sm:$0xf] %v691
        %v693 = vld [vmem:[%s687 + $0x4] sm:$0x1]
        %v694 = vsel %vm275, %v614, %v693
        %695 = vst [vmem:[%s687 + $0x4] sm:$0x1] %v694
        %v696 = vld [vmem:[%s687 + $0x8] sm:$0xf]
        %v697 = vsel %vm689, %v621, %v696
        %698 = vst [vmem:[%s687 + $0x8] sm:$0xf] %v697
        %v699 = vld [vmem:[%s687 + $0xc] sm:$0x1]
        %v700 = vsel %vm275, %v622, %v699
        %701 = vst [vmem:[%s687 + $0xc] sm:$0x1] %v700
        %v702 = vld [vmem:[%s687 + $0x10] sm:$0xf]
        %v703 = vsel %vm689, %v629, %v702
        %704 = vst [vmem:[%s687 + $0x10] sm:$0xf] %v703
        %v705 = vld [vmem:[%s687 + $0x14] sm:$0x1]
        %v706 = vsel %vm275, %v630, %v705
        %707 = vst [vmem:[%s687 + $0x14] sm:$0x1] %v706
        %v708 = vld [vmem:[%s687 + $0x18] sm:$0xf]
        %v709 = vsel %vm689, %v637, %v708
        %710 = vst [vmem:[%s687 + $0x18] sm:$0xf] %v709
        %v711 = vld [vmem:[%s687 + $0x1c] sm:$0x1]
        %v712 = vsel %vm275, %v638, %v711
        %713 = vst [vmem:[%s687 + $0x1c] sm:$0x1] %v712
        %v714 = vld [vmem:[%s687 + $0x20] sm:$0xf]
        %v715 = vsel %vm689, %v645, %v714
        %716 = vst [vmem:[%s687 + $0x20] sm:$0xf] %v715
        %v717 = vld [vmem:[%s687 + $0x24] sm:$0x1]
        %v718 = vsel %vm275, %v646, %v717
        %719 = vst [vmem:[%s687 + $0x24] sm:$0x1] %v718
        %v720 = vld [vmem:[%s687 + $0x28] sm:$0xf]
        %v721 = vsel %vm689, %v653, %v720
        %722 = vst [vmem:[%s687 + $0x28] sm:$0xf] %v721
        %v723 = vld [vmem:[%s687 + $0x2c] sm:$0x1]
        %v724 = vsel %vm275, %v654, %v723
        %725 = vst [vmem:[%s687 + $0x2c] sm:$0x1] %v724
        %v726 = vld [vmem:[%s687 + $0x30] sm:$0xf]
        %v727 = vsel %vm689, %v661, %v726
        %728 = vst [vmem:[%s687 + $0x30] sm:$0xf] %v727
        %v729 = vld [vmem:[%s687 + $0x34] sm:$0x1]
        %v730 = vsel %vm275, %v662, %v729
        %731 = vst [vmem:[%s687 + $0x34] sm:$0x1] %v730
        %v732 = vld [vmem:[%s687 + $0x38] sm:$0xf]
        %v733 = vsel %vm689, %v669, %v732
        %734 = vst [vmem:[%s687 + $0x38] sm:$0xf] %v733
        %v735 = vld [vmem:[%s687 + $0x3c] sm:$0x1]
        %v736 = vsel %vm275, %v670, %v735
        %737 = vst [vmem:[%s687 + $0x3c] sm:$0x1] %v736
        %v738 = vld [vmem:[#allocation2] sm:$0xf]
        %v739 = vld [vmem:[#allocation2 + $0x4] sm:$0x1]
        %v740 = vld [vmem:[#allocation2 + $0x8] sm:$0xf]
        %v741 = vld [vmem:[#allocation2 + $0xc] sm:$0x1]
        %v742 = vld [vmem:[#allocation2 + $0x10] sm:$0xf]
        %v743 = vld [vmem:[#allocation2 + $0x14] sm:$0x1]
        %v744 = vld [vmem:[#allocation2 + $0x18] sm:$0xf]
        %v745 = vld [vmem:[#allocation2 + $0x1c] sm:$0x1]
        %v746 = vld [vmem:[#allocation2 + $0x20] sm:$0xf]
        %v747 = vld [vmem:[#allocation2 + $0x24] sm:$0x1]
        %v748 = vld [vmem:[#allocation2 + $0x28] sm:$0xf]
        %v749 = vld [vmem:[#allocation2 + $0x2c] sm:$0x1]
        %v750 = vld [vmem:[#allocation2 + $0x30] sm:$0xf]
        %v751 = vld [vmem:[#allocation2 + $0x34] sm:$0x1]
        %v752 = vld [vmem:[#allocation2 + $0x38] sm:$0xf]
        %v753 = vld [vmem:[#allocation2 + $0x3c] sm:$0x1]
        %v770 = vunpack.c.l.b16 %v738
        %v771 = vunpack.c.l.b16 %v739
        %v772 = vunpack.c.l.b16 %v740
        %v773 = vunpack.c.l.b16 %v741
        %v774 = vunpack.c.l.b16 %v742
        %v775 = vunpack.c.l.b16 %v743
        %v776 = vunpack.c.l.b16 %v744
        %v777 = vunpack.c.l.b16 %v745
        %v778 = vunpack.c.l.b16 %v746
        %v779 = vunpack.c.l.b16 %v747
        %v780 = vunpack.c.l.b16 %v748
        %v781 = vunpack.c.l.b16 %v749
        %v782 = vunpack.c.l.b16 %v750
        %v783 = vunpack.c.l.b16 %v751
        %v784 = vunpack.c.l.b16 %v752
        %v785 = vunpack.c.l.b16 %v753
        %v786 = vpack.c.b16 %v771, %v770
        %v787 = vpack.c.b16 %v773, %v772
        %v788 = vpack.c.b16 %v775, %v774
        %v789 = vpack.c.b16 %v777, %v776
        %v790 = vpack.c.b16 %v779, %v778
        %v791 = vpack.c.b16 %v781, %v780
        %v792 = vpack.c.b16 %v783, %v782
        %v793 = vpack.c.b16 %v785, %v784
        %v795 = vshrl.u32 %v786, 16
        %v797 = vshll.u32 %v786, 16
        %v799 = vrot.slane %v797, 1
        %v800 = vor.u32 %v795, %v799
        %v802 = vshrl.u32 %v787, 16
        %v804 = vshll.u32 %v787, 16
        %v806 = vrot.slane %v804, 1
        %v807 = vor.u32 %v802, %v806
        %v809 = vshrl.u32 %v788, 16
        %v811 = vshll.u32 %v788, 16
        %v813 = vrot.slane %v811, 1
        %v814 = vor.u32 %v809, %v813
        %v816 = vshrl.u32 %v789, 16
        %v818 = vshll.u32 %v789, 16
        %v820 = vrot.slane %v818, 1
        %v821 = vor.u32 %v816, %v820
        %v823 = vshrl.u32 %v790, 16
        %v825 = vshll.u32 %v790, 16
        %v827 = vrot.slane %v825, 1
        %v828 = vor.u32 %v823, %v827
        %v830 = vshrl.u32 %v791, 16
        %v832 = vshll.u32 %v791, 16
        %v834 = vrot.slane %v832, 1
        %v835 = vor.u32 %v830, %v834
        %v837 = vshrl.u32 %v792, 16
        %v839 = vshll.u32 %v792, 16
        %v841 = vrot.slane %v839, 1
        %v842 = vor.u32 %v837, %v841
        %v844 = vshrl.u32 %v793, 16
        %v846 = vshll.u32 %v793, 16
        %v848 = vrot.slane %v846, 1
        %v849 = vor.u32 %v844, %v848
        %850 = vrot.lane.b32.xlu0 %v800, 64
        %v851 = vpop.permute.xlu0 %850
        %852 = vrot.lane.b32.xlu0 %v807, 64
        %v853 = vpop.permute.xlu0 %852
        %854 = vrot.lane.b32.xlu0 %v814, 64
        %v855 = vpop.permute.xlu0 %854
        %856 = vrot.lane.b32.xlu0 %v821, 64
        %v857 = vpop.permute.xlu0 %856
        %858 = vrot.lane.b32.xlu0 %v828, 64
        %v859 = vpop.permute.xlu0 %858
        %860 = vrot.lane.b32.xlu0 %v835, 64
        %v861 = vpop.permute.xlu0 %860
        %862 = vrot.lane.b32.xlu0 %v842, 64
        %v863 = vpop.permute.xlu0 %862
        %864 = vrot.lane.b32.xlu0 %v849, 64
        %v865 = vpop.permute.xlu0 %864
        %v866 = vrot.slane %v786, 1
        %v867 = vrot.slane %v787, 1
        %v868 = vrot.slane %v788, 1
        %v869 = vrot.slane %v789, 1
        %v870 = vrot.slane %v790, 1
        %v871 = vrot.slane %v791, 1
        %v872 = vrot.slane %v792, 1
        %v873 = vrot.slane %v793, 1
        %vm874 = vcmask 523264
        %v877 = vsel %vm874, %v738, %v851
        %v880 = vsel %vm874, %v740, %v853
        %v883 = vsel %vm874, %v742, %v855
        %v886 = vsel %vm874, %v744, %v857
        %v889 = vsel %vm874, %v746, %v859
        %v892 = vsel %vm874, %v748, %v861
        %v895 = vsel %vm874, %v750, %v863
        %v898 = vsel %vm874, %v752, %v865
        %v907 = vunpack.c.l.b16 %v877
        %v908 = vunpack.c.l.b16 %v866
        %v909 = vunpack.c.l.b16 %v880
        %v910 = vunpack.c.l.b16 %v867
        %v911 = vunpack.c.l.b16 %v883
        %v912 = vunpack.c.l.b16 %v868
        %v913 = vunpack.c.l.b16 %v886
        %v914 = vunpack.c.l.b16 %v869
        %v915 = vunpack.c.l.b16 %v889
        %v916 = vunpack.c.l.b16 %v870
        %v917 = vunpack.c.l.b16 %v892
        %v918 = vunpack.c.l.b16 %v871
        %v919 = vunpack.c.l.b16 %v895
        %v920 = vunpack.c.l.b16 %v872
        %v921 = vunpack.c.l.b16 %v898
        %v922 = vunpack.c.l.b16 %v873
        %v923 = vld [vmem:[%s2] sm:$0xf]
        %v924 = vld [vmem:[%s2 + $0x4] sm:$0xf]
        %v925 = vld [vmem:[%s2 + $0x8] sm:$0xf]
        %v926 = vld [vmem:[%s2 + $0xc] sm:$0xf]
        %v927 = vld [vmem:[%s2 + $0x10] sm:$0xf]
        %v928 = vld [vmem:[%s2 + $0x14] sm:$0xf]
        %v929 = vld [vmem:[%s2 + $0x18] sm:$0xf]
        %v930 = vld [vmem:[%s2 + $0x1c] sm:$0xf]
        %v931 = vld [vmem:[%s2 + $0x20] sm:$0xf]
        %v932 = vld [vmem:[%s2 + $0x24] sm:$0xf]
        %v933 = vld [vmem:[%s2 + $0x28] sm:$0xf]
        %v934 = vld [vmem:[%s2 + $0x2c] sm:$0xf]
        %v935 = vld [vmem:[%s2 + $0x30] sm:$0xf]
        %v936 = vld [vmem:[%s2 + $0x34] sm:$0xf]
        %v937 = vld [vmem:[%s2 + $0x38] sm:$0xf]
        %v938 = vld [vmem:[%s2 + $0x3c] sm:$0xf]
        %v939 = vld [vmem:[%s2 + $0x40] sm:$0xf]
        %v940 = vld [vmem:[%s2 + $0x44] sm:$0xf]
        %v941 = vld [vmem:[%s2 + $0x48] sm:$0xf]
        %v942 = vld [vmem:[%s2 + $0x4c] sm:$0xf]
        %v943 = vld [vmem:[%s2 + $0x50] sm:$0xf]
        %v944 = vld [vmem:[%s2 + $0x54] sm:$0xf]
        %v945 = vld [vmem:[%s2 + $0x58] sm:$0xf]
        %v946 = vld [vmem:[%s2 + $0x5c] sm:$0xf]
        %v947 = vld [vmem:[%s687] sm:$0xf]
        %v948 = vld [vmem:[%s687 + $0x4] sm:$0x1]
        %v949 = vld [vmem:[%s687 + $0x8] sm:$0xf]
        %v950 = vld [vmem:[%s687 + $0xc] sm:$0x1]
        %v951 = vld [vmem:[%s687 + $0x10] sm:$0xf]
        %v952 = vld [vmem:[%s687 + $0x14] sm:$0x1]
        %v953 = vld [vmem:[%s687 + $0x18] sm:$0xf]
        %v954 = vld [vmem:[%s687 + $0x1c] sm:$0x1]
        %v955 = vld [vmem:[%s687 + $0x20] sm:$0xf]
        %v956 = vld [vmem:[%s687 + $0x24] sm:$0x1]
        %v957 = vld [vmem:[%s687 + $0x28] sm:$0xf]
        %v958 = vld [vmem:[%s687 + $0x2c] sm:$0x1]
        %v959 = vld [vmem:[%s687 + $0x30] sm:$0xf]
        %v960 = vld [vmem:[%s687 + $0x34] sm:$0x1]
        %v961 = vld [vmem:[%s687 + $0x38] sm:$0xf]
        %v962 = vld [vmem:[%s687 + $0x3c] sm:$0x1]
        %v979 = vunpack.c.l.b16 %v947
        %v980 = vunpack.c.l.b16 %v948
        %v981 = vunpack.c.l.b16 %v949
        %v982 = vunpack.c.l.b16 %v950
        %v983 = vunpack.c.l.b16 %v951
        %v984 = vunpack.c.l.b16 %v952
        %v985 = vunpack.c.l.b16 %v953
        %v986 = vunpack.c.l.b16 %v954
        %v987 = vunpack.c.l.b16 %v955
        %v988 = vunpack.c.l.b16 %v956
        %v989 = vunpack.c.l.b16 %v957
        %v990 = vunpack.c.l.b16 %v958
        %v991 = vunpack.c.l.b16 %v959
        %v992 = vunpack.c.l.b16 %v960
        %v993 = vunpack.c.l.b16 %v961
        %v994 = vunpack.c.l.b16 %v962
        %v995 = vpack.c.b16 %v980, %v979
        %v996 = vpack.c.b16 %v982, %v981
        %v997 = vpack.c.b16 %v984, %v983
        %v998 = vpack.c.b16 %v986, %v985
        %v999 = vpack.c.b16 %v988, %v987
        %v1000 = vpack.c.b16 %v990, %v989
        %v1001 = vpack.c.b16 %v992, %v991
        %v1002 = vpack.c.b16 %v994, %v993
        %v1004 = vshrl.u32 %v995, 16
        %v1006 = vshll.u32 %v995, 16
        %v1008 = vrot.slane %v1006, 1
        %v1009 = vor.u32 %v1004, %v1008
        %v1011 = vshrl.u32 %v996, 16
        %v1013 = vshll.u32 %v996, 16
        %v1015 = vrot.slane %v1013, 1
        %v1016 = vor.u32 %v1011, %v1015
        %v1018 = vshrl.u32 %v997, 16
        %v1020 = vshll.u32 %v997, 16
        %v1022 = vrot.slane %v1020, 1
        %v1023 = vor.u32 %v1018, %v1022
        %v1025 = vshrl.u32 %v998, 16
        %v1027 = vshll.u32 %v998, 16
        %v1029 = vrot.slane %v1027, 1
        %v1030 = vor.u32 %v1025, %v1029
        %v1032 = vshrl.u32 %v999, 16
        %v1034 = vshll.u32 %v999, 16
        %v1036 = vrot.slane %v1034, 1
        %v1037 = vor.u32 %v1032, %v1036
        %v1039 = vshrl.u32 %v1000, 16
        %v1041 = vshll.u32 %v1000, 16
        %v1043 = vrot.slane %v1041, 1
        %v1044 = vor.u32 %v1039, %v1043
        %v1046 = vshrl.u32 %v1001, 16
        %v1048 = vshll.u32 %v1001, 16
        %v1050 = vrot.slane %v1048, 1
        %v1051 = vor.u32 %v1046, %v1050
        %v1053 = vshrl.u32 %v1002, 16
        %v1055 = vshll.u32 %v1002, 16
        %v1057 = vrot.slane %v1055, 1
        %v1058 = vor.u32 %v1053, %v1057
        %1059 = vrot.lane.b32.xlu0 %v1009, 64
        %v1060 = vpop.permute.xlu0 %1059
        %1061 = vrot.lane.b32.xlu0 %v1016, 64
        %v1062 = vpop.permute.xlu0 %1061
        %1063 = vrot.lane.b32.xlu0 %v1023, 64
        %v1064 = vpop.permute.xlu0 %1063
        %1065 = vrot.lane.b32.xlu0 %v1030, 64
        %v1066 = vpop.permute.xlu0 %1065
        %1067 = vrot.lane.b32.xlu0 %v1037, 64
        %v1068 = vpop.permute.xlu0 %1067
        %1069 = vrot.lane.b32.xlu0 %v1044, 64
        %v1070 = vpop.permute.xlu0 %1069
        %1071 = vrot.lane.b32.xlu0 %v1051, 64
        %v1072 = vpop.permute.xlu0 %1071
        %1073 = vrot.lane.b32.xlu0 %v1058, 64
        %v1074 = vpop.permute.xlu0 %1073
        %v1075 = vrot.slane %v995, 1
        %v1076 = vrot.slane %v996, 1
        %v1077 = vrot.slane %v997, 1
        %v1078 = vrot.slane %v998, 1
        %v1079 = vrot.slane %v999, 1
        %v1080 = vrot.slane %v1000, 1
        %v1081 = vrot.slane %v1001, 1
        %v1082 = vrot.slane %v1002, 1
        %v1085 = vsel %vm874, %v947, %v1060
        %v1088 = vsel %vm874, %v949, %v1062
        %v1091 = vsel %vm874, %v951, %v1064
        %v1094 = vsel %vm874, %v953, %v1066
        %v1097 = vsel %vm874, %v955, %v1068
        %v1100 = vsel %vm874, %v957, %v1070
        %v1103 = vsel %vm874, %v959, %v1072
        %v1106 = vsel %vm874, %v961, %v1074
        %v1115 = vunpack.c.l.b16 %v1085
        %v1116 = vunpack.c.l.b16 %v1075
        %v1117 = vunpack.c.l.b16 %v1088
        %v1118 = vunpack.c.l.b16 %v1076
        %v1119 = vunpack.c.l.b16 %v1091
        %v1120 = vunpack.c.l.b16 %v1077
        %v1121 = vunpack.c.l.b16 %v1094
        %v1122 = vunpack.c.l.b16 %v1078
        %v1123 = vunpack.c.l.b16 %v1097
        %v1124 = vunpack.c.l.b16 %v1079
        %v1125 = vunpack.c.l.b16 %v1100
        %v1126 = vunpack.c.l.b16 %v1080
        %v1127 = vunpack.c.l.b16 %v1103
        %v1128 = vunpack.c.l.b16 %v1081
        %v1129 = vunpack.c.l.b16 %v1106
        %v1130 = vunpack.c.l.b16 %v1082
        %s1131 = scalar_lea.vmem %s2, 96
        %v1132 = vld [vmem:[%s1131] sm:$0xf]
        %v1133 = vld [vmem:[%s1131 + $0x4] sm:$0xf]
        %v1134 = vld [vmem:[%s1131 + $0x8] sm:$0xf]
        %v1135 = vld [vmem:[%s1131 + $0xc] sm:$0xf]
        %v1136 = vld [vmem:[%s1131 + $0x10] sm:$0xf]
        %v1137 = vld [vmem:[%s1131 + $0x14] sm:$0xf]
        %v1138 = vld [vmem:[%s1131 + $0x18] sm:$0xf]
        %v1139 = vld [vmem:[%s1131 + $0x1c] sm:$0xf]
        %v1140 = vld [vmem:[%s1131 + $0x20] sm:$0xf]
        %v1141 = vld [vmem:[%s1131 + $0x24] sm:$0xf]
        %v1142 = vld [vmem:[%s1131 + $0x28] sm:$0xf]
        %v1143 = vld [vmem:[%s1131 + $0x2c] sm:$0xf]
        %v1144 = vld [vmem:[%s1131 + $0x30] sm:$0xf]
        %v1145 = vld [vmem:[%s1131 + $0x34] sm:$0xf]
        %v1146 = vld [vmem:[%s1131 + $0x38] sm:$0xf]
        %v1147 = vld [vmem:[%s1131 + $0x3c] sm:$0xf]
        %v1148 = vld [vmem:[%s1131 + $0x40] sm:$0xf]
        %v1149 = vld [vmem:[%s1131 + $0x44] sm:$0xf]
        %v1150 = vld [vmem:[%s1131 + $0x48] sm:$0xf]
        %v1151 = vld [vmem:[%s1131 + $0x4c] sm:$0xf]
        %v1152 = vld [vmem:[%s1131 + $0x50] sm:$0xf]
        %v1153 = vld [vmem:[%s1131 + $0x54] sm:$0xf]
        %v1154 = vld [vmem:[%s1131 + $0x58] sm:$0xf]
        %v1155 = vld [vmem:[%s1131 + $0x5c] sm:$0xf]
        %v1156 = vpack.c.b16 %v1117, %v1115
        %v1157 = vpack.c.b16 %v1118, %v1116
        %v1158 = vpack.c.b16 %v1121, %v1119
        %v1159 = vpack.c.b16 %v1122, %v1120
        %v1160 = vpack.c.b16 %v1125, %v1123
        %v1161 = vpack.c.b16 %v1126, %v1124
        %v1162 = vpack.c.b16 %v1129, %v1127
        %v1163 = vpack.c.b16 %v1130, %v1128
        %v1192 = vunpack.c.l.b16 %v1132
        %v1193 = vunpack.c.l.b16 %v1133
        %v1194 = vunpack.c.l.b16 %v1134
        %v1195 = vunpack.c.l.b16 %v1135
        %v1196 = vunpack.c.l.b16 %v1136
        %v1197 = vunpack.c.l.b16 %v1137
        %v1198 = vunpack.c.l.b16 %v1138
        %v1199 = vunpack.c.l.b16 %v1139
        %v1200 = vunpack.c.l.b16 %v1140
        %v1201 = vunpack.c.l.b16 %v1141
        %v1202 = vunpack.c.l.b16 %v1142
        %v1203 = vunpack.c.l.b16 %v1143
        %v1204 = vunpack.c.l.b16 %v1144
        %v1205 = vunpack.c.l.b16 %v1145
        %v1206 = vunpack.c.l.b16 %v1146
        %v1207 = vunpack.c.l.b16 %v1147
        %v1208 = vunpack.c.l.b16 %v1148
        %v1209 = vunpack.c.l.b16 %v1149
        %v1210 = vunpack.c.l.b16 %v1150
        %v1211 = vunpack.c.l.b16 %v1151
        %v1212 = vunpack.c.l.b16 %v1152
        %v1213 = vunpack.c.l.b16 %v1153
        %v1214 = vunpack.c.l.b16 %v1154
        %v1215 = vunpack.c.l.b16 %v1155
        %v1216 = vpack.c.b16 %v1193, %v1192
        %v1217 = vpack.c.b16 %v1195, %v1194
        %v1218 = vpack.c.b16 %v1197, %v1196
        %v1219 = vpack.c.b16 %v1199, %v1198
        %v1220 = vpack.c.b16 %v1201, %v1200
        %v1221 = vpack.c.b16 %v1203, %v1202
        %v1222 = vpack.c.b16 %v1205, %v1204
        %v1223 = vpack.c.b16 %v1207, %v1206
        %v1224 = vpack.c.b16 %v1209, %v1208
        %v1225 = vpack.c.b16 %v1211, %v1210
        %v1226 = vpack.c.b16 %v1213, %v1212
        %v1227 = vpack.c.b16 %v1215, %v1214
        %v1241 = vsel %vm874, %v1157, 0
        %v1244 = vsel %vm874, %v1159, 0
        %v1247 = vsel %vm874, %v1161, 0
        %v1250 = vsel %vm874, %v1163, 0
        %1252 = vmatprep.subr.bf16.mxu0 0
        %1253 = vmatpush1.bf16.msra.mxu0 %v1216
        %1254 = vmatprep.subr.bf16.mxu0 0
        %1255 = vmatpush1.bf16.msra.mxu0 %v1217
        %1256 = vmatprep.subr.bf16.mxu0 0
        %1257 = vmatpush1.bf16.msra.mxu0 %v1218
        %1258 = vmatprep.subr.bf16.mxu0 0
        %1259 = vmatpush1.bf16.msra.mxu0 %v1219
        %1260 = vmatprep.subr.bf16.mxu0 0
        %1261 = vmatpush1.bf16.msra.mxu0 %v1220
        %1262 = vmatprep.subr.bf16.mxu0 0
        %1263 = vmatpush1.bf16.msra.mxu0 %v1221
        %1264 = vmatprep.subr.bf16.mxu0 0
        %1265 = vmatpush1.bf16.msra.mxu0 %v1222
        %1266 = vmatprep.subr.bf16.mxu0 0
        %1267 = vmatpush1.bf16.msra.mxu0 %v1223
        %1268 = vmatprep.subr.bf16.mxu0 0
        %1269 = vmatpush1.bf16.msra.mxu0 %v1224
        %1270 = vmatprep.subr.bf16.mxu0 0
        %1271 = vmatpush1.bf16.msra.mxu0 %v1225
        %1272 = vmatprep.subr.bf16.mxu0 0
        %1273 = vmatpush1.bf16.msra.mxu0 %v1226
        %1274 = vmatprep.subr.bf16.mxu0 0
        %1275 = vmatpush1.bf16.msra.mxu0 %v1227
        %1276 = vmatprep.subr.bf16.mxu0 0
        %1277 = vmatpush1.bf16.msra.mxu0 0
        %1278 = vmatprep.subr.bf16.mxu0 0
        %1279 = vmatpush1.bf16.msra.mxu0 0
        %1280 = vmatprep.subr.bf16.mxu0 0
        %1281 = vmatpush1.bf16.msra.mxu0 0
        %1282 = vmatprep.subr.bf16.mxu0 0
        %1283 = vmatpush1.bf16.msra.mxu0 0
        %1284 = vmatprep.mubr.bf16.mxu0 %v1241
        %1285 = vmatmul.mubr.bf16.gmra.mrb[0].mxu0 %v1156
        %v1286 = vpop.f32.mrb[0].mxu0
        %v1287 = vadd.f32 0.0, %v1286
        %v1288 = vpop.f32.mrb[0].mxu0
        %v1289 = vpop.f32.mrb[0].mxu0
        %v1290 = vadd.f32 0.0, %v1289
        %v1291 = vpop.f32.mrb[0].mxu0
        %1292 = vmatprep.mubr.bf16.mxu0 %v1244
        %1293 = vmatmul.mubr.bf16.gmra.mrb[0].mxu0 %v1158
        %v1294 = vpop.f32.mrb[0].mxu0
        %v1295 = vadd.f32 0.0, %v1294
        %v1296 = vpop.f32.mrb[0].mxu0
        %v1297 = vpop.f32.mrb[0].mxu0
        %v1298 = vadd.f32 0.0, %v1297
        %v1299 = vpop.f32.mrb[0].mxu0
        %1300 = vmatprep.mubr.bf16.mxu0 %v1247
        %1301 = vmatmul.mubr.bf16.gmra.mrb[0].mxu0 %v1160
        %v1302 = vpop.f32.mrb[0].mxu0
        %v1303 = vadd.f32 0.0, %v1302
        %v1304 = vpop.f32.mrb[0].mxu0
        %v1305 = vpop.f32.mrb[0].mxu0
        %v1306 = vadd.f32 0.0, %v1305
        %v1307 = vpop.f32.mrb[0].mxu0
        %1308 = vmatprep.mubr.bf16.mxu0 %v1250
        %1309 = vmatmul.mubr.bf16.gmra.mrb[0].mxu0 %v1162
        %v1310 = vpop.f32.mrb[0].mxu0
        %v1311 = vadd.f32 0.0, %v1310
        %v1312 = vpop.f32.mrb[0].mxu0
        %v1313 = vpop.f32.mrb[0].mxu0
        %v1314 = vadd.f32 0.0, %v1313
        %v1315 = vpop.f32.mrb[0].mxu0
        %1316 = vdwg.mxu0
        %v1317 = vpack.c.b16 %v909, %v907
        %v1318 = vpack.c.b16 %v910, %v908
        %v1319 = vpack.c.b16 %v913, %v911
        %v1320 = vpack.c.b16 %v914, %v912
        %v1321 = vpack.c.b16 %v917, %v915
        %v1322 = vpack.c.b16 %v918, %v916
        %v1323 = vpack.c.b16 %v921, %v919
        %v1324 = vpack.c.b16 %v922, %v920
        %v1353 = vunpack.c.l.b16 %v923
        %v1354 = vunpack.c.l.b16 %v924
        %v1355 = vunpack.c.l.b16 %v925
        %v1356 = vunpack.c.l.b16 %v926
        %v1357 = vunpack.c.l.b16 %v927
        %v1358 = vunpack.c.l.b16 %v928
        %v1359 = vunpack.c.l.b16 %v929
        %v1360 = vunpack.c.l.b16 %v930
        %v1361 = vunpack.c.l.b16 %v931
        %v1362 = vunpack.c.l.b16 %v932
        %v1363 = vunpack.c.l.b16 %v933
        %v1364 = vunpack.c.l.b16 %v934
        %v1365 = vunpack.c.l.b16 %v935
        %v1366 = vunpack.c.l.b16 %v936
        %v1367 = vunpack.c.l.b16 %v937
        %v1368 = vunpack.c.l.b16 %v938
        %v1369 = vunpack.c.l.b16 %v939
        %v1370 = vunpack.c.l.b16 %v940
        %v1371 = vunpack.c.l.b16 %v941
        %v1372 = vunpack.c.l.b16 %v942
        %v1373 = vunpack.c.l.b16 %v943
        %v1374 = vunpack.c.l.b16 %v944
        %v1375 = vunpack.c.l.b16 %v945
        %v1376 = vunpack.c.l.b16 %v946
        %v1377 = vpack.c.b16 %v1354, %v1353
        %v1378 = vpack.c.b16 %v1356, %v1355
        %v1379 = vpack.c.b16 %v1358, %v1357
        %v1380 = vpack.c.b16 %v1360, %v1359
        %v1381 = vpack.c.b16 %v1362, %v1361
        %v1382 = vpack.c.b16 %v1364, %v1363
        %v1383 = vpack.c.b16 %v1366, %v1365
        %v1384 = vpack.c.b16 %v1368, %v1367
        %v1385 = vpack.c.b16 %v1370, %v1369
        %v1386 = vpack.c.b16 %v1372, %v1371
        %v1387 = vpack.c.b16 %v1374, %v1373
        %v1388 = vpack.c.b16 %v1376, %v1375
        %v1402 = vsel %vm874, %v1318, 0
        %v1405 = vsel %vm874, %v1320, 0
        %v1408 = vsel %vm874, %v1322, 0
        %v1411 = vsel %vm874, %v1324, 0
        %1413 = vmatprep.subr.bf16.mxu0 0
        %1414 = vmatpush1.bf16.msra.mxu0 %v1377
        %1415 = vmatprep.subr.bf16.mxu0 0
        %1416 = vmatpush1.bf16.msra.mxu0 %v1378
        %1417 = vmatprep.subr.bf16.mxu0 0
        %1418 = vmatpush1.bf16.msra.mxu0 %v1379
        %1419 = vmatprep.subr.bf16.mxu0 0
        %1420 = vmatpush1.bf16.msra.mxu0 %v1380
        %1421 = vmatprep.subr.bf16.mxu0 0
        %1422 = vmatpush1.bf16.msra.mxu0 %v1381
        %1423 = vmatprep.subr.bf16.mxu0 0
        %1424 = vmatpush1.bf16.msra.mxu0 %v1382
        %1425 = vmatprep.subr.bf16.mxu0 0
        %1426 = vmatpush1.bf16.msra.mxu0 %v1383
        %1427 = vmatprep.subr.bf16.mxu0 0
        %1428 = vmatpush1.bf16.msra.mxu0 %v1384
        %1429 = vmatprep.subr.bf16.mxu0 0
        %1430 = vmatpush1.bf16.msra.mxu0 %v1385
        %1431 = vmatprep.subr.bf16.mxu0 0
        %1432 = vmatpush1.bf16.msra.mxu0 %v1386
        %1433 = vmatprep.subr.bf16.mxu0 0
        %1434 = vmatpush1.bf16.msra.mxu0 %v1387
        %1435 = vmatprep.subr.bf16.mxu0 0
        %1436 = vmatpush1.bf16.msra.mxu0 %v1388
        %1437 = vmatprep.subr.bf16.mxu0 0
        %1438 = vmatpush1.bf16.msra.mxu0 0
        %1439 = vmatprep.subr.bf16.mxu0 0
        %1440 = vmatpush1.bf16.msra.mxu0 0
        %1441 = vmatprep.subr.bf16.mxu0 0
        %1442 = vmatpush1.bf16.msra.mxu0 0
        %1443 = vmatprep.subr.bf16.mxu0 0
        %1444 = vmatpush1.bf16.msra.mxu0 0
        %1445 = vmatprep.mubr.bf16.mxu0 %v1402
        %1446 = vmatmul.mubr.bf16.gmra.mrb[0].mxu0 %v1317
        %v1447 = vpop.f32.mrb[0].mxu0
        %v1448 = vadd.f32 %v1287, %v1447
        %v1449 = vpop.f32.mrb[0].mxu0
        %v1450 = vpop.f32.mrb[0].mxu0
        %v1451 = vadd.f32 %v1290, %v1450
        %v1452 = vpop.f32.mrb[0].mxu0
        %1453 = vmatprep.mubr.bf16.mxu0 %v1405
        %1454 = vmatmul.mubr.bf16.gmra.mrb[0].mxu0 %v1319
        %v1455 = vpop.f32.mrb[0].mxu0
        %v1456 = vadd.f32 %v1295, %v1455
        %v1457 = vpop.f32.mrb[0].mxu0
        %v1458 = vpop.f32.mrb[0].mxu0
        %v1459 = vadd.f32 %v1298, %v1458
        %v1460 = vpop.f32.mrb[0].mxu0
        %1461 = vmatprep.mubr.bf16.mxu0 %v1408
        %1462 = vmatmul.mubr.bf16.gmra.mrb[0].mxu0 %v1321
        %v1463 = vpop.f32.mrb[0].mxu0
        %v1464 = vadd.f32 %v1303, %v1463
        %v1465 = vpop.f32.mrb[0].mxu0
        %v1466 = vpop.f32.mrb[0].mxu0
        %v1467 = vadd.f32 %v1306, %v1466
        %v1468 = vpop.f32.mrb[0].mxu0
        %1469 = vmatprep.mubr.bf16.mxu0 %v1411
        %1470 = vmatmul.mubr.bf16.gmra.mrb[0].mxu0 %v1323
        %v1471 = vpop.f32.mrb[0].mxu0
        %v1472 = vadd.f32 %v1311, %v1471
        %v1473 = vpop.f32.mrb[0].mxu0
        %v1474 = vpop.f32.mrb[0].mxu0
        %v1475 = vadd.f32 %v1314, %v1474
        %v1476 = vpop.f32.mrb[0].mxu0
        %1477 = vdwg.mxu0
        %s1478 = scalar_lea.vmem [#allocation2], 16
        %v1479 = vld [vmem:[%s1478] sm:$0xf]
        %v1480 = vld [vmem:[%s1478 + $0x4] sm:$0x1]
        %v1481 = vld [vmem:[%s1478 + $0x8] sm:$0xf]
        %v1482 = vld [vmem:[%s1478 + $0xc] sm:$0x1]
        %v1483 = vld [vmem:[%s1478 + $0x10] sm:$0xf]
        %v1484 = vld [vmem:[%s1478 + $0x14] sm:$0x1]
        %v1485 = vld [vmem:[%s1478 + $0x18] sm:$0xf]
        %v1486 = vld [vmem:[%s1478 + $0x1c] sm:$0x1]
        %v1487 = vld [vmem:[%s1478 + $0x20] sm:$0xf]
        %v1488 = vld [vmem:[%s1478 + $0x24] sm:$0x1]
        %v1489 = vld [vmem:[%s1478 + $0x28] sm:$0xf]
        %v1490 = vld [vmem:[%s1478 + $0x2c] sm:$0x1]
        %v1491 = vld [vmem:[%s1478 + $0x30] sm:$0xf]
        %v1492 = vld [vmem:[%s1478 + $0x34] sm:$0x1]
        %v1493 = vld [vmem:[%s1478 + $0x38] sm:$0xf]
        %v1494 = vld [vmem:[%s1478 + $0x3c] sm:$0x1]
        %v1511 = vunpack.c.l.b16 %v1479
        %v1512 = vunpack.c.l.b16 %v1480
        %v1513 = vunpack.c.l.b16 %v1481
        %v1514 = vunpack.c.l.b16 %v1482
        %v1515 = vunpack.c.l.b16 %v1483
        %v1516 = vunpack.c.l.b16 %v1484
        %v1517 = vunpack.c.l.b16 %v1485
        %v1518 = vunpack.c.l.b16 %v1486
        %v1519 = vunpack.c.l.b16 %v1487
        %v1520 = vunpack.c.l.b16 %v1488
        %v1521 = vunpack.c.l.b16 %v1489
        %v1522 = vunpack.c.l.b16 %v1490
        %v1523 = vunpack.c.l.b16 %v1491
        %v1524 = vunpack.c.l.b16 %v1492
        %v1525 = vunpack.c.l.b16 %v1493
        %v1526 = vunpack.c.l.b16 %v1494
        %v1527 = vpack.c.b16 %v1512, %v1511
        %v1528 = vpack.c.b16 %v1514, %v1513
        %v1529 = vpack.c.b16 %v1516, %v1515
        %v1530 = vpack.c.b16 %v1518, %v1517
        %v1531 = vpack.c.b16 %v1520, %v1519
        %v1532 = vpack.c.b16 %v1522, %v1521
        %v1533 = vpack.c.b16 %v1524, %v1523
        %v1534 = vpack.c.b16 %v1526, %v1525
        %v1536 = vshrl.u32 %v1527, 16
        %v1538 = vshll.u32 %v1527, 16
        %v1540 = vrot.slane %v1538, 1
        %v1541 = vor.u32 %v1536, %v1540
        %v1543 = vshrl.u32 %v1528, 16
        %v1545 = vshll.u32 %v1528, 16
        %v1547 = vrot.slane %v1545, 1
        %v1548 = vor.u32 %v1543, %v1547
        %v1550 = vshrl.u32 %v1529, 16
        %v1552 = vshll.u32 %v1529, 16
        %v1554 = vrot.slane %v1552, 1
        %v1555 = vor.u32 %v1550, %v1554
        %v1557 = vshrl.u32 %v1530, 16
        %v1559 = vshll.u32 %v1530, 16
        %v1561 = vrot.slane %v1559, 1
        %v1562 = vor.u32 %v1557, %v1561
        %v1564 = vshrl.u32 %v1531, 16
        %v1566 = vshll.u32 %v1531, 16
        %v1568 = vrot.slane %v1566, 1
        %v1569 = vor.u32 %v1564, %v1568
        %v1571 = vshrl.u32 %v1532, 16
        %v1573 = vshll.u32 %v1532, 16
        %v1575 = vrot.slane %v1573, 1
        %v1576 = vor.u32 %v1571, %v1575
        %v1578 = vshrl.u32 %v1533, 16
        %v1580 = vshll.u32 %v1533, 16
        %v1582 = vrot.slane %v1580, 1
        %v1583 = vor.u32 %v1578, %v1582
        %v1585 = vshrl.u32 %v1534, 16
        %v1587 = vshll.u32 %v1534, 16
        %v1589 = vrot.slane %v1587, 1
        %v1590 = vor.u32 %v1585, %v1589
        %1591 = vrot.lane.b32.xlu0 %v1541, 64
        %v1592 = vpop.permute.xlu0 %1591
        %1593 = vrot.lane.b32.xlu0 %v1548, 64
        %v1594 = vpop.permute.xlu0 %1593
        %1595 = vrot.lane.b32.xlu0 %v1555, 64
        %v1596 = vpop.permute.xlu0 %1595
        %1597 = vrot.lane.b32.xlu0 %v1562, 64
        %v1598 = vpop.permute.xlu0 %1597
        %1599 = vrot.lane.b32.xlu0 %v1569, 64
        %v1600 = vpop.permute.xlu0 %1599
        %1601 = vrot.lane.b32.xlu0 %v1576, 64
        %v1602 = vpop.permute.xlu0 %1601
        %1603 = vrot.lane.b32.xlu0 %v1583, 64
        %v1604 = vpop.permute.xlu0 %1603
        %1605 = vrot.lane.b32.xlu0 %v1590, 64
        %v1606 = vpop.permute.xlu0 %1605
        %v1607 = vrot.slane %v1527, 1
        %v1608 = vrot.slane %v1528, 1
        %v1609 = vrot.slane %v1529, 1
        %v1610 = vrot.slane %v1530, 1
        %v1611 = vrot.slane %v1531, 1
        %v1612 = vrot.slane %v1532, 1
        %v1613 = vrot.slane %v1533, 1
        %v1614 = vrot.slane %v1534, 1
        %v1617 = vsel %vm874, %v1479, %v1592
        %v1620 = vsel %vm874, %v1481, %v1594
        %v1623 = vsel %vm874, %v1483, %v1596
        %v1626 = vsel %vm874, %v1485, %v1598
        %v1629 = vsel %vm874, %v1487, %v1600
        %v1632 = vsel %vm874, %v1489, %v1602
        %v1635 = vsel %vm874, %v1491, %v1604
        %v1638 = vsel %vm874, %v1493, %v1606
        %v1647 = vunpack.c.l.b16 %v1617
        %v1648 = vunpack.c.l.b16 %v1607
        %v1649 = vunpack.c.l.b16 %v1620
        %v1650 = vunpack.c.l.b16 %v1608
        %v1651 = vunpack.c.l.b16 %v1623
        %v1652 = vunpack.c.l.b16 %v1609
        %v1653 = vunpack.c.l.b16 %v1626
        %v1654 = vunpack.c.l.b16 %v1610
        %v1655 = vunpack.c.l.b16 %v1629
        %v1656 = vunpack.c.l.b16 %v1611
        %v1657 = vunpack.c.l.b16 %v1632
        %v1658 = vunpack.c.l.b16 %v1612
        %v1659 = vunpack.c.l.b16 %v1635
        %v1660 = vunpack.c.l.b16 %v1613
        %v1661 = vunpack.c.l.b16 %v1638
        %v1662 = vunpack.c.l.b16 %v1614
        %s1663 = scalar_lea.vmem %s2, 192
        %v1664 = vld [vmem:[%s1663] sm:$0xf]
        %v1665 = vld [vmem:[%s1663 + $0x4] sm:$0xf]
        %v1666 = vld [vmem:[%s1663 + $0x8] sm:$0xf]
        %v1667 = vld [vmem:[%s1663 + $0xc] sm:$0xf]
        %v1668 = vld [vmem:[%s1663 + $0x10] sm:$0xf]
        %v1669 = vld [vmem:[%s1663 + $0x14] sm:$0xf]
        %v1670 = vld [vmem:[%s1663 + $0x18] sm:$0xf]
        %v1671 = vld [vmem:[%s1663 + $0x1c] sm:$0xf]
        %v1672 = vld [vmem:[%s1663 + $0x20] sm:$0xf]
        %v1673 = vld [vmem:[%s1663 + $0x24] sm:$0xf]
        %v1674 = vld [vmem:[%s1663 + $0x28] sm:$0xf]
        %v1675 = vld [vmem:[%s1663 + $0x2c] sm:$0xf]
        %v1676 = vld [vmem:[%s1663 + $0x30] sm:$0xf]
        %v1677 = vld [vmem:[%s1663 + $0x34] sm:$0xf]
        %v1678 = vld [vmem:[%s1663 + $0x38] sm:$0xf]
        %v1679 = vld [vmem:[%s1663 + $0x3c] sm:$0xf]
        %v1680 = vld [vmem:[%s1663 + $0x40] sm:$0xf]
        %v1681 = vld [vmem:[%s1663 + $0x44] sm:$0xf]
        %v1682 = vld [vmem:[%s1663 + $0x48] sm:$0xf]
        %v1683 = vld [vmem:[%s1663 + $0x4c] sm:$0xf]
        %v1684 = vld [vmem:[%s1663 + $0x50] sm:$0xf]
        %v1685 = vld [vmem:[%s1663 + $0x54] sm:$0xf]
        %v1686 = vld [vmem:[%s1663 + $0x58] sm:$0xf]
        %v1687 = vld [vmem:[%s1663 + $0x5c] sm:$0xf]
        %v1688 = vpack.c.b16 %v1649, %v1647
        %v1689 = vpack.c.b16 %v1650, %v1648
        %v1690 = vpack.c.b16 %v1653, %v1651
        %v1691 = vpack.c.b16 %v1654, %v1652
        %v1692 = vpack.c.b16 %v1657, %v1655
        %v1693 = vpack.c.b16 %v1658, %v1656
        %v1694 = vpack.c.b16 %v1661, %v1659
        %v1695 = vpack.c.b16 %v1662, %v1660
        %v1724 = vunpack.c.l.b16 %v1664
        %v1725 = vunpack.c.l.b16 %v1665
        %v1726 = vunpack.c.l.b16 %v1666
        %v1727 = vunpack.c.l.b16 %v1667
        %v1728 = vunpack.c.l.b16 %v1668
        %v1729 = vunpack.c.l.b16 %v1669
        %v1730 = vunpack.c.l.b16 %v1670
        %v1731 = vunpack.c.l.b16 %v1671
        %v1732 = vunpack.c.l.b16 %v1672
        %v1733 = vunpack.c.l.b16 %v1673
        %v1734 = vunpack.c.l.b16 %v1674
        %v1735 = vunpack.c.l.b16 %v1675
        %v1736 = vunpack.c.l.b16 %v1676
        %v1737 = vunpack.c.l.b16 %v1677
        %v1738 = vunpack.c.l.b16 %v1678
        %v1739 = vunpack.c.l.b16 %v1679
        %v1740 = vunpack.c.l.b16 %v1680
        %v1741 = vunpack.c.l.b16 %v1681
        %v1742 = vunpack.c.l.b16 %v1682
        %v1743 = vunpack.c.l.b16 %v1683
        %v1744 = vunpack.c.l.b16 %v1684
        %v1745 = vunpack.c.l.b16 %v1685
        %v1746 = vunpack.c.l.b16 %v1686
        %v1747 = vunpack.c.l.b16 %v1687
        %v1748 = vpack.c.b16 %v1725, %v1724
        %v1749 = vpack.c.b16 %v1727, %v1726
        %v1750 = vpack.c.b16 %v1729, %v1728
        %v1751 = vpack.c.b16 %v1731, %v1730
        %v1752 = vpack.c.b16 %v1733, %v1732
        %v1753 = vpack.c.b16 %v1735, %v1734
        %v1754 = vpack.c.b16 %v1737, %v1736
        %v1755 = vpack.c.b16 %v1739, %v1738
        %v1756 = vpack.c.b16 %v1741, %v1740
        %v1757 = vpack.c.b16 %v1743, %v1742
        %v1758 = vpack.c.b16 %v1745, %v1744
        %v1759 = vpack.c.b16 %v1747, %v1746
        %v1773 = vsel %vm874, %v1689, 0
        %v1776 = vsel %vm874, %v1691, 0
        %v1779 = vsel %vm874, %v1693, 0
        %v1782 = vsel %vm874, %v1695, 0
        %1784 = vmatprep.subr.bf16.mxu0 0
        %1785 = vmatpush1.bf16.msra.mxu0 %v1748
        %1786 = vmatprep.subr.bf16.mxu0 0
        %1787 = vmatpush1.bf16.msra.mxu0 %v1749
        %1788 = vmatprep.subr.bf16.mxu0 0
        %1789 = vmatpush1.bf16.msra.mxu0 %v1750
        %1790 = vmatprep.subr.bf16.mxu0 0
        %1791 = vmatpush1.bf16.msra.mxu0 %v1751
        %1792 = vmatprep.subr.bf16.mxu0 0
        %1793 = vmatpush1.bf16.msra.mxu0 %v1752
        %1794 = vmatprep.subr.bf16.mxu0 0
        %1795 = vmatpush1.bf16.msra.mxu0 %v1753
        %1796 = vmatprep.subr.bf16.mxu0 0
        %1797 = vmatpush1.bf16.msra.mxu0 %v1754
        %1798 = vmatprep.subr.bf16.mxu0 0
        %1799 = vmatpush1.bf16.msra.mxu0 %v1755
        %1800 = vmatprep.subr.bf16.mxu0 0
        %1801 = vmatpush1.bf16.msra.mxu0 %v1756
        %1802 = vmatprep.subr.bf16.mxu0 0
        %1803 = vmatpush1.bf16.msra.mxu0 %v1757
        %1804 = vmatprep.subr.bf16.mxu0 0
        %1805 = vmatpush1.bf16.msra.mxu0 %v1758
        %1806 = vmatprep.subr.bf16.mxu0 0
        %1807 = vmatpush1.bf16.msra.mxu0 %v1759
        %1808 = vmatprep.subr.bf16.mxu0 0
        %1809 = vmatpush1.bf16.msra.mxu0 0
        %1810 = vmatprep.subr.bf16.mxu0 0
        %1811 = vmatpush1.bf16.msra.mxu0 0
        %1812 = vmatprep.subr.bf16.mxu0 0
        %1813 = vmatpush1.bf16.msra.mxu0 0
        %1814 = vmatprep.subr.bf16.mxu0 0
        %1815 = vmatpush1.bf16.msra.mxu0 0
        %1816 = vmatprep.mubr.bf16.mxu0 %v1773
        %1817 = vmatmul.mubr.bf16.gmra.mrb[0].mxu0 %v1688
        %v1818 = vpop.f32.mrb[0].mxu0
        %v1819 = vadd.f32 0.0, %v1818
        %v1820 = vpop.f32.mrb[0].mxu0
        %v1821 = vpop.f32.mrb[0].mxu0
        %v1822 = vadd.f32 0.0, %v1821
        %v1823 = vpop.f32.mrb[0].mxu0
        %1824 = vmatprep.mubr.bf16.mxu0 %v1776
        %1825 = vmatmul.mubr.bf16.gmra.mrb[0].mxu0 %v1690
        %v1826 = vpop.f32.mrb[0].mxu0
        %v1827 = vadd.f32 0.0, %v1826
        %v1828 = vpop.f32.mrb[0].mxu0
        %v1829 = vpop.f32.mrb[0].mxu0
        %v1830 = vadd.f32 0.0, %v1829
        %v1831 = vpop.f32.mrb[0].mxu0
        %1832 = vmatprep.mubr.bf16.mxu0 %v1779
        %1833 = vmatmul.mubr.bf16.gmra.mrb[0].mxu0 %v1692
        %v1834 = vpop.f32.mrb[0].mxu0
        %v1835 = vadd.f32 0.0, %v1834
        %v1836 = vpop.f32.mrb[0].mxu0
        %v1837 = vpop.f32.mrb[0].mxu0
        %v1838 = vadd.f32 0.0, %v1837
        %v1839 = vpop.f32.mrb[0].mxu0
        %1840 = vmatprep.mubr.bf16.mxu0 %v1782
        %1841 = vmatmul.mubr.bf16.gmra.mrb[0].mxu0 %v1694
        %v1842 = vpop.f32.mrb[0].mxu0
        %v1843 = vadd.f32 0.0, %v1842
        %v1844 = vpop.f32.mrb[0].mxu0
        %v1845 = vpop.f32.mrb[0].mxu0
        %v1846 = vadd.f32 0.0, %v1845
        %v1847 = vpop.f32.mrb[0].mxu0
        %1848 = vdwg.mxu0
        %v1849 = vadd.f32 %v1448, %v1819
        %v1850 = vadd.f32 %v1451, %v1822
        %v1851 = vadd.f32 %v1456, %v1827
        %v1852 = vadd.f32 %v1459, %v1830
        %v1853 = vadd.f32 %v1464, %v1835
        %v1854 = vadd.f32 %v1467, %v1838
        %v1855 = vadd.f32 %v1472, %v1843
        %v1856 = vadd.f32 %v1475, %v1846
        %v1857 = vld [vmem:[#allocation6 + $0x1] sm:$0x1]
        %v1858 = vld [vmem:[#allocation8 + $0x1] sm:$0x1]
        %v1859 = vlaneseq
        %v1860 = vshrl.u32 %v1859, 7
        %v1861 = vsub.s32 0, %v1860
        %v1862 = vrot.slane %v1857, %v1861
        %v1863 = vmul.f32 %v1849, %v1862
        %v1864 = vmul.f32 %v1850, %v1862
        %v1865 = vmul.f32 %v1851, %v1862
        %v1866 = vmul.f32 %v1852, %v1862
        %v1867 = vmul.f32 %v1853, %v1862
        %v1868 = vmul.f32 %v1854, %v1862
        %v1869 = vmul.f32 %v1855, %v1862
        %v1870 = vmul.f32 %v1856, %v1862
        %v1871 = vlaneseq
        %v1872 = vshrl.u32 %v1871, 7
        %v1873 = vsub.s32 0, %v1872
        %v1874 = vrot.slane %v1858, %v1873
        %v1875 = vadd.f32 %v1863, %v1874
        %v1876 = vadd.f32 %v1864, %v1874
        %v1877 = vadd.f32 %v1865, %v1874
        %v1878 = vadd.f32 %v1866, %v1874
        %v1879 = vadd.f32 %v1867, %v1874
        %v1880 = vadd.f32 %v1868, %v1874
        %v1881 = vadd.f32 %v1869, %v1874
        %v1882 = vadd.f32 %v1870, %v1874
        %vm1883 = vcmp.ge.f32.partialorder %v1875, 0.0
        %vm1884 = vcmp.ge.f32.partialorder %v1876, 0.0
        %vm1885 = vcmp.ge.f32.partialorder %v1877, 0.0
        %vm1886 = vcmp.ge.f32.partialorder %v1878, 0.0
        %vm1887 = vcmp.ge.f32.partialorder %v1879, 0.0
        %vm1888 = vcmp.ge.f32.partialorder %v1880, 0.0
        %vm1889 = vcmp.ge.f32.partialorder %v1881, 0.0
        %vm1890 = vcmp.ge.f32.partialorder %v1882, 0.0
        %v1891 = vmul.f32 %v1875, 0.1
        %v1892 = vmul.f32 %v1876, 0.1
        %v1893 = vmul.f32 %v1877, 0.1
        %v1894 = vmul.f32 %v1878, 0.1
        %v1895 = vmul.f32 %v1879, 0.1
        %v1896 = vmul.f32 %v1880, 0.1
        %v1897 = vmul.f32 %v1881, 0.1
        %v1898 = vmul.f32 %v1882, 0.1
        %v1899 = vsel %vm1883, %v1875, %v1891
        %v1900 = vsel %vm1884, %v1876, %v1892
        %v1901 = vsel %vm1885, %v1877, %v1893
        %v1902 = vsel %vm1886, %v1878, %v1894
        %v1903 = vsel %vm1887, %v1879, %v1895
        %v1904 = vsel %vm1888, %v1880, %v1896
        %v1905 = vsel %vm1889, %v1881, %v1897
        %v1906 = vsel %vm1890, %v1882, %v1898
        %v1907 = vpack.c.bf16 %v1899, %v1899
        %v1908 = vpack.c.bf16 %v1900, %v1900
        %v1909 = vpack.c.bf16 %v1901, %v1901
        %v1910 = vpack.c.bf16 %v1902, %v1902
        %v1911 = vpack.c.bf16 %v1903, %v1903
        %v1912 = vpack.c.bf16 %v1904, %v1904
        %v1913 = vpack.c.bf16 %v1905, %v1905
        %v1914 = vpack.c.bf16 %v1906, %v1906
        %v1923 = vunpack.c.l.b16 %v1907
        %v1924 = vunpack.c.l.b16 %v1908
        %v1925 = vunpack.c.l.b16 %v1909
        %v1926 = vunpack.c.l.b16 %v1910
        %v1927 = vunpack.c.l.b16 %v1911
        %v1928 = vunpack.c.l.b16 %v1912
        %v1929 = vunpack.c.l.b16 %v1913
        %v1930 = vunpack.c.l.b16 %v1914
        %v1931 = vpack.c.b16 %v1923, %v1923
        %v1932 = vpack.c.b16 %v1924, %v1924
        %v1933 = vpack.c.b16 %v1925, %v1925
        %v1934 = vpack.c.b16 %v1926, %v1926
        %v1935 = vpack.c.b16 %v1927, %v1927
        %v1936 = vpack.c.b16 %v1928, %v1928
        %v1937 = vpack.c.b16 %v1929, %v1929
        %v1938 = vpack.c.b16 %v1930, %v1930
        %v1940 = vshrl.u32 %v1931, 16
        %v1942 = vrot.slane %v1940, 7
        %v1943 = vshll.u32 %v1931, 16
        %v1945 = vor.u32 %v1942, %v1943
        %v1946 = vrot.slane %v1942, 4
        %v1948 = vshrl.u32 %v1932, 16
        %v1950 = vrot.slane %v1948, 7
        %v1951 = vshll.u32 %v1932, 16
        %v1953 = vor.u32 %v1950, %v1951
        %v1954 = vrot.slane %v1950, 4
        %v1956 = vshrl.u32 %v1933, 16
        %v1958 = vrot.slane %v1956, 7
        %v1959 = vshll.u32 %v1933, 16
        %v1961 = vor.u32 %v1958, %v1959
        %v1962 = vrot.slane %v1958, 4
        %v1964 = vshrl.u32 %v1934, 16
        %v1966 = vrot.slane %v1964, 7
        %v1967 = vshll.u32 %v1934, 16
        %v1969 = vor.u32 %v1966, %v1967
        %v1970 = vrot.slane %v1966, 4
        %v1972 = vshrl.u32 %v1935, 16
        %v1974 = vrot.slane %v1972, 7
        %v1975 = vshll.u32 %v1935, 16
        %v1977 = vor.u32 %v1974, %v1975
        %v1978 = vrot.slane %v1974, 4
        %v1980 = vshrl.u32 %v1936, 16
        %v1982 = vrot.slane %v1980, 7
        %v1983 = vshll.u32 %v1936, 16
        %v1985 = vor.u32 %v1982, %v1983
        %v1986 = vrot.slane %v1982, 4
        %v1988 = vshrl.u32 %v1937, 16
        %v1990 = vrot.slane %v1988, 7
        %v1991 = vshll.u32 %v1937, 16
        %v1993 = vor.u32 %v1990, %v1991
        %v1994 = vrot.slane %v1990, 4
        %v1996 = vshrl.u32 %v1938, 16
        %v1998 = vrot.slane %v1996, 7
        %v1999 = vshll.u32 %v1938, 16
        %v2001 = vor.u32 %v1998, %v1999
        %v2002 = vrot.slane %v1998, 4
        %s2019 = scalar_lea.vmem [#allocation3], 8
        %v2020 = vld [vmem:[%s2019] sm:$0xf]
        %v2021 = vsel %vm689, %v1945, %v2020
        %2022 = vst [vmem:[%s2019] sm:$0xf] %v2021
        %v2023 = vld [vmem:[%s2019 + $0x4] sm:$0x1]
        %v2024 = vsel %vm275, %v1946, %v2023
        %2025 = vst [vmem:[%s2019 + $0x4] sm:$0x1] %v2024
        %v2026 = vld [vmem:[%s2019 + $0x8] sm:$0xf]
        %v2027 = vsel %vm689, %v1953, %v2026
        %2028 = vst [vmem:[%s2019 + $0x8] sm:$0xf] %v2027
        %v2029 = vld [vmem:[%s2019 + $0xc] sm:$0x1]
        %v2030 = vsel %vm275, %v1954, %v2029
        %2031 = vst [vmem:[%s2019 + $0xc] sm:$0x1] %v2030
        %v2032 = vld [vmem:[%s2019 + $0x10] sm:$0xf]
        %v2033 = vsel %vm689, %v1961, %v2032
        %2034 = vst [vmem:[%s2019 + $0x10] sm:$0xf] %v2033
        %v2035 = vld [vmem:[%s2019 + $0x14] sm:$0x1]
        %v2036 = vsel %vm275, %v1962, %v2035
        %2037 = vst [vmem:[%s2019 + $0x14] sm:$0x1] %v2036
        %v2038 = vld [vmem:[%s2019 + $0x18] sm:$0xf]
        %v2039 = vsel %vm689, %v1969, %v2038
        %2040 = vst [vmem:[%s2019 + $0x18] sm:$0xf] %v2039
        %v2041 = vld [vmem:[%s2019 + $0x1c] sm:$0x1]
        %v2042 = vsel %vm275, %v1970, %v2041
        %2043 = vst [vmem:[%s2019 + $0x1c] sm:$0x1] %v2042
        %v2044 = vld [vmem:[%s2019 + $0x20] sm:$0xf]
        %v2045 = vsel %vm689, %v1977, %v2044
        %2046 = vst [vmem:[%s2019 + $0x20] sm:$0xf] %v2045
        %v2047 = vld [vmem:[%s2019 + $0x24] sm:$0x1]
        %v2048 = vsel %vm275, %v1978, %v2047
        %2049 = vst [vmem:[%s2019 + $0x24] sm:$0x1] %v2048
        %v2050 = vld [vmem:[%s2019 + $0x28] sm:$0xf]
        %v2051 = vsel %vm689, %v1985, %v2050
        %2052 = vst [vmem:[%s2019 + $0x28] sm:$0xf] %v2051
        %v2053 = vld [vmem:[%s2019 + $0x2c] sm:$0x1]
        %v2054 = vsel %vm275, %v1986, %v2053
        %2055 = vst [vmem:[%s2019 + $0x2c] sm:$0x1] %v2054
        %v2056 = vld [vmem:[%s2019 + $0x30] sm:$0xf]
        %v2057 = vsel %vm689, %v1993, %v2056
        %2058 = vst [vmem:[%s2019 + $0x30] sm:$0xf] %v2057
        %v2059 = vld [vmem:[%s2019 + $0x34] sm:$0x1]
        %v2060 = vsel %vm275, %v1994, %v2059
        %2061 = vst [vmem:[%s2019 + $0x34] sm:$0x1] %v2060
        %v2062 = vld [vmem:[%s2019 + $0x38] sm:$0xf]
        %v2063 = vsel %vm689, %v2001, %v2062
        %2064 = vst [vmem:[%s2019 + $0x38] sm:$0xf] %v2063
        %v2065 = vld [vmem:[%s2019 + $0x3c] sm:$0x1]
        %v2066 = vsel %vm275, %v2002, %v2065
        %2067 = vst [vmem:[%s2019 + $0x3c] sm:$0x1] %v2066
        %v2068 = vld [vmem:[#allocation3] sm:$0xf]
        %v2069 = vld [vmem:[#allocation3 + $0x4] sm:$0x1]
        %v2070 = vld [vmem:[#allocation3 + $0x8] sm:$0xf]
        %v2071 = vld [vmem:[#allocation3 + $0xc] sm:$0x1]
        %v2072 = vld [vmem:[#allocation3 + $0x10] sm:$0xf]
        %v2073 = vld [vmem:[#allocation3 + $0x14] sm:$0x1]
        %v2074 = vld [vmem:[#allocation3 + $0x18] sm:$0xf]
        %v2075 = vld [vmem:[#allocation3 + $0x1c] sm:$0x1]
        %v2076 = vld [vmem:[#allocation3 + $0x20] sm:$0xf]
        %v2077 = vld [vmem:[#allocation3 + $0x24] sm:$0x1]
        %v2078 = vld [vmem:[#allocation3 + $0x28] sm:$0xf]
        %v2079 = vld [vmem:[#allocation3 + $0x2c] sm:$0x1]
        %v2080 = vld [vmem:[#allocation3 + $0x30] sm:$0xf]
        %v2081 = vld [vmem:[#allocation3 + $0x34] sm:$0x1]
        %v2082 = vld [vmem:[#allocation3 + $0x38] sm:$0xf]
        %v2083 = vld [vmem:[#allocation3 + $0x3c] sm:$0x1]
        %v2100 = vunpack.c.l.b16 %v2068
        %v2101 = vunpack.c.l.b16 %v2069
        %v2102 = vunpack.c.l.b16 %v2070
        %v2103 = vunpack.c.l.b16 %v2071
        %v2104 = vunpack.c.l.b16 %v2072
        %v2105 = vunpack.c.l.b16 %v2073
        %v2106 = vunpack.c.l.b16 %v2074
        %v2107 = vunpack.c.l.b16 %v2075
        %v2108 = vunpack.c.l.b16 %v2076
        %v2109 = vunpack.c.l.b16 %v2077
        %v2110 = vunpack.c.l.b16 %v2078
        %v2111 = vunpack.c.l.b16 %v2079
        %v2112 = vunpack.c.l.b16 %v2080
        %v2113 = vunpack.c.l.b16 %v2081
        %v2114 = vunpack.c.l.b16 %v2082
        %v2115 = vunpack.c.l.b16 %v2083
        %v2116 = vpack.c.b16 %v2101, %v2100
        %v2117 = vpack.c.b16 %v2103, %v2102
        %v2118 = vpack.c.b16 %v2105, %v2104
        %v2119 = vpack.c.b16 %v2107, %v2106
        %v2120 = vpack.c.b16 %v2109, %v2108
        %v2121 = vpack.c.b16 %v2111, %v2110
        %v2122 = vpack.c.b16 %v2113, %v2112
        %v2123 = vpack.c.b16 %v2115, %v2114
        %v2125 = vshrl.u32 %v2116, 16
        %v2127 = vshll.u32 %v2116, 16
        %v2129 = vrot.slane %v2127, 1
        %v2130 = vor.u32 %v2125, %v2129
        %v2132 = vshrl.u32 %v2117, 16
        %v2134 = vshll.u32 %v2117, 16
        %v2136 = vrot.slane %v2134, 1
        %v2137 = vor.u32 %v2132, %v2136
        %v2139 = vshrl.u32 %v2118, 16
        %v2141 = vshll.u32 %v2118, 16
        %v2143 = vrot.slane %v2141, 1
        %v2144 = vor.u32 %v2139, %v2143
        %v2146 = vshrl.u32 %v2119, 16
        %v2148 = vshll.u32 %v2119, 16
        %v2150 = vrot.slane %v2148, 1
        %v2151 = vor.u32 %v2146, %v2150
        %v2153 = vshrl.u32 %v2120, 16
        %v2155 = vshll.u32 %v2120, 16
        %v2157 = vrot.slane %v2155, 1
        %v2158 = vor.u32 %v2153, %v2157
        %v2160 = vshrl.u32 %v2121, 16
        %v2162 = vshll.u32 %v2121, 16
        %v2164 = vrot.slane %v2162, 1
        %v2165 = vor.u32 %v2160, %v2164
        %v2167 = vshrl.u32 %v2122, 16
        %v2169 = vshll.u32 %v2122, 16
        %v2171 = vrot.slane %v2169, 1
        %v2172 = vor.u32 %v2167, %v2171
        %v2174 = vshrl.u32 %v2123, 16
        %v2176 = vshll.u32 %v2123, 16
        %v2178 = vrot.slane %v2176, 1
        %v2179 = vor.u32 %v2174, %v2178
        %2180 = vrot.lane.b32.xlu0 %v2130, 64
        %v2181 = vpop.permute.xlu0 %2180
        %2182 = vrot.lane.b32.xlu0 %v2137, 64
        %v2183 = vpop.permute.xlu0 %2182
        %2184 = vrot.lane.b32.xlu0 %v2144, 64
        %v2185 = vpop.permute.xlu0 %2184
        %2186 = vrot.lane.b32.xlu0 %v2151, 64
        %v2187 = vpop.permute.xlu0 %2186
        %2188 = vrot.lane.b32.xlu0 %v2158, 64
        %v2189 = vpop.permute.xlu0 %2188
        %2190 = vrot.lane.b32.xlu0 %v2165, 64
        %v2191 = vpop.permute.xlu0 %2190
        %2192 = vrot.lane.b32.xlu0 %v2172, 64
        %v2193 = vpop.permute.xlu0 %2192
        %2194 = vrot.lane.b32.xlu0 %v2179, 64
        %v2195 = vpop.permute.xlu0 %2194
        %v2196 = vrot.slane %v2116, 1
        %v2197 = vrot.slane %v2117, 1
        %v2198 = vrot.slane %v2118, 1
        %v2199 = vrot.slane %v2119, 1
        %v2200 = vrot.slane %v2120, 1
        %v2201 = vrot.slane %v2121, 1
        %v2202 = vrot.slane %v2122, 1
        %v2203 = vrot.slane %v2123, 1
        %v2206 = vsel %vm874, %v2068, %v2181
        %v2209 = vsel %vm874, %v2070, %v2183
        %v2212 = vsel %vm874, %v2072, %v2185
        %v2215 = vsel %vm874, %v2074, %v2187
        %v2218 = vsel %vm874, %v2076, %v2189
        %v2221 = vsel %vm874, %v2078, %v2191
        %v2224 = vsel %vm874, %v2080, %v2193
        %v2227 = vsel %vm874, %v2082, %v2195
        %v2236 = vunpack.c.l.b16 %v2206
        %v2237 = vunpack.c.l.b16 %v2196
        %v2238 = vunpack.c.l.b16 %v2209
        %v2239 = vunpack.c.l.b16 %v2197
        %v2240 = vunpack.c.l.b16 %v2212
        %v2241 = vunpack.c.l.b16 %v2198
        %v2242 = vunpack.c.l.b16 %v2215
        %v2243 = vunpack.c.l.b16 %v2199
        %v2244 = vunpack.c.l.b16 %v2218
        %v2245 = vunpack.c.l.b16 %v2200
        %v2246 = vunpack.c.l.b16 %v2221
        %v2247 = vunpack.c.l.b16 %v2201
        %v2248 = vunpack.c.l.b16 %v2224
        %v2249 = vunpack.c.l.b16 %v2202
        %v2250 = vunpack.c.l.b16 %v2227
        %v2251 = vunpack.c.l.b16 %v2203
        %s2252 = scalar_lea.vmem %s2, 288
        %v2253 = vld [vmem:[%s2252] sm:$0xf]
        %v2254 = vld [vmem:[%s2252 + $0x4] sm:$0xf]
        %v2255 = vld [vmem:[%s2252 + $0x8] sm:$0xf]
        %v2256 = vld [vmem:[%s2252 + $0xc] sm:$0xf]
        %v2257 = vld [vmem:[%s2252 + $0x10] sm:$0xf]
        %v2258 = vld [vmem:[%s2252 + $0x14] sm:$0xf]
        %v2259 = vld [vmem:[%s2252 + $0x18] sm:$0xf]
        %v2260 = vld [vmem:[%s2252 + $0x1c] sm:$0xf]
        %v2261 = vld [vmem:[%s2252 + $0x20] sm:$0xf]
        %v2262 = vld [vmem:[%s2252 + $0x24] sm:$0xf]
        %v2263 = vld [vmem:[%s2252 + $0x28] sm:$0xf]
        %v2264 = vld [vmem:[%s2252 + $0x2c] sm:$0xf]
        %v2265 = vld [vmem:[%s2252 + $0x30] sm:$0xf]
        %v2266 = vld [vmem:[%s2252 + $0x34] sm:$0xf]
        %v2267 = vld [vmem:[%s2252 + $0x38] sm:$0xf]
        %v2268 = vld [vmem:[%s2252 + $0x3c] sm:$0xf]
        %v2269 = vld [vmem:[%s2252 + $0x40] sm:$0xf]
        %v2270 = vld [vmem:[%s2252 + $0x44] sm:$0xf]
        %v2271 = vld [vmem:[%s2252 + $0x48] sm:$0xf]
        %v2272 = vld [vmem:[%s2252 + $0x4c] sm:$0xf]
        %v2273 = vld [vmem:[%s2252 + $0x50] sm:$0xf]
        %v2274 = vld [vmem:[%s2252 + $0x54] sm:$0xf]
        %v2275 = vld [vmem:[%s2252 + $0x58] sm:$0xf]
        %v2276 = vld [vmem:[%s2252 + $0x5c] sm:$0xf]
        %v2277 = vld [vmem:[%s2019] sm:$0xf]
        %v2278 = vld [vmem:[%s2019 + $0x4] sm:$0x1]
        %v2279 = vld [vmem:[%s2019 + $0x8] sm:$0xf]
        %v2280 = vld [vmem:[%s2019 + $0xc] sm:$0x1]
        %v2281 = vld [vmem:[%s2019 + $0x10] sm:$0xf]
        %v2282 = vld [vmem:[%s2019 + $0x14] sm:$0x1]
        %v2283 = vld [vmem:[%s2019 + $0x18] sm:$0xf]
        %v2284 = vld [vmem:[%s2019 + $0x1c] sm:$0x1]
        %v2285 = vld [vmem:[%s2019 + $0x20] sm:$0xf]
        %v2286 = vld [vmem:[%s2019 + $0x24] sm:$0x1]
        %v2287 = vld [vmem:[%s2019 + $0x28] sm:$0xf]
        %v2288 = vld [vmem:[%s2019 + $0x2c] sm:$0x1]
        %v2289 = vld [vmem:[%s2019 + $0x30] sm:$0xf]
        %v2290 = vld [vmem:[%s2019 + $0x34] sm:$0x1]
        %v2291 = vld [vmem:[%s2019 + $0x38] sm:$0xf]
        %v2292 = vld [vmem:[%s2019 + $0x3c] sm:$0x1]
        %v2309 = vunpack.c.l.b16 %v2277
        %v2310 = vunpack.c.l.b16 %v2278
        %v2311 = vunpack.c.l.b16 %v2279
        %v2312 = vunpack.c.l.b16 %v2280
        %v2313 = vunpack.c.l.b16 %v2281
        %v2314 = vunpack.c.l.b16 %v2282
        %v2315 = vunpack.c.l.b16 %v2283
        %v2316 = vunpack.c.l.b16 %v2284
        %v2317 = vunpack.c.l.b16 %v2285
        %v2318 = vunpack.c.l.b16 %v2286
        %v2319 = vunpack.c.l.b16 %v2287
        %v2320 = vunpack.c.l.b16 %v2288
        %v2321 = vunpack.c.l.b16 %v2289
        %v2322 = vunpack.c.l.b16 %v2290
        %v2323 = vunpack.c.l.b16 %v2291
        %v2324 = vunpack.c.l.b16 %v2292
        %v2325 = vpack.c.b16 %v2310, %v2309
        %v2326 = vpack.c.b16 %v2312, %v2311
        %v2327 = vpack.c.b16 %v2314, %v2313
        %v2328 = vpack.c.b16 %v2316, %v2315
        %v2329 = vpack.c.b16 %v2318, %v2317
        %v2330 = vpack.c.b16 %v2320, %v2319
        %v2331 = vpack.c.b16 %v2322, %v2321
        %v2332 = vpack.c.b16 %v2324, %v2323
        %v2334 = vshrl.u32 %v2325, 16
        %v2336 = vshll.u32 %v2325, 16
        %v2338 = vrot.slane %v2336, 1
        %v2339 = vor.u32 %v2334, %v2338
        %v2341 = vshrl.u32 %v2326, 16
        %v2343 = vshll.u32 %v2326, 16
        %v2345 = vrot.slane %v2343, 1
        %v2346 = vor.u32 %v2341, %v2345
        %v2348 = vshrl.u32 %v2327, 16
        %v2350 = vshll.u32 %v2327, 16
        %v2352 = vrot.slane %v2350, 1
        %v2353 = vor.u32 %v2348, %v2352
        %v2355 = vshrl.u32 %v2328, 16
        %v2357 = vshll.u32 %v2328, 16
        %v2359 = vrot.slane %v2357, 1
        %v2360 = vor.u32 %v2355, %v2359
        %v2362 = vshrl.u32 %v2329, 16
        %v2364 = vshll.u32 %v2329, 16
        %v2366 = vrot.slane %v2364, 1
        %v2367 = vor.u32 %v2362, %v2366
        %v2369 = vshrl.u32 %v2330, 16
        %v2371 = vshll.u32 %v2330, 16
        %v2373 = vrot.slane %v2371, 1
        %v2374 = vor.u32 %v2369, %v2373
        %v2376 = vshrl.u32 %v2331, 16
        %v2378 = vshll.u32 %v2331, 16
        %v2380 = vrot.slane %v2378, 1
        %v2381 = vor.u32 %v2376, %v2380
        %v2383 = vshrl.u32 %v2332, 16
        %v2385 = vshll.u32 %v2332, 16
        %v2387 = vrot.slane %v2385, 1
        %v2388 = vor.u32 %v2383, %v2387
        %2389 = vrot.lane.b32.xlu0 %v2339, 64
        %v2390 = vpop.permute.xlu0 %2389
        %2391 = vrot.lane.b32.xlu0 %v2346, 64
        %v2392 = vpop.permute.xlu0 %2391
        %2393 = vrot.lane.b32.xlu0 %v2353, 64
        %v2394 = vpop.permute.xlu0 %2393
        %2395 = vrot.lane.b32.xlu0 %v2360, 64
        %v2396 = vpop.permute.xlu0 %2395
        %2397 = vrot.lane.b32.xlu0 %v2367, 64
        %v2398 = vpop.permute.xlu0 %2397
        %2399 = vrot.lane.b32.xlu0 %v2374, 64
        %v2400 = vpop.permute.xlu0 %2399
        %2401 = vrot.lane.b32.xlu0 %v2381, 64
        %v2402 = vpop.permute.xlu0 %2401
        %2403 = vrot.lane.b32.xlu0 %v2388, 64
        %v2404 = vpop.permute.xlu0 %2403
        %v2405 = vrot.slane %v2325, 1
        %v2406 = vrot.slane %v2326, 1
        %v2407 = vrot.slane %v2327, 1
        %v2408 = vrot.slane %v2328, 1
        %v2409 = vrot.slane %v2329, 1
        %v2410 = vrot.slane %v2330, 1
        %v2411 = vrot.slane %v2331, 1
        %v2412 = vrot.slane %v2332, 1
        %v2415 = vsel %vm874, %v2277, %v2390
        %v2418 = vsel %vm874, %v2279, %v2392
        %v2421 = vsel %vm874, %v2281, %v2394
        %v2424 = vsel %vm874, %v2283, %v2396
        %v2427 = vsel %vm874, %v2285, %v2398
        %v2430 = vsel %vm874, %v2287, %v2400
        %v2433 = vsel %vm874, %v2289, %v2402
        %v2436 = vsel %vm874, %v2291, %v2404
        %v2445 = vunpack.c.l.b16 %v2415
        %v2446 = vunpack.c.l.b16 %v2405
        %v2447 = vunpack.c.l.b16 %v2418
        %v2448 = vunpack.c.l.b16 %v2406
        %v2449 = vunpack.c.l.b16 %v2421
        %v2450 = vunpack.c.l.b16 %v2407
        %v2451 = vunpack.c.l.b16 %v2424
        %v2452 = vunpack.c.l.b16 %v2408
        %v2453 = vunpack.c.l.b16 %v2427
        %v2454 = vunpack.c.l.b16 %v2409
        %v2455 = vunpack.c.l.b16 %v2430
        %v2456 = vunpack.c.l.b16 %v2410
        %v2457 = vunpack.c.l.b16 %v2433
        %v2458 = vunpack.c.l.b16 %v2411
        %v2459 = vunpack.c.l.b16 %v2436
        %v2460 = vunpack.c.l.b16 %v2412
        %s2461 = scalar_lea.vmem %s2, 384
        %v2462 = vld [vmem:[%s2461] sm:$0xf]
        %v2463 = vld [vmem:[%s2461 + $0x4] sm:$0xf]
        %v2464 = vld [vmem:[%s2461 + $0x8] sm:$0xf]
        %v2465 = vld [vmem:[%s2461 + $0xc] sm:$0xf]
        %v2466 = vld [vmem:[%s2461 + $0x10] sm:$0xf]
        %v2467 = vld [vmem:[%s2461 + $0x14] sm:$0xf]
        %v2468 = vld [vmem:[%s2461 + $0x18] sm:$0xf]
        %v2469 = vld [vmem:[%s2461 + $0x1c] sm:$0xf]
        %v2470 = vld [vmem:[%s2461 + $0x20] sm:$0xf]
        %v2471 = vld [vmem:[%s2461 + $0x24] sm:$0xf]
        %v2472 = vld [vmem:[%s2461 + $0x28] sm:$0xf]
        %v2473 = vld [vmem:[%s2461 + $0x2c] sm:$0xf]
        %v2474 = vld [vmem:[%s2461 + $0x30] sm:$0xf]
        %v2475 = vld [vmem:[%s2461 + $0x34] sm:$0xf]
        %v2476 = vld [vmem:[%s2461 + $0x38] sm:$0xf]
        %v2477 = vld [vmem:[%s2461 + $0x3c] sm:$0xf]
        %v2478 = vld [vmem:[%s2461 + $0x40] sm:$0xf]
        %v2479 = vld [vmem:[%s2461 + $0x44] sm:$0xf]
        %v2480 = vld [vmem:[%s2461 + $0x48] sm:$0xf]
        %v2481 = vld [vmem:[%s2461 + $0x4c] sm:$0xf]
        %v2482 = vld [vmem:[%s2461 + $0x50] sm:$0xf]
        %v2483 = vld [vmem:[%s2461 + $0x54] sm:$0xf]
        %v2484 = vld [vmem:[%s2461 + $0x58] sm:$0xf]
        %v2485 = vld [vmem:[%s2461 + $0x5c] sm:$0xf]
        %v2486 = vpack.c.b16 %v2447, %v2445
        %v2487 = vpack.c.b16 %v2448, %v2446
        %v2488 = vpack.c.b16 %v2451, %v2449
        %v2489 = vpack.c.b16 %v2452, %v2450
        %v2490 = vpack.c.b16 %v2455, %v2453
        %v2491 = vpack.c.b16 %v2456, %v2454
        %v2492 = vpack.c.b16 %v2459, %v2457
        %v2493 = vpack.c.b16 %v2460, %v2458
        %v2522 = vunpack.c.l.b16 %v2462
        %v2523 = vunpack.c.l.b16 %v2463
        %v2524 = vunpack.c.l.b16 %v2464
        %v2525 = vunpack.c.l.b16 %v2465
        %v2526 = vunpack.c.l.b16 %v2466
        %v2527 = vunpack.c.l.b16 %v2467
        %v2528 = vunpack.c.l.b16 %v2468
        %v2529 = vunpack.c.l.b16 %v2469
        %v2530 = vunpack.c.l.b16 %v2470
        %v2531 = vunpack.c.l.b16 %v2471
        %v2532 = vunpack.c.l.b16 %v2472
        %v2533 = vunpack.c.l.b16 %v2473
        %v2534 = vunpack.c.l.b16 %v2474
        %v2535 = vunpack.c.l.b16 %v2475
        %v2536 = vunpack.c.l.b16 %v2476
        %v2537 = vunpack.c.l.b16 %v2477
        %v2538 = vunpack.c.l.b16 %v2478
        %v2539 = vunpack.c.l.b16 %v2479
        %v2540 = vunpack.c.l.b16 %v2480
        %v2541 = vunpack.c.l.b16 %v2481
        %v2542 = vunpack.c.l.b16 %v2482
        %v2543 = vunpack.c.l.b16 %v2483
        %v2544 = vunpack.c.l.b16 %v2484
        %v2545 = vunpack.c.l.b16 %v2485
        %v2546 = vpack.c.b16 %v2523, %v2522
        %v2547 = vpack.c.b16 %v2525, %v2524
        %v2548 = vpack.c.b16 %v2527, %v2526
        %v2549 = vpack.c.b16 %v2529, %v2528
        %v2550 = vpack.c.b16 %v2531, %v2530
        %v2551 = vpack.c.b16 %v2533, %v2532
        %v2552 = vpack.c.b16 %v2535, %v2534
        %v2553 = vpack.c.b16 %v2537, %v2536
        %v2554 = vpack.c.b16 %v2539, %v2538
        %v2555 = vpack.c.b16 %v2541, %v2540
        %v2556 = vpack.c.b16 %v2543, %v2542
        %v2557 = vpack.c.b16 %v2545, %v2544
        %v2571 = vsel %vm874, %v2487, 0
        %v2574 = vsel %vm874, %v2489, 0
        %v2577 = vsel %vm874, %v2491, 0
        %v2580 = vsel %vm874, %v2493, 0
        %2582 = vmatprep.subr.bf16.mxu0 0
        %2583 = vmatpush1.bf16.msra.mxu0 %v2546
        %2584 = vmatprep.subr.bf16.mxu0 0
        %2585 = vmatpush1.bf16.msra.mxu0 %v2547
        %2586 = vmatprep.subr.bf16.mxu0 0
        %2587 = vmatpush1.bf16.msra.mxu0 %v2548
        %2588 = vmatprep.subr.bf16.mxu0 0
        %2589 = vmatpush1.bf16.msra.mxu0 %v2549
        %2590 = vmatprep.subr.bf16.mxu0 0
        %2591 = vmatpush1.bf16.msra.mxu0 %v2550
        %2592 = vmatprep.subr.bf16.mxu0 0
        %2593 = vmatpush1.bf16.msra.mxu0 %v2551
        %2594 = vmatprep.subr.bf16.mxu0 0
        %2595 = vmatpush1.bf16.msra.mxu0 %v2552
        %2596 = vmatprep.subr.bf16.mxu0 0
        %2597 = vmatpush1.bf16.msra.mxu0 %v2553
        %2598 = vmatprep.subr.bf16.mxu0 0
        %2599 = vmatpush1.bf16.msra.mxu0 %v2554
        %2600 = vmatprep.subr.bf16.mxu0 0
        %2601 = vmatpush1.bf16.msra.mxu0 %v2555
        %2602 = vmatprep.subr.bf16.mxu0 0
        %2603 = vmatpush1.bf16.msra.mxu0 %v2556
        %2604 = vmatprep.subr.bf16.mxu0 0
        %2605 = vmatpush1.bf16.msra.mxu0 %v2557
        %2606 = vmatprep.subr.bf16.mxu0 0
        %2607 = vmatpush1.bf16.msra.mxu0 0
        %2608 = vmatprep.subr.bf16.mxu0 0
        %2609 = vmatpush1.bf16.msra.mxu0 0
        %2610 = vmatprep.subr.bf16.mxu0 0
        %2611 = vmatpush1.bf16.msra.mxu0 0
        %2612 = vmatprep.subr.bf16.mxu0 0
        %2613 = vmatpush1.bf16.msra.mxu0 0
        %2614 = vmatprep.mubr.bf16.mxu0 %v2571
        %2615 = vmatmul.mubr.bf16.gmra.mrb[0].mxu0 %v2486
        %v2616 = vpop.f32.mrb[0].mxu0
        %v2617 = vadd.f32 0.0, %v2616
        %v2618 = vpop.f32.mrb[0].mxu0
        %v2619 = vpop.f32.mrb[0].mxu0
        %v2620 = vadd.f32 0.0, %v2619
        %v2621 = vpop.f32.mrb[0].mxu0
        %2622 = vmatprep.mubr.bf16.mxu0 %v2574
        %2623 = vmatmul.mubr.bf16.gmra.mrb[0].mxu0 %v2488
        %v2624 = vpop.f32.mrb[0].mxu0
        %v2625 = vadd.f32 0.0, %v2624
        %v2626 = vpop.f32.mrb[0].mxu0
        %v2627 = vpop.f32.mrb[0].mxu0
        %v2628 = vadd.f32 0.0, %v2627
        %v2629 = vpop.f32.mrb[0].mxu0
        %2630 = vmatprep.mubr.bf16.mxu0 %v2577
        %2631 = vmatmul.mubr.bf16.gmra.mrb[0].mxu0 %v2490
        %v2632 = vpop.f32.mrb[0].mxu0
        %v2633 = vadd.f32 0.0, %v2632
        %v2634 = vpop.f32.mrb[0].mxu0
        %v2635 = vpop.f32.mrb[0].mxu0
        %v2636 = vadd.f32 0.0, %v2635
        %v2637 = vpop.f32.mrb[0].mxu0
        %2638 = vmatprep.mubr.bf16.mxu0 %v2580
        %2639 = vmatmul.mubr.bf16.gmra.mrb[0].mxu0 %v2492
        %v2640 = vpop.f32.mrb[0].mxu0
        %v2641 = vadd.f32 0.0, %v2640
        %v2642 = vpop.f32.mrb[0].mxu0
        %v2643 = vpop.f32.mrb[0].mxu0
        %v2644 = vadd.f32 0.0, %v2643
        %v2645 = vpop.f32.mrb[0].mxu0
        %2646 = vdwg.mxu0
        %v2647 = vpack.c.b16 %v2238, %v2236
        %v2648 = vpack.c.b16 %v2239, %v2237
        %v2649 = vpack.c.b16 %v2242, %v2240
        %v2650 = vpack.c.b16 %v2243, %v2241
        %v2651 = vpack.c.b16 %v2246, %v2244
        %v2652 = vpack.c.b16 %v2247, %v2245
        %v2653 = vpack.c.b16 %v2250, %v2248
        %v2654 = vpack.c.b16 %v2251, %v2249
        %v2683 = vunpack.c.l.b16 %v2253
        %v2684 = vunpack.c.l.b16 %v2254
        %v2685 = vunpack.c.l.b16 %v2255
        %v2686 = vunpack.c.l.b16 %v2256
        %v2687 = vunpack.c.l.b16 %v2257
        %v2688 = vunpack.c.l.b16 %v2258
        %v2689 = vunpack.c.l.b16 %v2259
        %v2690 = vunpack.c.l.b16 %v2260
        %v2691 = vunpack.c.l.b16 %v2261
        %v2692 = vunpack.c.l.b16 %v2262
        %v2693 = vunpack.c.l.b16 %v2263
        %v2694 = vunpack.c.l.b16 %v2264
        %v2695 = vunpack.c.l.b16 %v2265
        %v2696 = vunpack.c.l.b16 %v2266
        %v2697 = vunpack.c.l.b16 %v2267
        %v2698 = vunpack.c.l.b16 %v2268
        %v2699 = vunpack.c.l.b16 %v2269
        %v2700 = vunpack.c.l.b16 %v2270
        %v2701 = vunpack.c.l.b16 %v2271
        %v2702 = vunpack.c.l.b16 %v2272
        %v2703 = vunpack.c.l.b16 %v2273
        %v2704 = vunpack.c.l.b16 %v2274
        %v2705 = vunpack.c.l.b16 %v2275
        %v2706 = vunpack.c.l.b16 %v2276
        %v2707 = vpack.c.b16 %v2684, %v2683
        %v2708 = vpack.c.b16 %v2686, %v2685
        %v2709 = vpack.c.b16 %v2688, %v2687
        %v2710 = vpack.c.b16 %v2690, %v2689
        %v2711 = vpack.c.b16 %v2692, %v2691
        %v2712 = vpack.c.b16 %v2694, %v2693
        %v2713 = vpack.c.b16 %v2696, %v2695
        %v2714 = vpack.c.b16 %v2698, %v2697
        %v2715 = vpack.c.b16 %v2700, %v2699
        %v2716 = vpack.c.b16 %v2702, %v2701
        %v2717 = vpack.c.b16 %v2704, %v2703
        %v2718 = vpack.c.b16 %v2706, %v2705
        %v2732 = vsel %vm874, %v2648, 0
        %v2735 = vsel %vm874, %v2650, 0
        %v2738 = vsel %vm874, %v2652, 0
        %v2741 = vsel %vm874, %v2654, 0
        %2743 = vmatprep.subr.bf16.mxu0 0
        %2744 = vmatpush1.bf16.msra.mxu0 %v2707
        %2745 = vmatprep.subr.bf16.mxu0 0
        %2746 = vmatpush1.bf16.msra.mxu0 %v2708
        %2747 = vmatprep.subr.bf16.mxu0 0
        %2748 = vmatpush1.bf16.msra.mxu0 %v2709
        %2749 = vmatprep.subr.bf16.mxu0 0
        %2750 = vmatpush1.bf16.msra.mxu0 %v2710
        %2751 = vmatprep.subr.bf16.mxu0 0
        %2752 = vmatpush1.bf16.msra.mxu0 %v2711
        %2753 = vmatprep.subr.bf16.mxu0 0
        %2754 = vmatpush1.bf16.msra.mxu0 %v2712
        %2755 = vmatprep.subr.bf16.mxu0 0
        %2756 = vmatpush1.bf16.msra.mxu0 %v2713
        %2757 = vmatprep.subr.bf16.mxu0 0
        %2758 = vmatpush1.bf16.msra.mxu0 %v2714
        %2759 = vmatprep.subr.bf16.mxu0 0
        %2760 = vmatpush1.bf16.msra.mxu0 %v2715
        %2761 = vmatprep.subr.bf16.mxu0 0
        %2762 = vmatpush1.bf16.msra.mxu0 %v2716
        %2763 = vmatprep.subr.bf16.mxu0 0
        %2764 = vmatpush1.bf16.msra.mxu0 %v2717
        %2765 = vmatprep.subr.bf16.mxu0 0
        %2766 = vmatpush1.bf16.msra.mxu0 %v2718
        %2767 = vmatprep.subr.bf16.mxu0 0
        %2768 = vmatpush1.bf16.msra.mxu0 0
        %2769 = vmatprep.subr.bf16.mxu0 0
        %2770 = vmatpush1.bf16.msra.mxu0 0
        %2771 = vmatprep.subr.bf16.mxu0 0
        %2772 = vmatpush1.bf16.msra.mxu0 0
        %2773 = vmatprep.subr.bf16.mxu0 0
        %2774 = vmatpush1.bf16.msra.mxu0 0
        %2775 = vmatprep.mubr.bf16.mxu0 %v2732
        %2776 = vmatmul.mubr.bf16.gmra.mrb[0].mxu0 %v2647
        %v2777 = vpop.f32.mrb[0].mxu0
        %v2778 = vadd.f32 %v2617, %v2777
        %v2779 = vpop.f32.mrb[0].mxu0
        %v2780 = vpop.f32.mrb[0].mxu0
        %v2781 = vadd.f32 %v2620, %v2780
        %v2782 = vpop.f32.mrb[0].mxu0
        %2783 = vmatprep.mubr.bf16.mxu0 %v2735
        %2784 = vmatmul.mubr.bf16.gmra.mrb[0].mxu0 %v2649
        %v2785 = vpop.f32.mrb[0].mxu0
        %v2786 = vadd.f32 %v2625, %v2785
        %v2787 = vpop.f32.mrb[0].mxu0
        %v2788 = vpop.f32.mrb[0].mxu0
        %v2789 = vadd.f32 %v2628, %v2788
        %v2790 = vpop.f32.mrb[0].mxu0
        %2791 = vmatprep.mubr.bf16.mxu0 %v2738
        %2792 = vmatmul.mubr.bf16.gmra.mrb[0].mxu0 %v2651
        %v2793 = vpop.f32.mrb[0].mxu0
        %v2794 = vadd.f32 %v2633, %v2793
        %v2795 = vpop.f32.mrb[0].mxu0
        %v2796 = vpop.f32.mrb[0].mxu0
        %v2797 = vadd.f32 %v2636, %v2796
        %v2798 = vpop.f32.mrb[0].mxu0
        %2799 = vmatprep.mubr.bf16.mxu0 %v2741
        %2800 = vmatmul.mubr.bf16.gmra.mrb[0].mxu0 %v2653
        %v2801 = vpop.f32.mrb[0].mxu0
        %v2802 = vadd.f32 %v2641, %v2801
        %v2803 = vpop.f32.mrb[0].mxu0
        %v2804 = vpop.f32.mrb[0].mxu0
        %v2805 = vadd.f32 %v2644, %v2804
        %v2806 = vpop.f32.mrb[0].mxu0
        %2807 = vdwg.mxu0
        %s2808 = scalar_lea.vmem [#allocation3], 16
        %v2809 = vld [vmem:[%s2808] sm:$0xf]
        %v2810 = vld [vmem:[%s2808 + $0x4] sm:$0x1]
        %v2811 = vld [vmem:[%s2808 + $0x8] sm:$0xf]
        %v2812 = vld [vmem:[%s2808 + $0xc] sm:$0x1]
        %v2813 = vld [vmem:[%s2808 + $0x10] sm:$0xf]
        %v2814 = vld [vmem:[%s2808 + $0x14] sm:$0x1]
        %v2815 = vld [vmem:[%s2808 + $0x18] sm:$0xf]
        %v2816 = vld [vmem:[%s2808 + $0x1c] sm:$0x1]
        %v2817 = vld [vmem:[%s2808 + $0x20] sm:$0xf]
        %v2818 = vld [vmem:[%s2808 + $0x24] sm:$0x1]
        %v2819 = vld [vmem:[%s2808 + $0x28] sm:$0xf]
        %v2820 = vld [vmem:[%s2808 + $0x2c] sm:$0x1]
        %v2821 = vld [vmem:[%s2808 + $0x30] sm:$0xf]
        %v2822 = vld [vmem:[%s2808 + $0x34] sm:$0x1]
        %v2823 = vld [vmem:[%s2808 + $0x38] sm:$0xf]
        %v2824 = vld [vmem:[%s2808 + $0x3c] sm:$0x1]
        %v2841 = vunpack.c.l.b16 %v2809
        %v2842 = vunpack.c.l.b16 %v2810
        %v2843 = vunpack.c.l.b16 %v2811
        %v2844 = vunpack.c.l.b16 %v2812
        %v2845 = vunpack.c.l.b16 %v2813
        %v2846 = vunpack.c.l.b16 %v2814
        %v2847 = vunpack.c.l.b16 %v2815
        %v2848 = vunpack.c.l.b16 %v2816
        %v2849 = vunpack.c.l.b16 %v2817
        %v2850 = vunpack.c.l.b16 %v2818
        %v2851 = vunpack.c.l.b16 %v2819
        %v2852 = vunpack.c.l.b16 %v2820
        %v2853 = vunpack.c.l.b16 %v2821
        %v2854 = vunpack.c.l.b16 %v2822
        %v2855 = vunpack.c.l.b16 %v2823
        %v2856 = vunpack.c.l.b16 %v2824
        %v2857 = vpack.c.b16 %v2842, %v2841
        %v2858 = vpack.c.b16 %v2844, %v2843
        %v2859 = vpack.c.b16 %v2846, %v2845
        %v2860 = vpack.c.b16 %v2848, %v2847
        %v2861 = vpack.c.b16 %v2850, %v2849
        %v2862 = vpack.c.b16 %v2852, %v2851
        %v2863 = vpack.c.b16 %v2854, %v2853
        %v2864 = vpack.c.b16 %v2856, %v2855
        %v2866 = vshrl.u32 %v2857, 16
        %v2868 = vshll.u32 %v2857, 16
        %v2870 = vrot.slane %v2868, 1
        %v2871 = vor.u32 %v2866, %v2870
        %v2873 = vshrl.u32 %v2858, 16
        %v2875 = vshll.u32 %v2858, 16
        %v2877 = vrot.slane %v2875, 1
        %v2878 = vor.u32 %v2873, %v2877
        %v2880 = vshrl.u32 %v2859, 16
        %v2882 = vshll.u32 %v2859, 16
        %v2884 = vrot.slane %v2882, 1
        %v2885 = vor.u32 %v2880, %v2884
        %v2887 = vshrl.u32 %v2860, 16
        %v2889 = vshll.u32 %v2860, 16
        %v2891 = vrot.slane %v2889, 1
        %v2892 = vor.u32 %v2887, %v2891
        %v2894 = vshrl.u32 %v2861, 16
        %v2896 = vshll.u32 %v2861, 16
        %v2898 = vrot.slane %v2896, 1
        %v2899 = vor.u32 %v2894, %v2898
        %v2901 = vshrl.u32 %v2862, 16
        %v2903 = vshll.u32 %v2862, 16
        %v2905 = vrot.slane %v2903, 1
        %v2906 = vor.u32 %v2901, %v2905
        %v2908 = vshrl.u32 %v2863, 16
        %v2910 = vshll.u32 %v2863, 16
        %v2912 = vrot.slane %v2910, 1
        %v2913 = vor.u32 %v2908, %v2912
        %v2915 = vshrl.u32 %v2864, 16
        %v2917 = vshll.u32 %v2864, 16
        %v2919 = vrot.slane %v2917, 1
        %v2920 = vor.u32 %v2915, %v2919
        %2921 = vrot.lane.b32.xlu0 %v2871, 64
        %v2922 = vpop.permute.xlu0 %2921
        %2923 = vrot.lane.b32.xlu0 %v2878, 64
        %v2924 = vpop.permute.xlu0 %2923
        %2925 = vrot.lane.b32.xlu0 %v2885, 64
        %v2926 = vpop.permute.xlu0 %2925
        %2927 = vrot.lane.b32.xlu0 %v2892, 64
        %v2928 = vpop.permute.xlu0 %2927
        %2929 = vrot.lane.b32.xlu0 %v2899, 64
        %v2930 = vpop.permute.xlu0 %2929
        %2931 = vrot.lane.b32.xlu0 %v2906, 64
        %v2932 = vpop.permute.xlu0 %2931
        %2933 = vrot.lane.b32.xlu0 %v2913, 64
        %v2934 = vpop.permute.xlu0 %2933
        %2935 = vrot.lane.b32.xlu0 %v2920, 64
        %v2936 = vpop.permute.xlu0 %2935
        %v2937 = vrot.slane %v2857, 1
        %v2938 = vrot.slane %v2858, 1
        %v2939 = vrot.slane %v2859, 1
        %v2940 = vrot.slane %v2860, 1
        %v2941 = vrot.slane %v2861, 1
        %v2942 = vrot.slane %v2862, 1
        %v2943 = vrot.slane %v2863, 1
        %v2944 = vrot.slane %v2864, 1
        %v2947 = vsel %vm874, %v2809, %v2922
        %v2950 = vsel %vm874, %v2811, %v2924
        %v2953 = vsel %vm874, %v2813, %v2926
        %v2956 = vsel %vm874, %v2815, %v2928
        %v2959 = vsel %vm874, %v2817, %v2930
        %v2962 = vsel %vm874, %v2819, %v2932
        %v2965 = vsel %vm874, %v2821, %v2934
        %v2968 = vsel %vm874, %v2823, %v2936
        %v2977 = vunpack.c.l.b16 %v2947
        %v2978 = vunpack.c.l.b16 %v2937
        %v2979 = vunpack.c.l.b16 %v2950
        %v2980 = vunpack.c.l.b16 %v2938
        %v2981 = vunpack.c.l.b16 %v2953
        %v2982 = vunpack.c.l.b16 %v2939
        %v2983 = vunpack.c.l.b16 %v2956
        %v2984 = vunpack.c.l.b16 %v2940
        %v2985 = vunpack.c.l.b16 %v2959
        %v2986 = vunpack.c.l.b16 %v2941
        %v2987 = vunpack.c.l.b16 %v2962
        %v2988 = vunpack.c.l.b16 %v2942
        %v2989 = vunpack.c.l.b16 %v2965
        %v2990 = vunpack.c.l.b16 %v2943
        %v2991 = vunpack.c.l.b16 %v2968
        %v2992 = vunpack.c.l.b16 %v2944
        %s2993 = scalar_lea.vmem %s2, 480
        %v2994 = vld [vmem:[%s2993] sm:$0xf]
        %v2995 = vld [vmem:[%s2993 + $0x4] sm:$0xf]
        %v2996 = vld [vmem:[%s2993 + $0x8] sm:$0xf]
        %v2997 = vld [vmem:[%s2993 + $0xc] sm:$0xf]
        %v2998 = vld [vmem:[%s2993 + $0x10] sm:$0xf]
        %v2999 = vld [vmem:[%s2993 + $0x14] sm:$0xf]
        %v3000 = vld [vmem:[%s2993 + $0x18] sm:$0xf]
        %v3001 = vld [vmem:[%s2993 + $0x1c] sm:$0xf]
        %v3002 = vld [vmem:[%s2993 + $0x20] sm:$0xf]
        %v3003 = vld [vmem:[%s2993 + $0x24] sm:$0xf]
        %v3004 = vld [vmem:[%s2993 + $0x28] sm:$0xf]
        %v3005 = vld [vmem:[%s2993 + $0x2c] sm:$0xf]
        %v3006 = vld [vmem:[%s2993 + $0x30] sm:$0xf]
        %v3007 = vld [vmem:[%s2993 + $0x34] sm:$0xf]
        %v3008 = vld [vmem:[%s2993 + $0x38] sm:$0xf]
        %v3009 = vld [vmem:[%s2993 + $0x3c] sm:$0xf]
        %v3010 = vld [vmem:[%s2993 + $0x40] sm:$0xf]
        %v3011 = vld [vmem:[%s2993 + $0x44] sm:$0xf]
        %v3012 = vld [vmem:[%s2993 + $0x48] sm:$0xf]
        %v3013 = vld [vmem:[%s2993 + $0x4c] sm:$0xf]
        %v3014 = vld [vmem:[%s2993 + $0x50] sm:$0xf]
        %v3015 = vld [vmem:[%s2993 + $0x54] sm:$0xf]
        %v3016 = vld [vmem:[%s2993 + $0x58] sm:$0xf]
        %v3017 = vld [vmem:[%s2993 + $0x5c] sm:$0xf]
        %v3018 = vpack.c.b16 %v2979, %v2977
        %v3019 = vpack.c.b16 %v2980, %v2978
        %v3020 = vpack.c.b16 %v2983, %v2981
        %v3021 = vpack.c.b16 %v2984, %v2982
        %v3022 = vpack.c.b16 %v2987, %v2985
        %v3023 = vpack.c.b16 %v2988, %v2986
        %v3024 = vpack.c.b16 %v2991, %v2989
        %v3025 = vpack.c.b16 %v2992, %v2990
        %v3054 = vunpack.c.l.b16 %v2994
        %v3055 = vunpack.c.l.b16 %v2995
        %v3056 = vunpack.c.l.b16 %v2996
        %v3057 = vunpack.c.l.b16 %v2997
        %v3058 = vunpack.c.l.b16 %v2998
        %v3059 = vunpack.c.l.b16 %v2999
        %v3060 = vunpack.c.l.b16 %v3000
        %v3061 = vunpack.c.l.b16 %v3001
        %v3062 = vunpack.c.l.b16 %v3002
        %v3063 = vunpack.c.l.b16 %v3003
        %v3064 = vunpack.c.l.b16 %v3004
        %v3065 = vunpack.c.l.b16 %v3005
        %v3066 = vunpack.c.l.b16 %v3006
        %v3067 = vunpack.c.l.b16 %v3007
        %v3068 = vunpack.c.l.b16 %v3008
        %v3069 = vunpack.c.l.b16 %v3009
        %v3070 = vunpack.c.l.b16 %v3010
        %v3071 = vunpack.c.l.b16 %v3011
        %v3072 = vunpack.c.l.b16 %v3012
        %v3073 = vunpack.c.l.b16 %v3013
        %v3074 = vunpack.c.l.b16 %v3014
        %v3075 = vunpack.c.l.b16 %v3015
        %v3076 = vunpack.c.l.b16 %v3016
        %v3077 = vunpack.c.l.b16 %v3017
        %v3078 = vpack.c.b16 %v3055, %v3054
        %v3079 = vpack.c.b16 %v3057, %v3056
        %v3080 = vpack.c.b16 %v3059, %v3058
        %v3081 = vpack.c.b16 %v3061, %v3060
        %v3082 = vpack.c.b16 %v3063, %v3062
        %v3083 = vpack.c.b16 %v3065, %v3064
        %v3084 = vpack.c.b16 %v3067, %v3066
        %v3085 = vpack.c.b16 %v3069, %v3068
        %v3086 = vpack.c.b16 %v3071, %v3070
        %v3087 = vpack.c.b16 %v3073, %v3072
        %v3088 = vpack.c.b16 %v3075, %v3074
        %v3089 = vpack.c.b16 %v3077, %v3076
        %v3103 = vsel %vm874, %v3019, 0
        %v3106 = vsel %vm874, %v3021, 0
        %v3109 = vsel %vm874, %v3023, 0
        %v3112 = vsel %vm874, %v3025, 0
        %3114 = vmatprep.subr.bf16.mxu0 0
        %3115 = vmatpush1.bf16.msra.mxu0 %v3078
        %3116 = vmatprep.subr.bf16.mxu0 0
        %3117 = vmatpush1.bf16.msra.mxu0 %v3079
        %3118 = vmatprep.subr.bf16.mxu0 0
        %3119 = vmatpush1.bf16.msra.mxu0 %v3080
        %3120 = vmatprep.subr.bf16.mxu0 0
        %3121 = vmatpush1.bf16.msra.mxu0 %v3081
        %3122 = vmatprep.subr.bf16.mxu0 0
        %3123 = vmatpush1.bf16.msra.mxu0 %v3082
        %3124 = vmatprep.subr.bf16.mxu0 0
        %3125 = vmatpush1.bf16.msra.mxu0 %v3083
        %3126 = vmatprep.subr.bf16.mxu0 0
        %3127 = vmatpush1.bf16.msra.mxu0 %v3084
        %3128 = vmatprep.subr.bf16.mxu0 0
        %3129 = vmatpush1.bf16.msra.mxu0 %v3085
        %3130 = vmatprep.subr.bf16.mxu0 0
        %3131 = vmatpush1.bf16.msra.mxu0 %v3086
        %3132 = vmatprep.subr.bf16.mxu0 0
        %3133 = vmatpush1.bf16.msra.mxu0 %v3087
        %3134 = vmatprep.subr.bf16.mxu0 0
        %3135 = vmatpush1.bf16.msra.mxu0 %v3088
        %3136 = vmatprep.subr.bf16.mxu0 0
        %3137 = vmatpush1.bf16.msra.mxu0 %v3089
        %3138 = vmatprep.subr.bf16.mxu0 0
        %3139 = vmatpush1.bf16.msra.mxu0 0
        %3140 = vmatprep.subr.bf16.mxu0 0
        %3141 = vmatpush1.bf16.msra.mxu0 0
        %3142 = vmatprep.subr.bf16.mxu0 0
        %3143 = vmatpush1.bf16.msra.mxu0 0
        %3144 = vmatprep.subr.bf16.mxu0 0
        %3145 = vmatpush1.bf16.msra.mxu0 0
        %3146 = vmatprep.mubr.bf16.mxu0 %v3103
        %3147 = vmatmul.mubr.bf16.gmra.mrb[0].mxu0 %v3018
        %v3148 = vpop.f32.mrb[0].mxu0
        %v3149 = vadd.f32 0.0, %v3148
        %v3150 = vpop.f32.mrb[0].mxu0
        %v3151 = vpop.f32.mrb[0].mxu0
        %v3152 = vadd.f32 0.0, %v3151
        %v3153 = vpop.f32.mrb[0].mxu0
        %3154 = vmatprep.mubr.bf16.mxu0 %v3106
        %3155 = vmatmul.mubr.bf16.gmra.mrb[0].mxu0 %v3020
        %v3156 = vpop.f32.mrb[0].mxu0
        %v3157 = vadd.f32 0.0, %v3156
        %v3158 = vpop.f32.mrb[0].mxu0
        %v3159 = vpop.f32.mrb[0].mxu0
        %v3160 = vadd.f32 0.0, %v3159
        %v3161 = vpop.f32.mrb[0].mxu0
        %3162 = vmatprep.mubr.bf16.mxu0 %v3109
        %3163 = vmatmul.mubr.bf16.gmra.mrb[0].mxu0 %v3022
        %v3164 = vpop.f32.mrb[0].mxu0
        %v3165 = vadd.f32 0.0, %v3164
        %v3166 = vpop.f32.mrb[0].mxu0
        %v3167 = vpop.f32.mrb[0].mxu0
        %v3168 = vadd.f32 0.0, %v3167
        %v3169 = vpop.f32.mrb[0].mxu0
        %3170 = vmatprep.mubr.bf16.mxu0 %v3112
        %3171 = vmatmul.mubr.bf16.gmra.mrb[0].mxu0 %v3024
        %v3172 = vpop.f32.mrb[0].mxu0
        %v3173 = vadd.f32 0.0, %v3172
        %v3174 = vpop.f32.mrb[0].mxu0
        %v3175 = vpop.f32.mrb[0].mxu0
        %v3176 = vadd.f32 0.0, %v3175
        %v3177 = vpop.f32.mrb[0].mxu0
        %3178 = vdwg.mxu0
        %v3179 = vadd.f32 %v2778, %v3149
        %v3180 = vadd.f32 %v2781, %v3152
        %v3181 = vadd.f32 %v2786, %v3157
        %v3182 = vadd.f32 %v2789, %v3160
        %v3183 = vadd.f32 %v2794, %v3165
        %v3184 = vadd.f32 %v2797, %v3168
        %v3185 = vadd.f32 %v2802, %v3173
        %v3186 = vadd.f32 %v2805, %v3176
        %v3187 = vld [vmem:[#allocation6 + $0x2] sm:$0x1]
        %v3188 = vld [vmem:[#allocation8 + $0x2] sm:$0x1]
        %v3189 = vlaneseq
        %v3190 = vshrl.u32 %v3189, 7
        %v3191 = vsub.s32 0, %v3190
        %v3192 = vrot.slane %v3187, %v3191
        %v3193 = vmul.f32 %v3179, %v3192
        %v3194 = vmul.f32 %v3180, %v3192
        %v3195 = vmul.f32 %v3181, %v3192
        %v3196 = vmul.f32 %v3182, %v3192
        %v3197 = vmul.f32 %v3183, %v3192
        %v3198 = vmul.f32 %v3184, %v3192
        %v3199 = vmul.f32 %v3185, %v3192
        %v3200 = vmul.f32 %v3186, %v3192
        %v3201 = vlaneseq
        %v3202 = vshrl.u32 %v3201, 7
        %v3203 = vsub.s32 0, %v3202
        %v3204 = vrot.slane %v3188, %v3203
        %v3205 = vadd.f32 %v3193, %v3204
        %v3206 = vadd.f32 %v3194, %v3204
        %v3207 = vadd.f32 %v3195, %v3204
        %v3208 = vadd.f32 %v3196, %v3204
        %v3209 = vadd.f32 %v3197, %v3204
        %v3210 = vadd.f32 %v3198, %v3204
        %v3211 = vadd.f32 %v3199, %v3204
        %v3212 = vadd.f32 %v3200, %v3204
        %vm3213 = vcmp.ge.f32.partialorder %v3205, 0.0
        %vm3214 = vcmp.ge.f32.partialorder %v3206, 0.0
        %vm3215 = vcmp.ge.f32.partialorder %v3207, 0.0
        %vm3216 = vcmp.ge.f32.partialorder %v3208, 0.0
        %vm3217 = vcmp.ge.f32.partialorder %v3209, 0.0
        %vm3218 = vcmp.ge.f32.partialorder %v3210, 0.0
        %vm3219 = vcmp.ge.f32.partialorder %v3211, 0.0
        %vm3220 = vcmp.ge.f32.partialorder %v3212, 0.0
        %v3221 = vmul.f32 %v3205, 0.1
        %v3222 = vmul.f32 %v3206, 0.1
        %v3223 = vmul.f32 %v3207, 0.1
        %v3224 = vmul.f32 %v3208, 0.1
        %v3225 = vmul.f32 %v3209, 0.1
        %v3226 = vmul.f32 %v3210, 0.1
        %v3227 = vmul.f32 %v3211, 0.1
        %v3228 = vmul.f32 %v3212, 0.1
        %v3229 = vsel %vm3213, %v3205, %v3221
        %v3230 = vsel %vm3214, %v3206, %v3222
        %v3231 = vsel %vm3215, %v3207, %v3223
        %v3232 = vsel %vm3216, %v3208, %v3224
        %v3233 = vsel %vm3217, %v3209, %v3225
        %v3234 = vsel %vm3218, %v3210, %v3226
        %v3235 = vsel %vm3219, %v3211, %v3227
        %v3236 = vsel %vm3220, %v3212, %v3228
        %vm3237 = vsmask.f32 3328
        %vm3238 = vsmask.f32 7440
        %vm3239 = vmor %vm3237, %vm3238
        %v3240 = vshrl.u32 %v2277, 16
        %v3242 = vrot.slane %v3240, 4
        %v3243 = vshll.u32 %v2277, 16
        %v3245 = vrot.slane %v3243, 5
        %v3246 = vor.u32 %v3242, %v3245
        %v3247 = vrot.slane %v3246, 4
        %v3249 = vshll.u32 %v2278, 16
        %v3251 = vrot.slane %v3249, 5
        %v3252 = vsel %vm3239, %v3247, %v3251
        %v3253 = vshrl.u32 %v2279, 16
        %v3255 = vrot.slane %v3253, 4
        %v3256 = vshll.u32 %v2279, 16
        %v3258 = vrot.slane %v3256, 5
        %v3259 = vor.u32 %v3255, %v3258
        %v3260 = vrot.slane %v3259, 4
        %v3262 = vshll.u32 %v2280, 16
        %v3264 = vrot.slane %v3262, 5
        %v3265 = vsel %vm3239, %v3260, %v3264
        %v3266 = vshrl.u32 %v2281, 16
        %v3268 = vrot.slane %v3266, 4
        %v3269 = vshll.u32 %v2281, 16
        %v3271 = vrot.slane %v3269, 5
        %v3272 = vor.u32 %v3268, %v3271
        %v3273 = vrot.slane %v3272, 4
        %v3275 = vshll.u32 %v2282, 16
        %v3277 = vrot.slane %v3275, 5
        %v3278 = vsel %vm3239, %v3273, %v3277
        %v3279 = vshrl.u32 %v2283, 16
        %v3281 = vrot.slane %v3279, 4
        %v3282 = vshll.u32 %v2283, 16
        %v3284 = vrot.slane %v3282, 5
        %v3285 = vor.u32 %v3281, %v3284
        %v3286 = vrot.slane %v3285, 4
        %v3288 = vshll.u32 %v2284, 16
        %v3290 = vrot.slane %v3288, 5
        %v3291 = vsel %vm3239, %v3286, %v3290
        %v3292 = vshrl.u32 %v2285, 16
        %v3294 = vrot.slane %v3292, 4
        %v3295 = vshll.u32 %v2285, 16
        %v3297 = vrot.slane %v3295, 5
        %v3298 = vor.u32 %v3294, %v3297
        %v3299 = vrot.slane %v3298, 4
        %v3301 = vshll.u32 %v2286, 16
        %v3303 = vrot.slane %v3301, 5
        %v3304 = vsel %vm3239, %v3299, %v3303
        %v3305 = vshrl.u32 %v2287, 16
        %v3307 = vrot.slane %v3305, 4
        %v3308 = vshll.u32 %v2287, 16
        %v3310 = vrot.slane %v3308, 5
        %v3311 = vor.u32 %v3307, %v3310
        %v3312 = vrot.slane %v3311, 4
        %v3314 = vshll.u32 %v2288, 16
        %v3316 = vrot.slane %v3314, 5
        %v3317 = vsel %vm3239, %v3312, %v3316
        %v3318 = vshrl.u32 %v2289, 16
        %v3320 = vrot.slane %v3318, 4
        %v3321 = vshll.u32 %v2289, 16
        %v3323 = vrot.slane %v3321, 5
        %v3324 = vor.u32 %v3320, %v3323
        %v3325 = vrot.slane %v3324, 4
        %v3327 = vshll.u32 %v2290, 16
        %v3329 = vrot.slane %v3327, 5
        %v3330 = vsel %vm3239, %v3325, %v3329
        %v3331 = vshrl.u32 %v2291, 16
        %v3333 = vrot.slane %v3331, 4
        %v3334 = vshll.u32 %v2291, 16
        %v3336 = vrot.slane %v3334, 5
        %v3337 = vor.u32 %v3333, %v3336
        %v3338 = vrot.slane %v3337, 4
        %v3340 = vshll.u32 %v2292, 16
        %v3342 = vrot.slane %v3340, 5
        %v3343 = vsel %vm3239, %v3338, %v3342
        %v3352 = vunpack.c.l.bf16 %v3252
        %v3353 = vunpack.c.l.bf16 %v3265
        %v3354 = vunpack.c.l.bf16 %v3278
        %v3355 = vunpack.c.l.bf16 %v3291
        %v3356 = vunpack.c.l.bf16 %v3304
        %v3357 = vunpack.c.l.bf16 %v3317
        %v3358 = vunpack.c.l.bf16 %v3330
        %v3359 = vunpack.c.l.bf16 %v3343
        %v3360 = vadd.f32 %v3229, %v3352
        %v3361 = vadd.f32 %v3230, %v3353
        %v3362 = vadd.f32 %v3231, %v3354
        %v3363 = vadd.f32 %v3232, %v3355
        %v3364 = vadd.f32 %v3233, %v3356
        %v3365 = vadd.f32 %v3234, %v3357
        %v3366 = vadd.f32 %v3235, %v3358
        %v3367 = vadd.f32 %v3236, %v3359
        %v3368 = vpack.c.bf16 %v3360, %v3360
        %v3369 = vpack.c.bf16 %v3361, %v3361
        %v3370 = vpack.c.bf16 %v3362, %v3362
        %v3371 = vpack.c.bf16 %v3363, %v3363
        %v3372 = vpack.c.bf16 %v3364, %v3364
        %v3373 = vpack.c.bf16 %v3365, %v3365
        %v3374 = vpack.c.bf16 %v3366, %v3366
        %v3375 = vpack.c.bf16 %v3367, %v3367
        %v3384 = vunpack.c.l.b16 %v3368
        %v3385 = vunpack.c.l.b16 %v3369
        %v3386 = vunpack.c.l.b16 %v3370
        %v3387 = vunpack.c.l.b16 %v3371
        %v3388 = vunpack.c.l.b16 %v3372
        %v3389 = vunpack.c.l.b16 %v3373
        %v3390 = vunpack.c.l.b16 %v3374
        %v3391 = vunpack.c.l.b16 %v3375
        %v3392 = vpack.c.b16 %v3384, %v3384
        %v3393 = vpack.c.b16 %v3385, %v3385
        %v3394 = vpack.c.b16 %v3386, %v3386
        %v3395 = vpack.c.b16 %v3387, %v3387
        %v3396 = vpack.c.b16 %v3388, %v3388
        %v3397 = vpack.c.b16 %v3389, %v3389
        %v3398 = vpack.c.b16 %v3390, %v3390
        %v3399 = vpack.c.b16 %v3391, %v3391
        %v3401 = vshrl.u32 %v3392, 16
        %v3403 = vrot.slane %v3401, 7
        %v3404 = vshll.u32 %v3392, 16
        %v3406 = vor.u32 %v3403, %v3404
        %v3407 = vrot.slane %v3403, 4
        %v3409 = vshrl.u32 %v3393, 16
        %v3411 = vrot.slane %v3409, 7
        %v3412 = vshll.u32 %v3393, 16
        %v3414 = vor.u32 %v3411, %v3412
        %v3415 = vrot.slane %v3411, 4
        %v3417 = vshrl.u32 %v3394, 16
        %v3419 = vrot.slane %v3417, 7
        %v3420 = vshll.u32 %v3394, 16
        %v3422 = vor.u32 %v3419, %v3420
        %v3423 = vrot.slane %v3419, 4
        %v3425 = vshrl.u32 %v3395, 16
        %v3427 = vrot.slane %v3425, 7
        %v3428 = vshll.u32 %v3395, 16
        %v3430 = vor.u32 %v3427, %v3428
        %v3431 = vrot.slane %v3427, 4
        %v3433 = vshrl.u32 %v3396, 16
        %v3435 = vrot.slane %v3433, 7
        %v3436 = vshll.u32 %v3396, 16
        %v3438 = vor.u32 %v3435, %v3436
        %v3439 = vrot.slane %v3435, 4
        %v3441 = vshrl.u32 %v3397, 16
        %v3443 = vrot.slane %v3441, 7
        %v3444 = vshll.u32 %v3397, 16
        %v3446 = vor.u32 %v3443, %v3444
        %v3447 = vrot.slane %v3443, 4
        %v3449 = vshrl.u32 %v3398, 16
        %v3451 = vrot.slane %v3449, 7
        %v3452 = vshll.u32 %v3398, 16
        %v3454 = vor.u32 %v3451, %v3452
        %v3455 = vrot.slane %v3451, 4
        %v3457 = vshrl.u32 %v3399, 16
        %v3459 = vrot.slane %v3457, 7
        %v3460 = vshll.u32 %v3399, 16
        %v3462 = vor.u32 %v3459, %v3460
        %v3463 = vrot.slane %v3459, 4
        %v3480 = vld [vmem:[%s687] sm:$0xf]
        %v3481 = vsel %vm689, %v3406, %v3480
        %3482 = vst [vmem:[%s687] sm:$0xf] %v3481
        %v3483 = vld [vmem:[%s687 + $0x4] sm:$0x1]
        %v3484 = vsel %vm275, %v3407, %v3483
        %3485 = vst [vmem:[%s687 + $0x4] sm:$0x1] %v3484
        %v3486 = vld [vmem:[%s687 + $0x8] sm:$0xf]
        %v3487 = vsel %vm689, %v3414, %v3486
        %3488 = vst [vmem:[%s687 + $0x8] sm:$0xf] %v3487
        %v3489 = vld [vmem:[%s687 + $0xc] sm:$0x1]
        %v3490 = vsel %vm275, %v3415, %v3489
        %3491 = vst [vmem:[%s687 + $0xc] sm:$0x1] %v3490
        %v3492 = vld [vmem:[%s687 + $0x10] sm:$0xf]
        %v3493 = vsel %vm689, %v3422, %v3492
        %3494 = vst [vmem:[%s687 + $0x10] sm:$0xf] %v3493
        %v3495 = vld [vmem:[%s687 + $0x14] sm:$0x1]
        %v3496 = vsel %vm275, %v3423, %v3495
        %3497 = vst [vmem:[%s687 + $0x14] sm:$0x1] %v3496
        %v3498 = vld [vmem:[%s687 + $0x18] sm:$0xf]
        %v3499 = vsel %vm689, %v3430, %v3498
        %3500 = vst [vmem:[%s687 + $0x18] sm:$0xf] %v3499
        %v3501 = vld [vmem:[%s687 + $0x1c] sm:$0x1]
        %v3502 = vsel %vm275, %v3431, %v3501
        %3503 = vst [vmem:[%s687 + $0x1c] sm:$0x1] %v3502
        %v3504 = vld [vmem:[%s687 + $0x20] sm:$0xf]
        %v3505 = vsel %vm689, %v3438, %v3504
        %3506 = vst [vmem:[%s687 + $0x20] sm:$0xf] %v3505
        %v3507 = vld [vmem:[%s687 + $0x24] sm:$0x1]
        %v3508 = vsel %vm275, %v3439, %v3507
        %3509 = vst [vmem:[%s687 + $0x24] sm:$0x1] %v3508
        %v3510 = vld [vmem:[%s687 + $0x28] sm:$0xf]
        %v3511 = vsel %vm689, %v3446, %v3510
        %3512 = vst [vmem:[%s687 + $0x28] sm:$0xf] %v3511
        %v3513 = vld [vmem:[%s687 + $0x2c] sm:$0x1]
        %v3514 = vsel %vm275, %v3447, %v3513
        %3515 = vst [vmem:[%s687 + $0x2c] sm:$0x1] %v3514
        %v3516 = vld [vmem:[%s687 + $0x30] sm:$0xf]
        %v3517 = vsel %vm689, %v3454, %v3516
        %3518 = vst [vmem:[%s687 + $0x30] sm:$0xf] %v3517
        %v3519 = vld [vmem:[%s687 + $0x34] sm:$0x1]
        %v3520 = vsel %vm275, %v3455, %v3519
        %3521 = vst [vmem:[%s687 + $0x34] sm:$0x1] %v3520
        %v3522 = vld [vmem:[%s687 + $0x38] sm:$0xf]
        %v3523 = vsel %vm689, %v3462, %v3522
        %3524 = vst [vmem:[%s687 + $0x38] sm:$0xf] %v3523
        %v3525 = vld [vmem:[%s687 + $0x3c] sm:$0x1]
        %v3526 = vsel %vm275, %v3463, %v3525
        %3527 = vst [vmem:[%s687 + $0x3c] sm:$0x1] %v3526
        %v3528 = vld [vmem:[#allocation2] sm:$0xf]
        %v3529 = vld [vmem:[#allocation2 + $0x4] sm:$0x1]
        %v3530 = vld [vmem:[#allocation2 + $0x8] sm:$0xf]
        %v3531 = vld [vmem:[#allocation2 + $0xc] sm:$0x1]
        %v3532 = vld [vmem:[#allocation2 + $0x10] sm:$0xf]
        %v3533 = vld [vmem:[#allocation2 + $0x14] sm:$0x1]
        %v3534 = vld [vmem:[#allocation2 + $0x18] sm:$0xf]
        %v3535 = vld [vmem:[#allocation2 + $0x1c] sm:$0x1]
        %v3536 = vld [vmem:[#allocation2 + $0x20] sm:$0xf]
        %v3537 = vld [vmem:[#allocation2 + $0x24] sm:$0x1]
        %v3538 = vld [vmem:[#allocation2 + $0x28] sm:$0xf]
        %v3539 = vld [vmem:[#allocation2 + $0x2c] sm:$0x1]
        %v3540 = vld [vmem:[#allocation2 + $0x30] sm:$0xf]
        %v3541 = vld [vmem:[#allocation2 + $0x34] sm:$0x1]
        %v3542 = vld [vmem:[#allocation2 + $0x38] sm:$0xf]
        %v3543 = vld [vmem:[#allocation2 + $0x3c] sm:$0x1]
        %v3560 = vunpack.c.l.b16 %v3528
        %v3561 = vunpack.c.l.b16 %v3529
        %v3562 = vunpack.c.l.b16 %v3530
        %v3563 = vunpack.c.l.b16 %v3531
        %v3564 = vunpack.c.l.b16 %v3532
        %v3565 = vunpack.c.l.b16 %v3533
        %v3566 = vunpack.c.l.b16 %v3534
        %v3567 = vunpack.c.l.b16 %v3535
        %v3568 = vunpack.c.l.b16 %v3536
        %v3569 = vunpack.c.l.b16 %v3537
        %v3570 = vunpack.c.l.b16 %v3538
        %v3571 = vunpack.c.l.b16 %v3539
        %v3572 = vunpack.c.l.b16 %v3540
        %v3573 = vunpack.c.l.b16 %v3541
        %v3574 = vunpack.c.l.b16 %v3542
        %v3575 = vunpack.c.l.b16 %v3543
        %v3576 = vpack.c.b16 %v3561, %v3560
        %v3577 = vpack.c.b16 %v3563, %v3562
        %v3578 = vpack.c.b16 %v3565, %v3564
        %v3579 = vpack.c.b16 %v3567, %v3566
        %v3580 = vpack.c.b16 %v3569, %v3568
        %v3581 = vpack.c.b16 %v3571, %v3570
        %v3582 = vpack.c.b16 %v3573, %v3572
        %v3583 = vpack.c.b16 %v3575, %v3574
        %v3585 = vshrl.u32 %v3576, 16
        %v3587 = vshll.u32 %v3576, 16
        %v3589 = vrot.slane %v3587, 1
        %v3590 = vor.u32 %v3585, %v3589
        %v3592 = vshrl.u32 %v3577, 16
        %v3594 = vshll.u32 %v3577, 16
        %v3596 = vrot.slane %v3594, 1
        %v3597 = vor.u32 %v3592, %v3596
        %v3599 = vshrl.u32 %v3578, 16
        %v3601 = vshll.u32 %v3578, 16
        %v3603 = vrot.slane %v3601, 1
        %v3604 = vor.u32 %v3599, %v3603
        %v3606 = vshrl.u32 %v3579, 16
        %v3608 = vshll.u32 %v3579, 16
        %v3610 = vrot.slane %v3608, 1
        %v3611 = vor.u32 %v3606, %v3610
        %v3613 = vshrl.u32 %v3580, 16
        %v3615 = vshll.u32 %v3580, 16
        %v3617 = vrot.slane %v3615, 1
        %v3618 = vor.u32 %v3613, %v3617
        %v3620 = vshrl.u32 %v3581, 16
        %v3622 = vshll.u32 %v3581, 16
        %v3624 = vrot.slane %v3622, 1
        %v3625 = vor.u32 %v3620, %v3624
        %v3627 = vshrl.u32 %v3582, 16
        %v3629 = vshll.u32 %v3582, 16
        %v3631 = vrot.slane %v3629, 1
        %v3632 = vor.u32 %v3627, %v3631
        %v3634 = vshrl.u32 %v3583, 16
        %v3636 = vshll.u32 %v3583, 16
        %v3638 = vrot.slane %v3636, 1
        %v3639 = vor.u32 %v3634, %v3638
        %3640 = vrot.lane.b32.xlu0 %v3590, 64
        %v3641 = vpop.permute.xlu0 %3640
        %3642 = vrot.lane.b32.xlu0 %v3597, 64
        %v3643 = vpop.permute.xlu0 %3642
        %3644 = vrot.lane.b32.xlu0 %v3604, 64
        %v3645 = vpop.permute.xlu0 %3644
        %3646 = vrot.lane.b32.xlu0 %v3611, 64
        %v3647 = vpop.permute.xlu0 %3646
        %3648 = vrot.lane.b32.xlu0 %v3618, 64
        %v3649 = vpop.permute.xlu0 %3648
        %3650 = vrot.lane.b32.xlu0 %v3625, 64
        %v3651 = vpop.permute.xlu0 %3650
        %3652 = vrot.lane.b32.xlu0 %v3632, 64
        %v3653 = vpop.permute.xlu0 %3652
        %3654 = vrot.lane.b32.xlu0 %v3639, 64
        %v3655 = vpop.permute.xlu0 %3654
        %v3656 = vrot.slane %v3576, 1
        %v3657 = vrot.slane %v3577, 1
        %v3658 = vrot.slane %v3578, 1
        %v3659 = vrot.slane %v3579, 1
        %v3660 = vrot.slane %v3580, 1
        %v3661 = vrot.slane %v3581, 1
        %v3662 = vrot.slane %v3582, 1
        %v3663 = vrot.slane %v3583, 1
        %v3666 = vsel %vm874, %v3528, %v3641
        %v3669 = vsel %vm874, %v3530, %v3643
        %v3672 = vsel %vm874, %v3532, %v3645
        %v3675 = vsel %vm874, %v3534, %v3647
        %v3678 = vsel %vm874, %v3536, %v3649
        %v3681 = vsel %vm874, %v3538, %v3651
        %v3684 = vsel %vm874, %v3540, %v3653
        %v3687 = vsel %vm874, %v3542, %v3655
        %v3696 = vunpack.c.l.b16 %v3666
        %v3697 = vunpack.c.l.b16 %v3656
        %v3698 = vunpack.c.l.b16 %v3669
        %v3699 = vunpack.c.l.b16 %v3657
        %v3700 = vunpack.c.l.b16 %v3672
        %v3701 = vunpack.c.l.b16 %v3658
        %v3702 = vunpack.c.l.b16 %v3675
        %v3703 = vunpack.c.l.b16 %v3659
        %v3704 = vunpack.c.l.b16 %v3678
        %v3705 = vunpack.c.l.b16 %v3660
        %v3706 = vunpack.c.l.b16 %v3681
        %v3707 = vunpack.c.l.b16 %v3661
        %v3708 = vunpack.c.l.b16 %v3684
        %v3709 = vunpack.c.l.b16 %v3662
        %v3710 = vunpack.c.l.b16 %v3687
        %v3711 = vunpack.c.l.b16 %v3663
        %s3712 = scalar_lea.vmem %s2, 576
        %v3713 = vld [vmem:[%s3712] sm:$0xf]
        %v3714 = vld [vmem:[%s3712 + $0x4] sm:$0xf]
        %v3715 = vld [vmem:[%s3712 + $0x8] sm:$0xf]
        %v3716 = vld [vmem:[%s3712 + $0xc] sm:$0xf]
        %v3717 = vld [vmem:[%s3712 + $0x10] sm:$0xf]
        %v3718 = vld [vmem:[%s3712 + $0x14] sm:$0xf]
        %v3719 = vld [vmem:[%s3712 + $0x18] sm:$0xf]
        %v3720 = vld [vmem:[%s3712 + $0x1c] sm:$0xf]
        %v3721 = vld [vmem:[%s3712 + $0x20] sm:$0xf]
        %v3722 = vld [vmem:[%s3712 + $0x24] sm:$0xf]
        %v3723 = vld [vmem:[%s3712 + $0x28] sm:$0xf]
        %v3724 = vld [vmem:[%s3712 + $0x2c] sm:$0xf]
        %v3725 = vld [vmem:[%s3712 + $0x30] sm:$0xf]
        %v3726 = vld [vmem:[%s3712 + $0x34] sm:$0xf]
        %v3727 = vld [vmem:[%s3712 + $0x38] sm:$0xf]
        %v3728 = vld [vmem:[%s3712 + $0x3c] sm:$0xf]
        %v3729 = vld [vmem:[%s3712 + $0x40] sm:$0xf]
        %v3730 = vld [vmem:[%s3712 + $0x44] sm:$0xf]
        %v3731 = vld [vmem:[%s3712 + $0x48] sm:$0xf]
        %v3732 = vld [vmem:[%s3712 + $0x4c] sm:$0xf]
        %v3733 = vld [vmem:[%s3712 + $0x50] sm:$0xf]
        %v3734 = vld [vmem:[%s3712 + $0x54] sm:$0xf]
        %v3735 = vld [vmem:[%s3712 + $0x58] sm:$0xf]
        %v3736 = vld [vmem:[%s3712 + $0x5c] sm:$0xf]
        %v3737 = vld [vmem:[%s687] sm:$0xf]
        %v3738 = vld [vmem:[%s687 + $0x4] sm:$0x1]
        %v3739 = vld [vmem:[%s687 + $0x8] sm:$0xf]
        %v3740 = vld [vmem:[%s687 + $0xc] sm:$0x1]
        %v3741 = vld [vmem:[%s687 + $0x10] sm:$0xf]
        %v3742 = vld [vmem:[%s687 + $0x14] sm:$0x1]
        %v3743 = vld [vmem:[%s687 + $0x18] sm:$0xf]
        %v3744 = vld [vmem:[%s687 + $0x1c] sm:$0x1]
        %v3745 = vld [vmem:[%s687 + $0x20] sm:$0xf]
        %v3746 = vld [vmem:[%s687 + $0x24] sm:$0x1]
        %v3747 = vld [vmem:[%s687 + $0x28] sm:$0xf]
        %v3748 = vld [vmem:[%s687 + $0x2c] sm:$0x1]
        %v3749 = vld [vmem:[%s687 + $0x30] sm:$0xf]
        %v3750 = vld [vmem:[%s687 + $0x34] sm:$0x1]
        %v3751 = vld [vmem:[%s687 + $0x38] sm:$0xf]
        %v3752 = vld [vmem:[%s687 + $0x3c] sm:$0x1]
        %v3769 = vunpack.c.l.b16 %v3737
        %v3770 = vunpack.c.l.b16 %v3738
        %v3771 = vunpack.c.l.b16 %v3739
        %v3772 = vunpack.c.l.b16 %v3740
        %v3773 = vunpack.c.l.b16 %v3741
        %v3774 = vunpack.c.l.b16 %v3742
        %v3775 = vunpack.c.l.b16 %v3743
        %v3776 = vunpack.c.l.b16 %v3744
        %v3777 = vunpack.c.l.b16 %v3745
        %v3778 = vunpack.c.l.b16 %v3746
        %v3779 = vunpack.c.l.b16 %v3747
        %v3780 = vunpack.c.l.b16 %v3748
        %v3781 = vunpack.c.l.b16 %v3749
        %v3782 = vunpack.c.l.b16 %v3750
        %v3783 = vunpack.c.l.b16 %v3751
        %v3784 = vunpack.c.l.b16 %v3752
        %v3785 = vpack.c.b16 %v3770, %v3769
        %v3786 = vpack.c.b16 %v3772, %v3771
        %v3787 = vpack.c.b16 %v3774, %v3773
        %v3788 = vpack.c.b16 %v3776, %v3775
        %v3789 = vpack.c.b16 %v3778, %v3777
        %v3790 = vpack.c.b16 %v3780, %v3779
        %v3791 = vpack.c.b16 %v3782, %v3781
        %v3792 = vpack.c.b16 %v3784, %v3783
        %v3794 = vshrl.u32 %v3785, 16
        %v3796 = vshll.u32 %v3785, 16
        %v3798 = vrot.slane %v3796, 1
        %v3799 = vor.u32 %v3794, %v3798
        %v3801 = vshrl.u32 %v3786, 16
        %v3803 = vshll.u32 %v3786, 16
        %v3805 = vrot.slane %v3803, 1
        %v3806 = vor.u32 %v3801, %v3805
        %v3808 = vshrl.u32 %v3787, 16
        %v3810 = vshll.u32 %v3787, 16
        %v3812 = vrot.slane %v3810, 1
        %v3813 = vor.u32 %v3808, %v3812
        %v3815 = vshrl.u32 %v3788, 16
        %v3817 = vshll.u32 %v3788, 16
        %v3819 = vrot.slane %v3817, 1
        %v3820 = vor.u32 %v3815, %v3819
        %v3822 = vshrl.u32 %v3789, 16
        %v3824 = vshll.u32 %v3789, 16
        %v3826 = vrot.slane %v3824, 1
        %v3827 = vor.u32 %v3822, %v3826
        %v3829 = vshrl.u32 %v3790, 16
        %v3831 = vshll.u32 %v3790, 16
        %v3833 = vrot.slane %v3831, 1
        %v3834 = vor.u32 %v3829, %v3833
        %v3836 = vshrl.u32 %v3791, 16
        %v3838 = vshll.u32 %v3791, 16
        %v3840 = vrot.slane %v3838, 1
        %v3841 = vor.u32 %v3836, %v3840
        %v3843 = vshrl.u32 %v3792, 16
        %v3845 = vshll.u32 %v3792, 16
        %v3847 = vrot.slane %v3845, 1
        %v3848 = vor.u32 %v3843, %v3847
        %3849 = vrot.lane.b32.xlu0 %v3799, 64
        %v3850 = vpop.permute.xlu0 %3849
        %3851 = vrot.lane.b32.xlu0 %v3806, 64
        %v3852 = vpop.permute.xlu0 %3851
        %3853 = vrot.lane.b32.xlu0 %v3813, 64
        %v3854 = vpop.permute.xlu0 %3853
        %3855 = vrot.lane.b32.xlu0 %v3820, 64
        %v3856 = vpop.permute.xlu0 %3855
        %3857 = vrot.lane.b32.xlu0 %v3827, 64
        %v3858 = vpop.permute.xlu0 %3857
        %3859 = vrot.lane.b32.xlu0 %v3834, 64
        %v3860 = vpop.permute.xlu0 %3859
        %3861 = vrot.lane.b32.xlu0 %v3841, 64
        %v3862 = vpop.permute.xlu0 %3861
        %3863 = vrot.lane.b32.xlu0 %v3848, 64
        %v3864 = vpop.permute.xlu0 %3863
        %v3865 = vrot.slane %v3785, 1
        %v3866 = vrot.slane %v3786, 1
        %v3867 = vrot.slane %v3787, 1
        %v3868 = vrot.slane %v3788, 1
        %v3869 = vrot.slane %v3789, 1
        %v3870 = vrot.slane %v3790, 1
        %v3871 = vrot.slane %v3791, 1
        %v3872 = vrot.slane %v3792, 1
        %v3875 = vsel %vm874, %v3737, %v3850
        %v3878 = vsel %vm874, %v3739, %v3852
        %v3881 = vsel %vm874, %v3741, %v3854
        %v3884 = vsel %vm874, %v3743, %v3856
        %v3887 = vsel %vm874, %v3745, %v3858
        %v3890 = vsel %vm874, %v3747, %v3860
        %v3893 = vsel %vm874, %v3749, %v3862
        %v3896 = vsel %vm874, %v3751, %v3864
        %v3905 = vunpack.c.l.b16 %v3875
        %v3906 = vunpack.c.l.b16 %v3865
        %v3907 = vunpack.c.l.b16 %v3878
        %v3908 = vunpack.c.l.b16 %v3866
        %v3909 = vunpack.c.l.b16 %v3881
        %v3910 = vunpack.c.l.b16 %v3867
        %v3911 = vunpack.c.l.b16 %v3884
        %v3912 = vunpack.c.l.b16 %v3868
        %v3913 = vunpack.c.l.b16 %v3887
        %v3914 = vunpack.c.l.b16 %v3869
        %v3915 = vunpack.c.l.b16 %v3890
        %v3916 = vunpack.c.l.b16 %v3870
        %v3917 = vunpack.c.l.b16 %v3893
        %v3918 = vunpack.c.l.b16 %v3871
        %v3919 = vunpack.c.l.b16 %v3896
        %v3920 = vunpack.c.l.b16 %v3872
        %s3921 = scalar_lea.vmem %s2, 672
        %v3922 = vld [vmem:[%s3921] sm:$0xf]
        %v3923 = vld [vmem:[%s3921 + $0x4] sm:$0xf]
        %v3924 = vld [vmem:[%s3921 + $0x8] sm:$0xf]
        %v3925 = vld [vmem:[%s3921 + $0xc] sm:$0xf]
        %v3926 = vld [vmem:[%s3921 + $0x10] sm:$0xf]
        %v3927 = vld [vmem:[%s3921 + $0x14] sm:$0xf]
        %v3928 = vld [vmem:[%s3921 + $0x18] sm:$0xf]
        %v3929 = vld [vmem:[%s3921 + $0x1c] sm:$0xf]
        %v3930 = vld [vmem:[%s3921 + $0x20] sm:$0xf]
        %v3931 = vld [vmem:[%s3921 + $0x24] sm:$0xf]
        %v3932 = vld [vmem:[%s3921 + $0x28] sm:$0xf]
        %v3933 = vld [vmem:[%s3921 + $0x2c] sm:$0xf]
        %v3934 = vld [vmem:[%s3921 + $0x30] sm:$0xf]
        %v3935 = vld [vmem:[%s3921 + $0x34] sm:$0xf]
        %v3936 = vld [vmem:[%s3921 + $0x38] sm:$0xf]
        %v3937 = vld [vmem:[%s3921 + $0x3c] sm:$0xf]
        %v3938 = vld [vmem:[%s3921 + $0x40] sm:$0xf]
        %v3939 = vld [vmem:[%s3921 + $0x44] sm:$0xf]
        %v3940 = vld [vmem:[%s3921 + $0x48] sm:$0xf]
        %v3941 = vld [vmem:[%s3921 + $0x4c] sm:$0xf]
        %v3942 = vld [vmem:[%s3921 + $0x50] sm:$0xf]
        %v3943 = vld [vmem:[%s3921 + $0x54] sm:$0xf]
        %v3944 = vld [vmem:[%s3921 + $0x58] sm:$0xf]
        %v3945 = vld [vmem:[%s3921 + $0x5c] sm:$0xf]
        %v3946 = vpack.c.b16 %v3907, %v3905
        %v3947 = vpack.c.b16 %v3908, %v3906
        %v3948 = vpack.c.b16 %v3911, %v3909
        %v3949 = vpack.c.b16 %v3912, %v3910
        %v3950 = vpack.c.b16 %v3915, %v3913
        %v3951 = vpack.c.b16 %v3916, %v3914
        %v3952 = vpack.c.b16 %v3919, %v3917
        %v3953 = vpack.c.b16 %v3920, %v3918
        %v3982 = vunpack.c.l.b16 %v3922
        %v3983 = vunpack.c.l.b16 %v3923
        %v3984 = vunpack.c.l.b16 %v3924
        %v3985 = vunpack.c.l.b16 %v3925
        %v3986 = vunpack.c.l.b16 %v3926
        %v3987 = vunpack.c.l.b16 %v3927
        %v3988 = vunpack.c.l.b16 %v3928
        %v3989 = vunpack.c.l.b16 %v3929
        %v3990 = vunpack.c.l.b16 %v3930
        %v3991 = vunpack.c.l.b16 %v3931
        %v3992 = vunpack.c.l.b16 %v3932
        %v3993 = vunpack.c.l.b16 %v3933
        %v3994 = vunpack.c.l.b16 %v3934
        %v3995 = vunpack.c.l.b16 %v3935
        %v3996 = vunpack.c.l.b16 %v3936
        %v3997 = vunpack.c.l.b16 %v3937
        %v3998 = vunpack.c.l.b16 %v3938
        %v3999 = vunpack.c.l.b16 %v3939
        %v4000 = vunpack.c.l.b16 %v3940
        %v4001 = vunpack.c.l.b16 %v3941
        %v4002 = vunpack.c.l.b16 %v3942
        %v4003 = vunpack.c.l.b16 %v3943
        %v4004 = vunpack.c.l.b16 %v3944
        %v4005 = vunpack.c.l.b16 %v3945
        %v4006 = vpack.c.b16 %v3983, %v3982
        %v4007 = vpack.c.b16 %v3985, %v3984
        %v4008 = vpack.c.b16 %v3987, %v3986
        %v4009 = vpack.c.b16 %v3989, %v3988
        %v4010 = vpack.c.b16 %v3991, %v3990
        %v4011 = vpack.c.b16 %v3993, %v3992
        %v4012 = vpack.c.b16 %v3995, %v3994
        %v4013 = vpack.c.b16 %v3997, %v3996
        %v4014 = vpack.c.b16 %v3999, %v3998
        %v4015 = vpack.c.b16 %v4001, %v4000
        %v4016 = vpack.c.b16 %v4003, %v4002
        %v4017 = vpack.c.b16 %v4005, %v4004
        %v4031 = vsel %vm874, %v3947, 0
        %v4034 = vsel %vm874, %v3949, 0
        %v4037 = vsel %vm874, %v3951, 0
        %v4040 = vsel %vm874, %v3953, 0
        %4042 = vmatprep.subr.bf16.mxu0 0
        %4043 = vmatpush1.bf16.msra.mxu0 %v4006
        %4044 = vmatprep.subr.bf16.mxu0 0
        %4045 = vmatpush1.bf16.msra.mxu0 %v4007
        %4046 = vmatprep.subr.bf16.mxu0 0
        %4047 = vmatpush1.bf16.msra.mxu0 %v4008
        %4048 = vmatprep.subr.bf16.mxu0 0
        %4049 = vmatpush1.bf16.msra.mxu0 %v4009
        %4050 = vmatprep.subr.bf16.mxu0 0
        %4051 = vmatpush1.bf16.msra.mxu0 %v4010
        %4052 = vmatprep.subr.bf16.mxu0 0
        %4053 = vmatpush1.bf16.msra.mxu0 %v4011
        %4054 = vmatprep.subr.bf16.mxu0 0
        %4055 = vmatpush1.bf16.msra.mxu0 %v4012
        %4056 = vmatprep.subr.bf16.mxu0 0
        %4057 = vmatpush1.bf16.msra.mxu0 %v4013
        %4058 = vmatprep.subr.bf16.mxu0 0
        %4059 = vmatpush1.bf16.msra.mxu0 %v4014
        %4060 = vmatprep.subr.bf16.mxu0 0
        %4061 = vmatpush1.bf16.msra.mxu0 %v4015
        %4062 = vmatprep.subr.bf16.mxu0 0
        %4063 = vmatpush1.bf16.msra.mxu0 %v4016
        %4064 = vmatprep.subr.bf16.mxu0 0
        %4065 = vmatpush1.bf16.msra.mxu0 %v4017
        %4066 = vmatprep.subr.bf16.mxu0 0
        %4067 = vmatpush1.bf16.msra.mxu0 0
        %4068 = vmatprep.subr.bf16.mxu0 0
        %4069 = vmatpush1.bf16.msra.mxu0 0
        %4070 = vmatprep.subr.bf16.mxu0 0
        %4071 = vmatpush1.bf16.msra.mxu0 0
        %4072 = vmatprep.subr.bf16.mxu0 0
        %4073 = vmatpush1.bf16.msra.mxu0 0
        %4074 = vmatprep.mubr.bf16.mxu0 %v4031
        %4075 = vmatmul.mubr.bf16.gmra.mrb[0].mxu0 %v3946
        %v4076 = vpop.f32.mrb[0].mxu0
        %v4077 = vadd.f32 0.0, %v4076
        %v4078 = vpop.f32.mrb[0].mxu0
        %v4079 = vpop.f32.mrb[0].mxu0
        %v4080 = vadd.f32 0.0, %v4079
        %v4081 = vpop.f32.mrb[0].mxu0
        %4082 = vmatprep.mubr.bf16.mxu0 %v4034
        %4083 = vmatmul.mubr.bf16.gmra.mrb[0].mxu0 %v3948
        %v4084 = vpop.f32.mrb[0].mxu0
        %v4085 = vadd.f32 0.0, %v4084
        %v4086 = vpop.f32.mrb[0].mxu0
        %v4087 = vpop.f32.mrb[0].mxu0
        %v4088 = vadd.f32 0.0, %v4087
        %v4089 = vpop.f32.mrb[0].mxu0
        %4090 = vmatprep.mubr.bf16.mxu0 %v4037
        %4091 = vmatmul.mubr.bf16.gmra.mrb[0].mxu0 %v3950
        %v4092 = vpop.f32.mrb[0].mxu0
        %v4093 = vadd.f32 0.0, %v4092
        %v4094 = vpop.f32.mrb[0].mxu0
        %v4095 = vpop.f32.mrb[0].mxu0
        %v4096 = vadd.f32 0.0, %v4095
        %v4097 = vpop.f32.mrb[0].mxu0
        %4098 = vmatprep.mubr.bf16.mxu0 %v4040
        %4099 = vmatmul.mubr.bf16.gmra.mrb[0].mxu0 %v3952
        %v4100 = vpop.f32.mrb[0].mxu0
        %v4101 = vadd.f32 0.0, %v4100
        %v4102 = vpop.f32.mrb[0].mxu0
        %v4103 = vpop.f32.mrb[0].mxu0
        %v4104 = vadd.f32 0.0, %v4103
        %v4105 = vpop.f32.mrb[0].mxu0
        %4106 = vdwg.mxu0
        %v4107 = vpack.c.b16 %v3698, %v3696
        %v4108 = vpack.c.b16 %v3699, %v3697
        %v4109 = vpack.c.b16 %v3702, %v3700
        %v4110 = vpack.c.b16 %v3703, %v3701
        %v4111 = vpack.c.b16 %v3706, %v3704
        %v4112 = vpack.c.b16 %v3707, %v3705
        %v4113 = vpack.c.b16 %v3710, %v3708
        %v4114 = vpack.c.b16 %v3711, %v3709
        %v4143 = vunpack.c.l.b16 %v3713
        %v4144 = vunpack.c.l.b16 %v3714
        %v4145 = vunpack.c.l.b16 %v3715
        %v4146 = vunpack.c.l.b16 %v3716
        %v4147 = vunpack.c.l.b16 %v3717
        %v4148 = vunpack.c.l.b16 %v3718
        %v4149 = vunpack.c.l.b16 %v3719
        %v4150 = vunpack.c.l.b16 %v3720
        %v4151 = vunpack.c.l.b16 %v3721
        %v4152 = vunpack.c.l.b16 %v3722
        %v4153 = vunpack.c.l.b16 %v3723
        %v4154 = vunpack.c.l.b16 %v3724
        %v4155 = vunpack.c.l.b16 %v3725
        %v4156 = vunpack.c.l.b16 %v3726
        %v4157 = vunpack.c.l.b16 %v3727
        %v4158 = vunpack.c.l.b16 %v3728
        %v4159 = vunpack.c.l.b16 %v3729
        %v4160 = vunpack.c.l.b16 %v3730
        %v4161 = vunpack.c.l.b16 %v3731
        %v4162 = vunpack.c.l.b16 %v3732
        %v4163 = vunpack.c.l.b16 %v3733
        %v4164 = vunpack.c.l.b16 %v3734
        %v4165 = vunpack.c.l.b16 %v3735
        %v4166 = vunpack.c.l.b16 %v3736
        %v4167 = vpack.c.b16 %v4144, %v4143
        %v4168 = vpack.c.b16 %v4146, %v4145
        %v4169 = vpack.c.b16 %v4148, %v4147
        %v4170 = vpack.c.b16 %v4150, %v4149
        %v4171 = vpack.c.b16 %v4152, %v4151
        %v4172 = vpack.c.b16 %v4154, %v4153
        %v4173 = vpack.c.b16 %v4156, %v4155
        %v4174 = vpack.c.b16 %v4158, %v4157
        %v4175 = vpack.c.b16 %v4160, %v4159
        %v4176 = vpack.c.b16 %v4162, %v4161
        %v4177 = vpack.c.b16 %v4164, %v4163
        %v4178 = vpack.c.b16 %v4166, %v4165
        %v4192 = vsel %vm874, %v4108, 0
        %v4195 = vsel %vm874, %v4110, 0
        %v4198 = vsel %vm874, %v4112, 0
        %v4201 = vsel %vm874, %v4114, 0
        %4203 = vmatprep.subr.bf16.mxu0 0
        %4204 = vmatpush1.bf16.msra.mxu0 %v4167
        %4205 = vmatprep.subr.bf16.mxu0 0
        %4206 = vmatpush1.bf16.msra.mxu0 %v4168
        %4207 = vmatprep.subr.bf16.mxu0 0
        %4208 = vmatpush1.bf16.msra.mxu0 %v4169
        %4209 = vmatprep.subr.bf16.mxu0 0
        %4210 = vmatpush1.bf16.msra.mxu0 %v4170
        %4211 = vmatprep.subr.bf16.mxu0 0
        %4212 = vmatpush1.bf16.msra.mxu0 %v4171
        %4213 = vmatprep.subr.bf16.mxu0 0
        %4214 = vmatpush1.bf16.msra.mxu0 %v4172
        %4215 = vmatprep.subr.bf16.mxu0 0
        %4216 = vmatpush1.bf16.msra.mxu0 %v4173
        %4217 = vmatprep.subr.bf16.mxu0 0
        %4218 = vmatpush1.bf16.msra.mxu0 %v4174
        %4219 = vmatprep.subr.bf16.mxu0 0
        %4220 = vmatpush1.bf16.msra.mxu0 %v4175
        %4221 = vmatprep.subr.bf16.mxu0 0
        %4222 = vmatpush1.bf16.msra.mxu0 %v4176
        %4223 = vmatprep.subr.bf16.mxu0 0
        %4224 = vmatpush1.bf16.msra.mxu0 %v4177
        %4225 = vmatprep.subr.bf16.mxu0 0
        %4226 = vmatpush1.bf16.msra.mxu0 %v4178
        %4227 = vmatprep.subr.bf16.mxu0 0
        %4228 = vmatpush1.bf16.msra.mxu0 0
        %4229 = vmatprep.subr.bf16.mxu0 0
        %4230 = vmatpush1.bf16.msra.mxu0 0
        %4231 = vmatprep.subr.bf16.mxu0 0
        %4232 = vmatpush1.bf16.msra.mxu0 0
        %4233 = vmatprep.subr.bf16.mxu0 0
        %4234 = vmatpush1.bf16.msra.mxu0 0
        %4235 = vmatprep.mubr.bf16.mxu0 %v4192
        %4236 = vmatmul.mubr.bf16.gmra.mrb[0].mxu0 %v4107
        %v4237 = vpop.f32.mrb[0].mxu0
        %v4238 = vadd.f32 %v4077, %v4237
        %v4239 = vpop.f32.mrb[0].mxu0
        %v4240 = vpop.f32.mrb[0].mxu0
        %v4241 = vadd.f32 %v4080, %v4240
        %v4242 = vpop.f32.mrb[0].mxu0
        %4243 = vmatprep.mubr.bf16.mxu0 %v4195
        %4244 = vmatmul.mubr.bf16.gmra.mrb[0].mxu0 %v4109
        %v4245 = vpop.f32.mrb[0].mxu0
        %v4246 = vadd.f32 %v4085, %v4245
        %v4247 = vpop.f32.mrb[0].mxu0
        %v4248 = vpop.f32.mrb[0].mxu0
        %v4249 = vadd.f32 %v4088, %v4248
        %v4250 = vpop.f32.mrb[0].mxu0
        %4251 = vmatprep.mubr.bf16.mxu0 %v4198
        %4252 = vmatmul.mubr.bf16.gmra.mrb[0].mxu0 %v4111
        %v4253 = vpop.f32.mrb[0].mxu0
        %v4254 = vadd.f32 %v4093, %v4253
        %v4255 = vpop.f32.mrb[0].mxu0
        %v4256 = vpop.f32.mrb[0].mxu0
        %v4257 = vadd.f32 %v4096, %v4256
        %v4258 = vpop.f32.mrb[0].mxu0
        %4259 = vmatprep.mubr.bf16.mxu0 %v4201
        %4260 = vmatmul.mubr.bf16.gmra.mrb[0].mxu0 %v4113
        %v4261 = vpop.f32.mrb[0].mxu0
        %v4262 = vadd.f32 %v4101, %v4261
        %v4263 = vpop.f32.mrb[0].mxu0
        %v4264 = vpop.f32.mrb[0].mxu0
        %v4265 = vadd.f32 %v4104, %v4264
        %v4266 = vpop.f32.mrb[0].mxu0
        %4267 = vdwg.mxu0
        %v4268 = vld [vmem:[%s1478] sm:$0xf]
        %v4269 = vld [vmem:[%s1478 + $0x4] sm:$0x1]
        %v4270 = vld [vmem:[%s1478 + $0x8] sm:$0xf]
        %v4271 = vld [vmem:[%s1478 + $0xc] sm:$0x1]
        %v4272 = vld [vmem:[%s1478 + $0x10] sm:$0xf]
        %v4273 = vld [vmem:[%s1478 + $0x14] sm:$0x1]
        %v4274 = vld [vmem:[%s1478 + $0x18] sm:$0xf]
        %v4275 = vld [vmem:[%s1478 + $0x1c] sm:$0x1]
        %v4276 = vld [vmem:[%s1478 + $0x20] sm:$0xf]
        %v4277 = vld [vmem:[%s1478 + $0x24] sm:$0x1]
        %v4278 = vld [vmem:[%s1478 + $0x28] sm:$0xf]
        %v4279 = vld [vmem:[%s1478 + $0x2c] sm:$0x1]
        %v4280 = vld [vmem:[%s1478 + $0x30] sm:$0xf]
        %v4281 = vld [vmem:[%s1478 + $0x34] sm:$0x1]
        %v4282 = vld [vmem:[%s1478 + $0x38] sm:$0xf]
        %v4283 = vld [vmem:[%s1478 + $0x3c] sm:$0x1]
        %v4300 = vunpack.c.l.b16 %v4268
        %v4301 = vunpack.c.l.b16 %v4269
        %v4302 = vunpack.c.l.b16 %v4270
        %v4303 = vunpack.c.l.b16 %v4271
        %v4304 = vunpack.c.l.b16 %v4272
        %v4305 = vunpack.c.l.b16 %v4273
        %v4306 = vunpack.c.l.b16 %v4274
        %v4307 = vunpack.c.l.b16 %v4275
        %v4308 = vunpack.c.l.b16 %v4276
        %v4309 = vunpack.c.l.b16 %v4277
        %v4310 = vunpack.c.l.b16 %v4278
        %v4311 = vunpack.c.l.b16 %v4279
        %v4312 = vunpack.c.l.b16 %v4280
        %v4313 = vunpack.c.l.b16 %v4281
        %v4314 = vunpack.c.l.b16 %v4282
        %v4315 = vunpack.c.l.b16 %v4283
        %v4316 = vpack.c.b16 %v4301, %v4300
        %v4317 = vpack.c.b16 %v4303, %v4302
        %v4318 = vpack.c.b16 %v4305, %v4304
        %v4319 = vpack.c.b16 %v4307, %v4306
        %v4320 = vpack.c.b16 %v4309, %v4308
        %v4321 = vpack.c.b16 %v4311, %v4310
        %v4322 = vpack.c.b16 %v4313, %v4312
        %v4323 = vpack.c.b16 %v4315, %v4314
        %v4325 = vshrl.u32 %v4316, 16
        %v4327 = vshll.u32 %v4316, 16
        %v4329 = vrot.slane %v4327, 1
        %v4330 = vor.u32 %v4325, %v4329
        %v4332 = vshrl.u32 %v4317, 16
        %v4334 = vshll.u32 %v4317, 16
        %v4336 = vrot.slane %v4334, 1
        %v4337 = vor.u32 %v4332, %v4336
        %v4339 = vshrl.u32 %v4318, 16
        %v4341 = vshll.u32 %v4318, 16
        %v4343 = vrot.slane %v4341, 1
        %v4344 = vor.u32 %v4339, %v4343
        %v4346 = vshrl.u32 %v4319, 16
        %v4348 = vshll.u32 %v4319, 16
        %v4350 = vrot.slane %v4348, 1
        %v4351 = vor.u32 %v4346, %v4350
        %v4353 = vshrl.u32 %v4320, 16
        %v4355 = vshll.u32 %v4320, 16
        %v4357 = vrot.slane %v4355, 1
        %v4358 = vor.u32 %v4353, %v4357
        %v4360 = vshrl.u32 %v4321, 16
        %v4362 = vshll.u32 %v4321, 16
        %v4364 = vrot.slane %v4362, 1
        %v4365 = vor.u32 %v4360, %v4364
        %v4367 = vshrl.u32 %v4322, 16
        %v4369 = vshll.u32 %v4322, 16
        %v4371 = vrot.slane %v4369, 1
        %v4372 = vor.u32 %v4367, %v4371
        %v4374 = vshrl.u32 %v4323, 16
        %v4376 = vshll.u32 %v4323, 16
        %v4378 = vrot.slane %v4376, 1
        %v4379 = vor.u32 %v4374, %v4378
        %4380 = vrot.lane.b32.xlu0 %v4330, 64
        %v4381 = vpop.permute.xlu0 %4380
        %4382 = vrot.lane.b32.xlu0 %v4337, 64
        %v4383 = vpop.permute.xlu0 %4382
        %4384 = vrot.lane.b32.xlu0 %v4344, 64
        %v4385 = vpop.permute.xlu0 %4384
        %4386 = vrot.lane.b32.xlu0 %v4351, 64
        %v4387 = vpop.permute.xlu0 %4386
        %4388 = vrot.lane.b32.xlu0 %v4358, 64
        %v4389 = vpop.permute.xlu0 %4388
        %4390 = vrot.lane.b32.xlu0 %v4365, 64
        %v4391 = vpop.permute.xlu0 %4390
        %4392 = vrot.lane.b32.xlu0 %v4372, 64
        %v4393 = vpop.permute.xlu0 %4392
        %4394 = vrot.lane.b32.xlu0 %v4379, 64
        %v4395 = vpop.permute.xlu0 %4394
        %v4396 = vrot.slane %v4316, 1
        %v4397 = vrot.slane %v4317, 1
        %v4398 = vrot.slane %v4318, 1
        %v4399 = vrot.slane %v4319, 1
        %v4400 = vrot.slane %v4320, 1
        %v4401 = vrot.slane %v4321, 1
        %v4402 = vrot.slane %v4322, 1
        %v4403 = vrot.slane %v4323, 1
        %v4406 = vsel %vm874, %v4268, %v4381
        %v4409 = vsel %vm874, %v4270, %v4383
        %v4412 = vsel %vm874, %v4272, %v4385
        %v4415 = vsel %vm874, %v4274, %v4387
        %v4418 = vsel %vm874, %v4276, %v4389
        %v4421 = vsel %vm874, %v4278, %v4391
        %v4424 = vsel %vm874, %v4280, %v4393
        %v4427 = vsel %vm874, %v4282, %v4395
        %v4436 = vunpack.c.l.b16 %v4406
        %v4437 = vunpack.c.l.b16 %v4396
        %v4438 = vunpack.c.l.b16 %v4409
        %v4439 = vunpack.c.l.b16 %v4397
        %v4440 = vunpack.c.l.b16 %v4412
        %v4441 = vunpack.c.l.b16 %v4398
        %v4442 = vunpack.c.l.b16 %v4415
        %v4443 = vunpack.c.l.b16 %v4399
        %v4444 = vunpack.c.l.b16 %v4418
        %v4445 = vunpack.c.l.b16 %v4400
        %v4446 = vunpack.c.l.b16 %v4421
        %v4447 = vunpack.c.l.b16 %v4401
        %v4448 = vunpack.c.l.b16 %v4424
        %v4449 = vunpack.c.l.b16 %v4402
        %v4450 = vunpack.c.l.b16 %v4427
        %v4451 = vunpack.c.l.b16 %v4403
        %s4452 = scalar_lea.vmem %s2, 768
        %v4453 = vld [vmem:[%s4452] sm:$0xf]
        %v4454 = vld [vmem:[%s4452 + $0x4] sm:$0xf]
        %v4455 = vld [vmem:[%s4452 + $0x8] sm:$0xf]
        %v4456 = vld [vmem:[%s4452 + $0xc] sm:$0xf]
        %v4457 = vld [vmem:[%s4452 + $0x10] sm:$0xf]
        %v4458 = vld [vmem:[%s4452 + $0x14] sm:$0xf]
        %v4459 = vld [vmem:[%s4452 + $0x18] sm:$0xf]
        %v4460 = vld [vmem:[%s4452 + $0x1c] sm:$0xf]
        %v4461 = vld [vmem:[%s4452 + $0x20] sm:$0xf]
        %v4462 = vld [vmem:[%s4452 + $0x24] sm:$0xf]
        %v4463 = vld [vmem:[%s4452 + $0x28] sm:$0xf]
        %v4464 = vld [vmem:[%s4452 + $0x2c] sm:$0xf]
        %v4465 = vld [vmem:[%s4452 + $0x30] sm:$0xf]
        %v4466 = vld [vmem:[%s4452 + $0x34] sm:$0xf]
        %v4467 = vld [vmem:[%s4452 + $0x38] sm:$0xf]
        %v4468 = vld [vmem:[%s4452 + $0x3c] sm:$0xf]
        %v4469 = vld [vmem:[%s4452 + $0x40] sm:$0xf]
        %v4470 = vld [vmem:[%s4452 + $0x44] sm:$0xf]
        %v4471 = vld [vmem:[%s4452 + $0x48] sm:$0xf]
        %v4472 = vld [vmem:[%s4452 + $0x4c] sm:$0xf]
        %v4473 = vld [vmem:[%s4452 + $0x50] sm:$0xf]
        %v4474 = vld [vmem:[%s4452 + $0x54] sm:$0xf]
        %v4475 = vld [vmem:[%s4452 + $0x58] sm:$0xf]
        %v4476 = vld [vmem:[%s4452 + $0x5c] sm:$0xf]
        %v4477 = vpack.c.b16 %v4438, %v4436
        %v4478 = vpack.c.b16 %v4439, %v4437
        %v4479 = vpack.c.b16 %v4442, %v4440
        %v4480 = vpack.c.b16 %v4443, %v4441
        %v4481 = vpack.c.b16 %v4446, %v4444
        %v4482 = vpack.c.b16 %v4447, %v4445
        %v4483 = vpack.c.b16 %v4450, %v4448
        %v4484 = vpack.c.b16 %v4451, %v4449
        %v4513 = vunpack.c.l.b16 %v4453
        %v4514 = vunpack.c.l.b16 %v4454
        %v4515 = vunpack.c.l.b16 %v4455
        %v4516 = vunpack.c.l.b16 %v4456
        %v4517 = vunpack.c.l.b16 %v4457
        %v4518 = vunpack.c.l.b16 %v4458
        %v4519 = vunpack.c.l.b16 %v4459
        %v4520 = vunpack.c.l.b16 %v4460
        %v4521 = vunpack.c.l.b16 %v4461
        %v4522 = vunpack.c.l.b16 %v4462
        %v4523 = vunpack.c.l.b16 %v4463
        %v4524 = vunpack.c.l.b16 %v4464
        %v4525 = vunpack.c.l.b16 %v4465
        %v4526 = vunpack.c.l.b16 %v4466
        %v4527 = vunpack.c.l.b16 %v4467
        %v4528 = vunpack.c.l.b16 %v4468
        %v4529 = vunpack.c.l.b16 %v4469
        %v4530 = vunpack.c.l.b16 %v4470
        %v4531 = vunpack.c.l.b16 %v4471
        %v4532 = vunpack.c.l.b16 %v4472
        %v4533 = vunpack.c.l.b16 %v4473
        %v4534 = vunpack.c.l.b16 %v4474
        %v4535 = vunpack.c.l.b16 %v4475
        %v4536 = vunpack.c.l.b16 %v4476
        %v4537 = vpack.c.b16 %v4514, %v4513
        %v4538 = vpack.c.b16 %v4516, %v4515
        %v4539 = vpack.c.b16 %v4518, %v4517
        %v4540 = vpack.c.b16 %v4520, %v4519
        %v4541 = vpack.c.b16 %v4522, %v4521
        %v4542 = vpack.c.b16 %v4524, %v4523
        %v4543 = vpack.c.b16 %v4526, %v4525
        %v4544 = vpack.c.b16 %v4528, %v4527
        %v4545 = vpack.c.b16 %v4530, %v4529
        %v4546 = vpack.c.b16 %v4532, %v4531
        %v4547 = vpack.c.b16 %v4534, %v4533
        %v4548 = vpack.c.b16 %v4536, %v4535
        %v4562 = vsel %vm874, %v4478, 0
        %v4565 = vsel %vm874, %v4480, 0
        %v4568 = vsel %vm874, %v4482, 0
        %v4571 = vsel %vm874, %v4484, 0
        %4573 = vmatprep.subr.bf16.mxu0 0
        %4574 = vmatpush1.bf16.msra.mxu0 %v4537
        %4575 = vmatprep.subr.bf16.mxu0 0
        %4576 = vmatpush1.bf16.msra.mxu0 %v4538
        %4577 = vmatprep.subr.bf16.mxu0 0
        %4578 = vmatpush1.bf16.msra.mxu0 %v4539
        %4579 = vmatprep.subr.bf16.mxu0 0
        %4580 = vmatpush1.bf16.msra.mxu0 %v4540
        %4581 = vmatprep.subr.bf16.mxu0 0
        %4582 = vmatpush1.bf16.msra.mxu0 %v4541
        %4583 = vmatprep.subr.bf16.mxu0 0
        %4584 = vmatpush1.bf16.msra.mxu0 %v4542
        %4585 = vmatprep.subr.bf16.mxu0 0
        %4586 = vmatpush1.bf16.msra.mxu0 %v4543
        %4587 = vmatprep.subr.bf16.mxu0 0
        %4588 = vmatpush1.bf16.msra.mxu0 %v4544
        %4589 = vmatprep.subr.bf16.mxu0 0
        %4590 = vmatpush1.bf16.msra.mxu0 %v4545
        %4591 = vmatprep.subr.bf16.mxu0 0
        %4592 = vmatpush1.bf16.msra.mxu0 %v4546
        %4593 = vmatprep.subr.bf16.mxu0 0
        %4594 = vmatpush1.bf16.msra.mxu0 %v4547
        %4595 = vmatprep.subr.bf16.mxu0 0
        %4596 = vmatpush1.bf16.msra.mxu0 %v4548
        %4597 = vmatprep.subr.bf16.mxu0 0
        %4598 = vmatpush1.bf16.msra.mxu0 0
        %4599 = vmatprep.subr.bf16.mxu0 0
        %4600 = vmatpush1.bf16.msra.mxu0 0
        %4601 = vmatprep.subr.bf16.mxu0 0
        %4602 = vmatpush1.bf16.msra.mxu0 0
        %4603 = vmatprep.subr.bf16.mxu0 0
        %4604 = vmatpush1.bf16.msra.mxu0 0
        %4605 = vmatprep.mubr.bf16.mxu0 %v4562
        %4606 = vmatmul.mubr.bf16.gmra.mrb[0].mxu0 %v4477
        %v4607 = vpop.f32.mrb[0].mxu0
        %v4608 = vadd.f32 0.0, %v4607
        %v4609 = vpop.f32.mrb[0].mxu0
        %v4610 = vpop.f32.mrb[0].mxu0
        %v4611 = vadd.f32 0.0, %v4610
        %v4612 = vpop.f32.mrb[0].mxu0
        %4613 = vmatprep.mubr.bf16.mxu0 %v4565
        %4614 = vmatmul.mubr.bf16.gmra.mrb[0].mxu0 %v4479
        %v4615 = vpop.f32.mrb[0].mxu0
        %v4616 = vadd.f32 0.0, %v4615
        %v4617 = vpop.f32.mrb[0].mxu0
        %v4618 = vpop.f32.mrb[0].mxu0
        %v4619 = vadd.f32 0.0, %v4618
        %v4620 = vpop.f32.mrb[0].mxu0
        %4621 = vmatprep.mubr.bf16.mxu0 %v4568
        %4622 = vmatmul.mubr.bf16.gmra.mrb[0].mxu0 %v4481
        %v4623 = vpop.f32.mrb[0].mxu0
        %v4624 = vadd.f32 0.0, %v4623
        %v4625 = vpop.f32.mrb[0].mxu0
        %v4626 = vpop.f32.mrb[0].mxu0
        %v4627 = vadd.f32 0.0, %v4626
        %v4628 = vpop.f32.mrb[0].mxu0
        %4629 = vmatprep.mubr.bf16.mxu0 %v4571
        %4630 = vmatmul.mubr.bf16.gmra.mrb[0].mxu0 %v4483
        %v4631 = vpop.f32.mrb[0].mxu0
        %v4632 = vadd.f32 0.0, %v4631
        %v4633 = vpop.f32.mrb[0].mxu0
        %v4634 = vpop.f32.mrb[0].mxu0
        %v4635 = vadd.f32 0.0, %v4634
        %v4636 = vpop.f32.mrb[0].mxu0
        %4637 = vdwg.mxu0
        %v4638 = vadd.f32 %v4238, %v4608
        %v4639 = vadd.f32 %v4241, %v4611
        %v4640 = vadd.f32 %v4246, %v4616
        %v4641 = vadd.f32 %v4249, %v4619
        %v4642 = vadd.f32 %v4254, %v4624
        %v4643 = vadd.f32 %v4257, %v4627
        %v4644 = vadd.f32 %v4262, %v4632
        %v4645 = vadd.f32 %v4265, %v4635
        %v4646 = vld [vmem:[#allocation6 + $0x3] sm:$0x1]
        %v4647 = vld [vmem:[#allocation8 + $0x3] sm:$0x1]
        %v4648 = vlaneseq
        %v4649 = vshrl.u32 %v4648, 7
        %v4650 = vsub.s32 0, %v4649
        %v4651 = vrot.slane %v4646, %v4650
        %v4652 = vmul.f32 %v4638, %v4651
        %v4653 = vmul.f32 %v4639, %v4651
        %v4654 = vmul.f32 %v4640, %v4651
        %v4655 = vmul.f32 %v4641, %v4651
        %v4656 = vmul.f32 %v4642, %v4651
        %v4657 = vmul.f32 %v4643, %v4651
        %v4658 = vmul.f32 %v4644, %v4651
        %v4659 = vmul.f32 %v4645, %v4651
        %v4660 = vlaneseq
        %v4661 = vshrl.u32 %v4660, 7
        %v4662 = vsub.s32 0, %v4661
        %v4663 = vrot.slane %v4647, %v4662
        %v4664 = vadd.f32 %v4652, %v4663
        %v4665 = vadd.f32 %v4653, %v4663
        %v4666 = vadd.f32 %v4654, %v4663
        %v4667 = vadd.f32 %v4655, %v4663
        %v4668 = vadd.f32 %v4656, %v4663
        %v4669 = vadd.f32 %v4657, %v4663
        %v4670 = vadd.f32 %v4658, %v4663
        %v4671 = vadd.f32 %v4659, %v4663
        %vm4672 = vcmp.ge.f32.partialorder %v4664, 0.0
        %vm4673 = vcmp.ge.f32.partialorder %v4665, 0.0
        %vm4674 = vcmp.ge.f32.partialorder %v4666, 0.0
        %vm4675 = vcmp.ge.f32.partialorder %v4667, 0.0
        %vm4676 = vcmp.ge.f32.partialorder %v4668, 0.0
        %vm4677 = vcmp.ge.f32.partialorder %v4669, 0.0
        %vm4678 = vcmp.ge.f32.partialorder %v4670, 0.0
        %vm4679 = vcmp.ge.f32.partialorder %v4671, 0.0
        %v4680 = vmul.f32 %v4664, 0.1
        %v4681 = vmul.f32 %v4665, 0.1
        %v4682 = vmul.f32 %v4666, 0.1
        %v4683 = vmul.f32 %v4667, 0.1
        %v4684 = vmul.f32 %v4668, 0.1
        %v4685 = vmul.f32 %v4669, 0.1
        %v4686 = vmul.f32 %v4670, 0.1
        %v4687 = vmul.f32 %v4671, 0.1
        %v4688 = vsel %vm4672, %v4664, %v4680
        %v4689 = vsel %vm4673, %v4665, %v4681
        %v4690 = vsel %vm4674, %v4666, %v4682
        %v4691 = vsel %vm4675, %v4667, %v4683
        %v4692 = vsel %vm4676, %v4668, %v4684
        %v4693 = vsel %vm4677, %v4669, %v4685
        %v4694 = vsel %vm4678, %v4670, %v4686
        %v4695 = vsel %vm4679, %v4671, %v4687
        %v4696 = vpack.c.bf16 %v4689, %v4688
        %v4697 = vpack.c.bf16 %v4691, %v4690
        %v4698 = vpack.c.bf16 %v4693, %v4692
        %v4699 = vpack.c.bf16 %v4695, %v4694
        %v4704 = vunpack.c.l.b16 %v4696
        %v4705 = vunpack.c.h.b16 %v4696
        %v4706 = vunpack.c.l.b16 %v4697
        %v4707 = vunpack.c.h.b16 %v4697
        %v4708 = vunpack.c.l.b16 %v4698
        %v4709 = vunpack.c.h.b16 %v4698
        %v4710 = vunpack.c.l.b16 %v4699
        %v4711 = vunpack.c.h.b16 %v4699
        %v4712 = vpack.c.b16 %v4704, %v4704
        %v4713 = vpack.c.b16 %v4705, %v4705
        %v4714 = vpack.c.b16 %v4706, %v4706
        %v4715 = vpack.c.b16 %v4707, %v4707
        %v4716 = vpack.c.b16 %v4708, %v4708
        %v4717 = vpack.c.b16 %v4709, %v4709
        %v4718 = vpack.c.b16 %v4710, %v4710
        %v4719 = vpack.c.b16 %v4711, %v4711
        %4728 = vst.msk [vmem:[%s264] sm:$0xf] %vm266, %v4712
        %4729 = vst.msk [vmem:[%s264 + $0x4] sm:$0xf] %vm266, %v4713
        %4730 = vst.msk [vmem:[%s264 + $0x8] sm:$0xf] %vm266, %v4714
        %4731 = vst.msk [vmem:[%s264 + $0xc] sm:$0xf] %vm266, %v4715
        %4732 = vst.msk [vmem:[%s264 + $0x10] sm:$0xf] %vm266, %v4716
        %4733 = vst.msk [vmem:[%s264 + $0x14] sm:$0xf] %vm266, %v4717
        %4734 = vst.msk [vmem:[%s264 + $0x18] sm:$0xf] %vm266, %v4718
        %4735 = vst.msk [vmem:[%s264 + $0x1c] sm:$0xf] %vm266, %v4719
        %p4736 = scmp.lt.s32.totalorder %s18, 1
        %s4737 = scalar_select %p4736, %s18, 1
        %s4738 = smul.addr %s4737, 8
        %s4739 = smul.addr %s4738, 4
        %s4740 = scalar_lea.vmem %s5, %s4739
        // Predicated region
        $region53: #{gesture_predictor_forward.2} parent=39 // pred_check
          %p4741 = pneg %p146
        $region54: #{gesture_predictor_forward.2} parent=39 // pred_check_branch
          %4743 = sbr.rel (%p4741) target = $region56
        $region55: #{gesture_predictor_forward.2} parent=39 // pred_region
          _
        $region56: #{gesture_predictor_forward.2} parent=39 // pred_fallthru
          _
      $region40: #{gesture_predictor_forward.2} parent=5 // pred_fallthru
        _
      %p4744 = scmp.le.s32.totalorder 2, %s13
      // Predicated region
      $region57: #{gesture_predictor_forward.2} parent=5 // pred_check
        %p4745 = pneg %p4744
      $region58: #{gesture_predictor_forward.2} parent=5 // pred_check_branch
        %4747 = sbr.rel (%p4745) target = $region60
      $region59: #{gesture_predictor_forward.2} parent=5 // pred_region
        %s4748 = ssub.s32 %s13, 2
        // Predicated region
        $region61: #{gesture_predictor_forward.2} parent=59 // pred_check
          %p4749 = pneg %p152
        $region62: #{gesture_predictor_forward.2} parent=59 // pred_check_branch
          %4751 = sbr.rel (%p4749) target = $region64
        $region63: #{gesture_predictor_forward.2} parent=59 // pred_region
          %p4752 = scmp.lt.s32.totalorder %s19, 1
          %s4753 = scalar_select %p4752, %s19, 1
          %s4754 = smul.addr %s4753, 8
          %s4755 = smul.addr %s4754, 4
          %s4756 = scalar_lea.vmem %s5, %s4755
        $region64: #{gesture_predictor_forward.2} parent=59 // pred_fallthru
          _
      $region60: #{gesture_predictor_forward.2} parent=5 // pred_fallthru
        _
    $region6: #{gesture_predictor_forward.2} parent=1 // loop_footer
      %s17 = sadd.s32 1, %s13
    $region7: #{gesture_predictor_forward.2} parent=1 // loop_footer_branch
      %12 = sbr.rel target = $region3
    $region8: #{gesture_predictor_forward.2} parent=1 // loop_exit
      _
    %4757 = vsyncpa [#allocation5], 1
    %s4758 = scalar_lea.sflag [#allocation5], 1
    %4759 = vsyncpa %s4758, 1
    %4760 = vsyncpa [#allocation7], 1

</llo_original>
